<compile_context>
chip_gen: v6e
topology: v6e:2x2x1
jax: 0.10.0
libtpu: 0.0.40
codegen_flags: <defaults>
</compile_context>

<pallas_src>
import jax
import jax.numpy as jnp
from jax.experimental import pallas as pl
from jax.experimental.pallas import tpu as pltpu


# ---------------------------------------------------------------------------
# Pallas kernel: fused embedding-gather + Conv1d(k=3,pad=1) + ReLU + attention
# ---------------------------------------------------------------------------
def _encoder_kernel(tok_ref, w_ref, b_ref, aw_ref, out_ref, ctx_ref):
    # tok_ref : (3, S, Bb) int32  token streams [t-1, t, t+1]; out-of-range
    #                             positions / batch padding hold sentinel V.
    # w_ref   : (3, H, Vp) f32    fused weights  M_k^T = (table_pad @ W_k)^T
    # b_ref   : (H, 1)     f32    conv bias (column)
    # aw_ref  : (H, 1)     f32    attention projection weight (column)
    # out_ref : (S, Bb, H) f32    per-position hidden states, (s, b, h) order
    # ctx_ref : (Bb, H)    f32    attention-pooled context vectors
    _, S, Bb = tok_ref.shape
    _, H, Vp = w_ref.shape

    # Hoisted loop invariants.
    iota_v = jax.lax.broadcasted_iota(jnp.int32, (Vp, Bb), 0)
    w_taps = [w_ref[0], w_ref[1], w_ref[2]]          # each (H, Vp)
    bias_col = b_ref[...]                            # (H, 1)
    aw_col = aw_ref[...]                             # (H, 1)

    h_t_list = []                                    # (H, Bb) per position
    score_list = []                                  # (1, Bb) per position

    for s in range(S):
        acc = bias_col                               # broadcasts to (H, Bb)
        for k in range(3):
            tok_row = tok_ref[k, pl.ds(s, 1), :]                  # (1, Bb)
            onehot_t = (iota_v == tok_row).astype(jnp.float32)    # (Vp, Bb)
            # Gather + conv tap in one MXU matmul (weights pre-fused).
            acc = acc + jnp.dot(w_taps[k], onehot_t,
                                preferred_element_type=jnp.float32)
        h_t = jnp.maximum(acc, 0.0)                  # ReLU, (H, Bb)
        h_t_list.append(h_t)
        # Store directly in (s, b, h) order -> no wrapper transpose pass.
        out_ref[s, :, :] = jnp.transpose(h_t)        # (Bb, H)
        # Attention logit: sublane reduction over H (lane-dense (1, Bb) row).
        score_list.append(jnp.sum(h_t * aw_col, axis=0, keepdims=True))

    # Softmax over the S positions, exact arithmetic.  (The scalar attention
    # bias is constant over the softmax axis and cancels -> omitted.)
    m = score_list[0]
    for s in range(1, S):
        m = jnp.maximum(m, score_list[s])
    p_list = [jnp.exp(sc - m) for sc in score_list]
    denom = p_list[0]
    for s in range(1, S):
        denom = denom + p_list[s]
    inv = 1.0 / denom                                # (1, Bb), exact divide

    ctx_t = jnp.zeros((H, Bb), jnp.float32)
    for s in range(S):
        ctx_t = ctx_t + h_t_list[s] * (p_list[s] * inv)
    ctx_ref[...] = jnp.transpose(ctx_t)              # (Bb, H)


def _choose_block_b(B, S, target_rows=8192):
    """Batch tile: multiple of 8 always; multiple of 128 (token-block lane dim)
    when the batch is split; >=2 grid steps for large B (v7x megacore)."""
    if B <= 256:
        return max(8, ((B + 7) // 8) * 8)            # single grid step
    bb_max = max(128, ((target_rows // max(S, 1)) // 128) * 128)
    bb = ((B + 2 * 128 - 1) // (2 * 128)) * 128      # ~ceil(B/2), mult of 128
    return int(max(128, min(bb_max, bb)))


def _fused_cnn_attention(tok3, w_fused, conv_b, attn_w, *, S, Bp, block_b, H):
    grid = Bp // block_b
    grid_spec = pltpu.PrefetchScalarGridSpec(
        num_scalar_prefetch=0,
        grid=(grid,),
        in_specs=[
            pl.BlockSpec((3, S, block_b), lambda i: (0, 0, i)),   # tokens
            pl.BlockSpec(w_fused.shape, lambda i: (0, 0, 0)),     # fused W
            pl.BlockSpec((H, 1), lambda i: (0, 0)),               # conv bias
            pl.BlockSpec((H, 1), lambda i: (0, 0)),               # attn weight
        ],
        out_specs=(
            pl.BlockSpec((S, block_b, H), lambda i: (0, i, 0)),   # output
            pl.BlockSpec((block_b, H), lambda i: (i, 0)),         # context
        ),
    )
    return pl.pallas_call(
        _encoder_kernel,
        out_shape=(
            jax.ShapeDtypeStruct((S, Bp, H), jnp.float32),
            jax.ShapeDtypeStruct((Bp, H), jnp.float32),
        ),
        grid_spec=grid_spec,
        compiler_params=pltpu.CompilerParams(
            dimension_semantics=("parallel",),
            vmem_limit_bytes=32 * 1024 * 1024,
        ),
    )(tok3, w_fused, conv_b.reshape(H, 1), attn_w.reshape(H, 1))


# ---------------------------------------------------------------------------
# Module wrapper
# ---------------------------------------------------------------------------
def source_image_attention_encoder_v2(tokens_sb, params, *, block_b=None):
    """tokens_sb: (S, B) int32 token ids.

    Returns (output (S, B, H), context (1, B, H)) matching the PyTorch module.
    """
    S, B = tokens_sb.shape
    emb = params["embedding"].astype(jnp.float32)     # (V, E)
    conv_w = params["conv_w"].astype(jnp.float32)     # (3, E, H)
    conv_b = params["conv_b"].astype(jnp.float32)     # (H,)
    attn_w = params["attn_w"].astype(jnp.float32)     # (H, 1)
    V, _E = emb.shape
    H = conv_w.shape[-1]

    # x = self.dropout(self.embedding(x)) -- eval-mode dropout == identity.
    # TODO(synk): training-mode dropout would mask the embedded rows in-kernel.

    if block_b is None:
        block_b = _choose_block_b(B, S)
    else:
        block_b = max(8, ((int(block_b) + 7) // 8) * 8)
        if block_b < B:
            block_b = max(128, ((block_b + 127) // 128) * 128)
    Bp = pl.cdiv(B, block_b) * block_b

    # Pad the vocab; index V is a sentinel whose (zero) row realizes the
    # conv zero-padding and the batch padding.
    Vp = max(8, ((V + 1 + 7) // 8) * 8)
    table_pad = jnp.zeros((Vp, emb.shape[1]), jnp.float32).at[:V, :].set(emb)
    # Fuse gather with each conv tap, transposed for lane-major matmuls:
    # w_fused[k, h, v] = sum_e conv_w[k, e, h] * table_pad[v, e]
    w_fused = jnp.einsum('keh,ve->khv', conv_w, table_pad)        # (3, H, Vp)

    # Pre-shifted token streams realize the k=3, pad=1 conv taps.
    sentinel = V
    tok = tokens_sb.astype(jnp.int32)                 # (S, B)
    pad_row = jnp.full((1, B), sentinel, jnp.int32)
    tok_prev = jnp.concatenate([pad_row, tok[:-1]], axis=0)
    tok_next = jnp.concatenate([tok[1:], pad_row], axis=0)
    tok3 = jnp.stack([tok_prev, tok, tok_next], axis=0)           # (3, S, B)
    if Bp != B:
        tok3 = jnp.pad(tok3, ((0, 0), (0, 0), (0, Bp - B)),
                       constant_values=sentinel)

    out_sbh, ctx_bh = _fused_cnn_attention(
        tok3, w_fused, conv_b, attn_w, S=S, Bp=Bp, block_b=block_b, H=H)

    # Output already produced in (s, b, h) order -> no HBM transpose pass.
    output = out_sbh[:, :B, :]                        # (S, B, H)
    context = ctx_bh[:B][None, :, :]                  # (1, B, H)
    # NOTE: attn_b (pre-softmax scalar bias) cancels in the softmax -> unused.
    return output, context


def init_params(key, vocab=50, emb=32, hidden=32):
    k1, k2, k3, k4, k5 = jax.random.split(key, 5)
    return {
        "embedding": jax.random.normal(k1, (vocab, emb), jnp.float32) * 0.1,
        # Conv1d taps as (3, E, H): tap 0 = t-1, 1 = t, 2 = t+1.
        "conv_w": jax.random.normal(k2, (3, emb, hidden), jnp.float32) * 0.1,
        "conv_b": jax.random.normal(k3, (hidden,), jnp.float32) * 0.1,
        "attn_w": jax.random.normal(k4, (hidden, 1), jnp.float32) * 0.1,
        "attn_b": jax.random.normal(k5, (1,), jnp.float32) * 0.1,
    }


def _reference(tokens, params):
    """Pure-JAX reference of the module forward (eval mode)."""
    S = tokens.shape[0]
    x_sbe = params["embedding"][tokens]                            # (S, B, E)
    x_bse = jnp.einsum('sbe->bse', x_sbe)
    xp = jnp.pad(x_bse, ((0, 0), (1, 1), (0, 0)))
    h = (jnp.einsum('bse,eh->bsh', xp[:, 0:S], params["conv_w"][0])
         + jnp.einsum('bse,eh->bsh', xp[:, 1:S + 1], params["conv_w"][1])
         + jnp.einsum('bse,eh->bsh', xp[:, 2:S + 2], params["conv_w"][2])
         + params["conv_b"])
    h = jnp.maximum(h, 0.0)
    sc = jnp.einsum('bsh,ho->bso', h, params["attn_w"]) + params["attn_b"]
    alpha = jax.nn.softmax(sc, axis=1)
    ctx = jnp.sum(alpha * h, axis=1)                               # (B, H)
    out = jnp.einsum('bsh->sbh', h)                                # (S, B, H)
    return out, ctx


if __name__ == "__main__":
    S, B, V, E, H = 8, 2, 50, 32, 32
    key = jax.random.PRNGKey(0)
    kp, kt, kt2 = jax.random.split(key, 3)
    params = init_params(kp, vocab=V, emb=E, hidden=H)

    fwd = jax.jit(source_image_attention_encoder_v2)

    # --- small-shape test (module-sized) --------------------------------
    tokens = jax.random.randint(kt, (S, B), 0, V, dtype=jnp.int32)
    output, context = fwd(tokens, params)
    jax.block_until_ready((output, context))
    assert output.shape == (S, B, H), output.shape
    assert context.shape == (1, B, H), context.shape
    out_ref, ctx_ref = _reference(tokens, params)
    assert jnp.allclose(output, out_ref, atol=2e-4, rtol=2e-4), "output mismatch"
    assert jnp.allclose(context[0], ctx_ref, atol=2e-4, rtol=2e-4), \
        "context mismatch"

    # --- multi-block smoke test (exercises grid>1 + batch padding) ------
    B2 = 384
    tokens2 = jax.random.randint(kt2, (S, B2), 0, V, dtype=jnp.int32)
    output2, context2 = fwd(tokens2, params)
    jax.block_until_ready((output2, context2))
    out_ref2, ctx_ref2 = _reference(tokens2, params)
    assert output2.shape == (S, B2, H) and context2.shape == (1, B2, H)
    assert jnp.allclose(output2, out_ref2, atol=2e-4, rtol=2e-4), \
        "output mismatch (multi-block)"
    assert jnp.allclose(context2[0], ctx_ref2, atol=2e-4, rtol=2e-4), \
        "context mismatch (multi-block)"

    print("KERNEL_OK")
</pallas_src>

<mosaic_0001>
module attributes {stable_mosaic.version = 11 : i64} {
  func.func @_encoder_kernel(%arg0: i32, %arg1: memref<3x8x8xi32, #tpu.memory_space<vmem>>, %arg2: memref<3x32x56xf32, #tpu.memory_space<vmem>>, %arg3: memref<32x1xf32, #tpu.memory_space<vmem>>, %arg4: memref<32x1xf32, #tpu.memory_space<vmem>>, %arg5: memref<8x8x32xf32, #tpu.memory_space<vmem>>, %arg6: memref<8x32xf32, #tpu.memory_space<vmem>>) attributes {dimension_semantics = [#tpu.dimension_semantics<parallel>], iteration_bounds = array<i64: 1>, scalar_prefetch = 0 : i64, scratch_operands = 0 : i64, tpu.core_type = #tpu.core_type<tc>, window_params = [{transform_indices = @transform_0, window_bounds = array<i64: 3, 8, 8>}, {pipeline_mode = #tpu.pipeline_mode<synchronous>, transform_indices = @transform_1, window_bounds = array<i64: 3, 32, 56>}, {pipeline_mode = #tpu.pipeline_mode<synchronous>, transform_indices = @transform_2, window_bounds = array<i64: 32, 1>}, {pipeline_mode = #tpu.pipeline_mode<synchronous>, transform_indices = @transform_3, window_bounds = array<i64: 32, 1>}, {transform_indices = @transform_4, window_bounds = array<i64: 8, 8, 32>}, {transform_indices = @transform_5, window_bounds = array<i64: 8, 32>}]} {
    %0 = tpu.iota {dimensions = array<i32: 0>} : vector<56x8xi32>
    %c0 = arith.constant 0 : index
    %c0_0 = arith.constant 0 : index
    %c0_1 = arith.constant 0 : index
    %1 = vector.load %arg2[%c0, %c0_0, %c0_1] : memref<3x32x56xf32, #tpu.memory_space<vmem>>, vector<1x32x56xf32>
    %2 = vector.shape_cast %1 : vector<1x32x56xf32> to vector<32x56xf32>
    %c1 = arith.constant 1 : index
    %c0_2 = arith.constant 0 : index
    %c0_3 = arith.constant 0 : index
    %3 = vector.load %arg2[%c1, %c0_2, %c0_3] : memref<3x32x56xf32, #tpu.memory_space<vmem>>, vector<1x32x56xf32>
    %4 = vector.shape_cast %3 : vector<1x32x56xf32> to vector<32x56xf32>
    %c2 = arith.constant 2 : index
    %c0_4 = arith.constant 0 : index
    %c0_5 = arith.constant 0 : index
    %5 = vector.load %arg2[%c2, %c0_4, %c0_5] : memref<3x32x56xf32, #tpu.memory_space<vmem>>, vector<1x32x56xf32>
    %6 = vector.shape_cast %5 : vector<1x32x56xf32> to vector<32x56xf32>
    %c0_6 = arith.constant 0 : index
    %c0_7 = arith.constant 0 : index
    %7 = vector.load %arg3[%c0_6, %c0_7] : memref<32x1xf32, #tpu.memory_space<vmem>>, vector<32x1xf32>
    %c0_8 = arith.constant 0 : index
    %c0_9 = arith.constant 0 : index
    %8 = vector.load %arg4[%c0_8, %c0_9] : memref<32x1xf32, #tpu.memory_space<vmem>>, vector<32x1xf32>
    %c0_10 = arith.constant 0 : index
    %c0_11 = arith.constant 0 : index
    %c0_12 = arith.constant 0 : index
    %9 = vector.load %arg1[%c0_10, %c0_11, %c0_12] : memref<3x8x8xi32, #tpu.memory_space<vmem>>, vector<1x1x8xi32>
    %10 = vector.shape_cast %9 : vector<1x1x8xi32> to vector<1x8xi32>
    %11 = vector.broadcast %10 : vector<1x8xi32> to vector<56x8xi32>
    %12 = arith.cmpi eq, %0, %11 : vector<56x8xi32>
    %13 = arith.extui %12 : vector<56x8xi1> to vector<56x8xi32>
    %14 = arith.sitofp %13 : vector<56x8xi32> to vector<56x8xf32>
    %cst = arith.constant dense<0.000000e+00> : vector<32x8xf32>
    %15 = tpu.matmul %2, %14, %cst {dimension_numbers = #tpu.dot_dimension_numbers<[1], [0], [0], [1], [0, 0, 1, 1], [], []>} : vector<32x56xf32>, vector<56x8xf32>, vector<32x8xf32> -> vector<32x8xf32>
    %16 = vector.broadcast %7 : vector<32x1xf32> to vector<32x8xf32>
    %17 = arith.addf %16, %15 : vector<32x8xf32>
    %c1_13 = arith.constant 1 : index
    %c0_14 = arith.constant 0 : index
    %c0_15 = arith.constant 0 : index
    %18 = vector.load %arg1[%c1_13, %c0_14, %c0_15] : memref<3x8x8xi32, #tpu.memory_space<vmem>>, vector<1x1x8xi32>
    %19 = vector.shape_cast %18 : vector<1x1x8xi32> to vector<1x8xi32>
    %20 = vector.broadcast %19 : vector<1x8xi32> to vector<56x8xi32>
    %21 = arith.cmpi eq, %0, %20 : vector<56x8xi32>
    %22 = arith.extui %21 : vector<56x8xi1> to vector<56x8xi32>
    %23 = arith.sitofp %22 : vector<56x8xi32> to vector<56x8xf32>
    %cst_16 = arith.constant dense<0.000000e+00> : vector<32x8xf32>
    %24 = tpu.matmul %4, %23, %cst_16 {dimension_numbers = #tpu.dot_dimension_numbers<[1], [0], [0], [1], [0, 0, 1, 1], [], []>} : vector<32x56xf32>, vector<56x8xf32>, vector<32x8xf32> -> vector<32x8xf32>
    %25 = arith.addf %17, %24 : vector<32x8xf32>
    %c2_17 = arith.constant 2 : index
    %c0_18 = arith.constant 0 : index
    %c0_19 = arith.constant 0 : index
    %26 = vector.load %arg1[%c2_17, %c0_18, %c0_19] : memref<3x8x8xi32, #tpu.memory_space<vmem>>, vector<1x1x8xi32>
    %27 = vector.shape_cast %26 : vector<1x1x8xi32> to vector<1x8xi32>
    %28 = vector.broadcast %27 : vector<1x8xi32> to vector<56x8xi32>
    %29 = arith.cmpi eq, %0, %28 : vector<56x8xi32>
    %30 = arith.extui %29 : vector<56x8xi1> to vector<56x8xi32>
    %31 = arith.sitofp %30 : vector<56x8xi32> to vector<56x8xf32>
    %cst_20 = arith.constant dense<0.000000e+00> : vector<32x8xf32>
    %32 = tpu.matmul %6, %31, %cst_20 {dimension_numbers = #tpu.dot_dimension_numbers<[1], [0], [0], [1], [0, 0, 1, 1], [], []>} : vector<32x56xf32>, vector<56x8xf32>, vector<32x8xf32> -> vector<32x8xf32>
    %33 = arith.addf %25, %32 : vector<32x8xf32>
    %cst_21 = arith.constant 0.000000e+00 : f32
    %34 = vector.broadcast %cst_21 : f32 to vector<32x8xf32>
    %35 = arith.maximumf %33, %34 : vector<32x8xf32>
    %36 = tpu.transpose %35, [1, 0] : vector<32x8xf32> -> vector<8x32xf32>
    %c0_22 = arith.constant 0 : index
    %c0_23 = arith.constant 0 : index
    %c0_24 = arith.constant 0 : index
    %37 = vector.load %arg5[%c0_22, %c0_23, %c0_24] : memref<8x8x32xf32, #tpu.memory_space<vmem>>, vector<1x8x32xf32>
    %38 = vector.shape_cast %37 : vector<1x8x32xf32> to vector<8x32xf32>
    %39 = vector.shape_cast %36 : vector<8x32xf32> to vector<1x8x32xf32>
    tpu.vector_store %arg5[%c0_22, %c0_23, %c0_24], %39 {strides = array<i32>} : memref<8x8x32xf32, #tpu.memory_space<vmem>>, vector<1x8x32xf32>,
    %40 = vector.broadcast %8 : vector<32x1xf32> to vector<32x8xf32>
    %41 = arith.mulf %35, %40 : vector<32x8xf32>
    %cst_25 = arith.constant dense<0.000000e+00> : vector<8xf32>
    %42 = vector.multi_reduction <add>, %41, %cst_25 [0] : vector<32x8xf32> to vector<8xf32>
    %43 = vector.shape_cast %42 : vector<8xf32> to vector<1x8xf32>
    %c0_26 = arith.constant 0 : index
    %c1_27 = arith.constant 1 : index
    %c0_28 = arith.constant 0 : index
    %44 = vector.load %arg1[%c0_26, %c1_27, %c0_28] : memref<3x8x8xi32, #tpu.memory_space<vmem>>, vector<1x1x8xi32>
    %45 = vector.shape_cast %44 : vector<1x1x8xi32> to vector<1x8xi32>
    %46 = vector.broadcast %45 : vector<1x8xi32> to vector<56x8xi32>
    %47 = arith.cmpi eq, %0, %46 : vector<56x8xi32>
    %48 = arith.extui %47 : vector<56x8xi1> to vector<56x8xi32>
    %49 = arith.sitofp %48 : vector<56x8xi32> to vector<56x8xf32>
    %cst_29 = arith.constant dense<0.000000e+00> : vector<32x8xf32>
    %50 = tpu.matmul %2, %49, %cst_29 {dimension_numbers = #tpu.dot_dimension_numbers<[1], [0], [0], [1], [0, 0, 1, 1], [], []>} : vector<32x56xf32>, vector<56x8xf32>, vector<32x8xf32> -> vector<32x8xf32>
    %51 = vector.broadcast %7 : vector<32x1xf32> to vector<32x8xf32>
    %52 = arith.addf %51, %50 : vector<32x8xf32>
    %c1_30 = arith.constant 1 : index
    %c1_31 = arith.constant 1 : index
    %c0_32 = arith.constant 0 : index
    %53 = vector.load %arg1[%c1_30, %c1_31, %c0_32] : memref<3x8x8xi32, #tpu.memory_space<vmem>>, vector<1x1x8xi32>
    %54 = vector.shape_cast %53 : vector<1x1x8xi32> to vector<1x8xi32>
    %55 = vector.broadcast %54 : vector<1x8xi32> to vector<56x8xi32>
    %56 = arith.cmpi eq, %0, %55 : vector<56x8xi32>
    %57 = arith.extui %56 : vector<56x8xi1> to vector<56x8xi32>
    %58 = arith.sitofp %57 : vector<56x8xi32> to vector<56x8xf32>
    %cst_33 = arith.constant dense<0.000000e+00> : vector<32x8xf32>
    %59 = tpu.matmul %4, %58, %cst_33 {dimension_numbers = #tpu.dot_dimension_numbers<[1], [0], [0], [1], [0, 0, 1, 1], [], []>} : vector<32x56xf32>, vector<56x8xf32>, vector<32x8xf32> -> vector<32x8xf32>
    %60 = arith.addf %52, %59 : vector<32x8xf32>
    %c2_34 = arith.constant 2 : index
    %c1_35 = arith.constant 1 : index
    %c0_36 = arith.constant 0 : index
    %61 = vector.load %arg1[%c2_34, %c1_35, %c0_36] : memref<3x8x8xi32, #tpu.memory_space<vmem>>, vector<1x1x8xi32>
    %62 = vector.shape_cast %61 : vector<1x1x8xi32> to vector<1x8xi32>
    %63 = vector.broadcast %62 : vector<1x8xi32> to vector<56x8xi32>
    %64 = arith.cmpi eq, %0, %63 : vector<56x8xi32>
    %65 = arith.extui %64 : vector<56x8xi1> to vector<56x8xi32>
    %66 = arith.sitofp %65 : vector<56x8xi32> to vector<56x8xf32>
    %cst_37 = arith.constant dense<0.000000e+00> : vector<32x8xf32>
    %67 = tpu.matmul %6, %66, %cst_37 {dimension_numbers = #tpu.dot_dimension_numbers<[1], [0], [0], [1], [0, 0, 1, 1], [], []>} : vector<32x56xf32>, vector<56x8xf32>, vector<32x8xf32> -> vector<32x8xf32>
    %68 = arith.addf %60, %67 : vector<32x8xf32>
    %cst_38 = arith.constant 0.000000e+00 : f32
    %69 = vector.broadcast %cst_38 : f32 to vector<32x8xf32>
    %70 = arith.maximumf %68, %69 : vector<32x8xf32>
    %71 = tpu.transpose %70, [1, 0] : vector<32x8xf32> -> vector<8x32xf32>
    %c1_39 = arith.constant 1 : index
    %c0_40 = arith.constant 0 : index
    %c0_41 = arith.constant 0 : index
    %72 = vector.load %arg5[%c1_39, %c0_40, %c0_41] : memref<8x8x32xf32, #tpu.memory_space<vmem>>, vector<1x8x32xf32>
    %73 = vector.shape_cast %72 : vector<1x8x32xf32> to vector<8x32xf32>
    %74 = vector.shape_cast %71 : vector<8x32xf32> to vector<1x8x32xf32>
    tpu.vector_store %arg5[%c1_39, %c0_40, %c0_41], %74 {strides = array<i32>} : memref<8x8x32xf32, #tpu.memory_space<vmem>>, vector<1x8x32xf32>,
    %75 = vector.broadcast %8 : vector<32x1xf32> to vector<32x8xf32>
    %76 = arith.mulf %70, %75 : vector<32x8xf32>
    %cst_42 = arith.constant dense<0.000000e+00> : vector<8xf32>
    %77 = vector.multi_reduction <add>, %76, %cst_42 [0] : vector<32x8xf32> to vector<8xf32>
    %78 = vector.shape_cast %77 : vector<8xf32> to vector<1x8xf32>
    %c0_43 = arith.constant 0 : index
    %c2_44 = arith.constant 2 : index
    %c0_45 = arith.constant 0 : index
    %79 = vector.load %arg1[%c0_43, %c2_44, %c0_45] : memref<3x8x8xi32, #tpu.memory_space<vmem>>, vector<1x1x8xi32>
    %80 = vector.shape_cast %79 : vector<1x1x8xi32> to vector<1x8xi32>
    %81 = vector.broadcast %80 : vector<1x8xi32> to vector<56x8xi32>
    %82 = arith.cmpi eq, %0, %81 : vector<56x8xi32>
    %83 = arith.extui %82 : vector<56x8xi1> to vector<56x8xi32>
    %84 = arith.sitofp %83 : vector<56x8xi32> to vector<56x8xf32>
    %cst_46 = arith.constant dense<0.000000e+00> : vector<32x8xf32>
    %85 = tpu.matmul %2, %84, %cst_46 {dimension_numbers = #tpu.dot_dimension_numbers<[1], [0], [0], [1], [0, 0, 1, 1], [], []>} : vector<32x56xf32>, vector<56x8xf32>, vector<32x8xf32> -> vector<32x8xf32>
    %86 = vector.broadcast %7 : vector<32x1xf32> to vector<32x8xf32>
    %87 = arith.addf %86, %85 : vector<32x8xf32>
    %c1_47 = arith.constant 1 : index
    %c2_48 = arith.constant 2 : index
    %c0_49 = arith.constant 0 : index
    %88 = vector.load %arg1[%c1_47, %c2_48, %c0_49] : memref<3x8x8xi32, #tpu.memory_space<vmem>>, vector<1x1x8xi32>
    %89 = vector.shape_cast %88 : vector<1x1x8xi32> to vector<1x8xi32>
    %90 = vector.broadcast %89 : vector<1x8xi32> to vector<56x8xi32>
    %91 = arith.cmpi eq, %0, %90 : vector<56x8xi32>
    %92 = arith.extui %91 : vector<56x8xi1> to vector<56x8xi32>
    %93 = arith.sitofp %92 : vector<56x8xi32> to vector<56x8xf32>
    %cst_50 = arith.constant dense<0.000000e+00> : vector<32x8xf32>
    %94 = tpu.matmul %4, %93, %cst_50 {dimension_numbers = #tpu.dot_dimension_numbers<[1], [0], [0], [1], [0, 0, 1, 1], [], []>} : vector<32x56xf32>, vector<56x8xf32>, vector<32x8xf32> -> vector<32x8xf32>
    %95 = arith.addf %87, %94 : vector<32x8xf32>
    %c2_51 = arith.constant 2 : index
    %c2_52 = arith.constant 2 : index
    %c0_53 = arith.constant 0 : index
    %96 = vector.load %arg1[%c2_51, %c2_52, %c0_53] : memref<3x8x8xi32, #tpu.memory_space<vmem>>, vector<1x1x8xi32>
    %97 = vector.shape_cast %96 : vector<1x1x8xi32> to vector<1x8xi32>
    %98 = vector.broadcast %97 : vector<1x8xi32> to vector<56x8xi32>
    %99 = arith.cmpi eq, %0, %98 : vector<56x8xi32>
    %100 = arith.extui %99 : vector<56x8xi1> to vector<56x8xi32>
    %101 = arith.sitofp %100 : vector<56x8xi32> to vector<56x8xf32>
    %cst_54 = arith.constant dense<0.000000e+00> : vector<32x8xf32>
    %102 = tpu.matmul %6, %101, %cst_54 {dimension_numbers = #tpu.dot_dimension_numbers<[1], [0], [0], [1], [0, 0, 1, 1], [], []>} : vector<32x56xf32>, vector<56x8xf32>, vector<32x8xf32> -> vector<32x8xf32>
    %103 = arith.addf %95, %102 : vector<32x8xf32>
    %cst_55 = arith.constant 0.000000e+00 : f32
    %104 = vector.broadcast %cst_55 : f32 to vector<32x8xf32>
    %105 = arith.maximumf %103, %104 : vector<32x8xf32>
    %106 = tpu.transpose %105, [1, 0] : vector<32x8xf32> -> vector<8x32xf32>
    %c2_56 = arith.constant 2 : index
    %c0_57 = arith.constant 0 : index
    %c0_58 = arith.constant 0 : index
    %107 = vector.load %arg5[%c2_56, %c0_57, %c0_58] : memref<8x8x32xf32, #tpu.memory_space<vmem>>, vector<1x8x32xf32>
    %108 = vector.shape_cast %107 : vector<1x8x32xf32> to vector<8x32xf32>
    %109 = vector.shape_cast %106 : vector<8x32xf32> to vector<1x8x32xf32>
    tpu.vector_store %arg5[%c2_56, %c0_57, %c0_58], %109 {strides = array<i32>} : memref<8x8x32xf32, #tpu.memory_space<vmem>>, vector<1x8x32xf32>,
    %110 = vector.broadcast %8 : vector<32x1xf32> to vector<32x8xf32>
    %111 = arith.mulf %105, %110 : vector<32x8xf32>
    %cst_59 = arith.constant dense<0.000000e+00> : vector<8xf32>
    %112 = vector.multi_reduction <add>, %111, %cst_59 [0] : vector<32x8xf32> to vector<8xf32>
    %113 = vector.shape_cast %112 : vector<8xf32> to vector<1x8xf32>
    %c0_60 = arith.constant 0 : index
    %c3 = arith.constant 3 : index
    %c0_61 = arith.constant 0 : index
    %114 = vector.load %arg1[%c0_60, %c3, %c0_61] : memref<3x8x8xi32, #tpu.memory_space<vmem>>, vector<1x1x8xi32>
    %115 = vector.shape_cast %114 : vector<1x1x8xi32> to vector<1x8xi32>
    %116 = vector.broadcast %115 : vector<1x8xi32> to vector<56x8xi32>
    %117 = arith.cmpi eq, %0, %116 : vector<56x8xi32>
    %118 = arith.extui %117 : vector<56x8xi1> to vector<56x8xi32>
    %119 = arith.sitofp %118 : vector<56x8xi32> to vector<56x8xf32>
    %cst_62 = arith.constant dense<0.000000e+00> : vector<32x8xf32>
    %120 = tpu.matmul %2, %119, %cst_62 {dimension_numbers = #tpu.dot_dimension_numbers<[1], [0], [0], [1], [0, 0, 1, 1], [], []>} : vector<32x56xf32>, vector<56x8xf32>, vector<32x8xf32> -> vector<32x8xf32>
    %121 = vector.broadcast %7 : vector<32x1xf32> to vector<32x8xf32>
    %122 = arith.addf %121, %120 : vector<32x8xf32>
    %c1_63 = arith.constant 1 : index
    %c3_64 = arith.constant 3 : index
    %c0_65 = arith.constant 0 : index
    %123 = vector.load %arg1[%c1_63, %c3_64, %c0_65] : memref<3x8x8xi32, #tpu.memory_space<vmem>>, vector<1x1x8xi32>
    %124 = vector.shape_cast %123 : vector<1x1x8xi32> to vector<1x8xi32>
    %125 = vector.broadcast %124 : vector<1x8xi32> to vector<56x8xi32>
    %126 = arith.cmpi eq, %0, %125 : vector<56x8xi32>
    %127 = arith.extui %126 : vector<56x8xi1> to vector<56x8xi32>
    %128 = arith.sitofp %127 : vector<56x8xi32> to vector<56x8xf32>
    %cst_66 = arith.constant dense<0.000000e+00> : vector<32x8xf32>
    %129 = tpu.matmul %4, %128, %cst_66 {dimension_numbers = #tpu.dot_dimension_numbers<[1], [0], [0], [1], [0, 0, 1, 1], [], []>} : vector<32x56xf32>, vector<56x8xf32>, vector<32x8xf32> -> vector<32x8xf32>
    %130 = arith.addf %122, %129 : vector<32x8xf32>
    %c2_67 = arith.constant 2 : index
    %c3_68 = arith.constant 3 : index
    %c0_69 = arith.constant 0 : index
    %131 = vector.load %arg1[%c2_67, %c3_68, %c0_69] : memref<3x8x8xi32, #tpu.memory_space<vmem>>, vector<1x1x8xi32>
    %132 = vector.shape_cast %131 : vector<1x1x8xi32> to vector<1x8xi32>
    %133 = vector.broadcast %132 : vector<1x8xi32> to vector<56x8xi32>
    %134 = arith.cmpi eq, %0, %133 : vector<56x8xi32>
    %135 = arith.extui %134 : vector<56x8xi1> to vector<56x8xi32>
    %136 = arith.sitofp %135 : vector<56x8xi32> to vector<56x8xf32>
    %cst_70 = arith.constant dense<0.000000e+00> : vector<32x8xf32>
    %137 = tpu.matmul %6, %136, %cst_70 {dimension_numbers = #tpu.dot_dimension_numbers<[1], [0], [0], [1], [0, 0, 1, 1], [], []>} : vector<32x56xf32>, vector<56x8xf32>, vector<32x8xf32> -> vector<32x8xf32>
    %138 = arith.addf %130, %137 : vector<32x8xf32>
    %cst_71 = arith.constant 0.000000e+00 : f32
    %139 = vector.broadcast %cst_71 : f32 to vector<32x8xf32>
    %140 = arith.maximumf %138, %139 : vector<32x8xf32>
    %141 = tpu.transpose %140, [1, 0] : vector<32x8xf32> -> vector<8x32xf32>
    %c3_72 = arith.constant 3 : index
    %c0_73 = arith.constant 0 : index
    %c0_74 = arith.constant 0 : index
    %142 = vector.load %arg5[%c3_72, %c0_73, %c0_74] : memref<8x8x32xf32, #tpu.memory_space<vmem>>, vector<1x8x32xf32>
    %143 = vector.shape_cast %142 : vector<1x8x32xf32> to vector<8x32xf32>
    %144 = vector.shape_cast %141 : vector<8x32xf32> to vector<1x8x32xf32>
    tpu.vector_store %arg5[%c3_72, %c0_73, %c0_74], %144 {strides = array<i32>} : memref<8x8x32xf32, #tpu.memory_space<vmem>>, vector<1x8x32xf32>,
    %145 = vector.broadcast %8 : vector<32x1xf32> to vector<32x8xf32>
    %146 = arith.mulf %140, %145 : vector<32x8xf32>
    %cst_75 = arith.constant dense<0.000000e+00> : vector<8xf32>
    %147 = vector.multi_reduction <add>, %146, %cst_75 [0] : vector<32x8xf32> to vector<8xf32>
    %148 = vector.shape_cast %147 : vector<8xf32> to vector<1x8xf32>
    %c0_76 = arith.constant 0 : index
    %c4 = arith.constant 4 : index
    %c0_77 = arith.constant 0 : index
    %149 = vector.load %arg1[%c0_76, %c4, %c0_77] : memref<3x8x8xi32, #tpu.memory_space<vmem>>, vector<1x1x8xi32>
    %150 = vector.shape_cast %149 : vector<1x1x8xi32> to vector<1x8xi32>
    %151 = vector.broadcast %150 : vector<1x8xi32> to vector<56x8xi32>
    %152 = arith.cmpi eq, %0, %151 : vector<56x8xi32>
    %153 = arith.extui %152 : vector<56x8xi1> to vector<56x8xi32>
    %154 = arith.sitofp %153 : vector<56x8xi32> to vector<56x8xf32>
    %cst_78 = arith.constant dense<0.000000e+00> : vector<32x8xf32>
    %155 = tpu.matmul %2, %154, %cst_78 {dimension_numbers = #tpu.dot_dimension_numbers<[1], [0], [0], [1], [0, 0, 1, 1], [], []>} : vector<32x56xf32>, vector<56x8xf32>, vector<32x8xf32> -> vector<32x8xf32>
    %156 = vector.broadcast %7 : vector<32x1xf32> to vector<32x8xf32>
    %157 = arith.addf %156, %155 : vector<32x8xf32>
    %c1_79 = arith.constant 1 : index
    %c4_80 = arith.constant 4 : index
    %c0_81 = arith.constant 0 : index
    %158 = vector.load %arg1[%c1_79, %c4_80, %c0_81] : memref<3x8x8xi32, #tpu.memory_space<vmem>>, vector<1x1x8xi32>
    %159 = vector.shape_cast %158 : vector<1x1x8xi32> to vector<1x8xi32>
    %160 = vector.broadcast %159 : vector<1x8xi32> to vector<56x8xi32>
    %161 = arith.cmpi eq, %0, %160 : vector<56x8xi32>
    %162 = arith.extui %161 : vector<56x8xi1> to vector<56x8xi32>
    %163 = arith.sitofp %162 : vector<56x8xi32> to vector<56x8xf32>
    %cst_82 = arith.constant dense<0.000000e+00> : vector<32x8xf32>
    %164 = tpu.matmul %4, %163, %cst_82 {dimension_numbers = #tpu.dot_dimension_numbers<[1], [0], [0], [1], [0, 0, 1, 1], [], []>} : vector<32x56xf32>, vector<56x8xf32>, vector<32x8xf32> -> vector<32x8xf32>
    %165 = arith.addf %157, %164 : vector<32x8xf32>
    %c2_83 = arith.constant 2 : index
    %c4_84 = arith.constant 4 : index
    %c0_85 = arith.constant 0 : index
    %166 = vector.load %arg1[%c2_83, %c4_84, %c0_85] : memref<3x8x8xi32, #tpu.memory_space<vmem>>, vector<1x1x8xi32>
    %167 = vector.shape_cast %166 : vector<1x1x8xi32> to vector<1x8xi32>
    %168 = vector.broadcast %167 : vector<1x8xi32> to vector<56x8xi32>
    %169 = arith.cmpi eq, %0, %168 : vector<56x8xi32>
    %170 = arith.extui %169 : vector<56x8xi1> to vector<56x8xi32>
    %171 = arith.sitofp %170 : vector<56x8xi32> to vector<56x8xf32>
    %cst_86 = arith.constant dense<0.000000e+00> : vector<32x8xf32>
    %172 = tpu.matmul %6, %171, %cst_86 {dimension_numbers = #tpu.dot_dimension_numbers<[1], [0], [0], [1], [0, 0, 1, 1], [], []>} : vector<32x56xf32>, vector<56x8xf32>, vector<32x8xf32> -> vector<32x8xf32>
    %173 = arith.addf %165, %172 : vector<32x8xf32>
    %cst_87 = arith.constant 0.000000e+00 : f32
    %174 = vector.broadcast %cst_87 : f32 to vector<32x8xf32>
    %175 = arith.maximumf %173, %174 : vector<32x8xf32>
    %176 = tpu.transpose %175, [1, 0] : vector<32x8xf32> -> vector<8x32xf32>
    %c4_88 = arith.constant 4 : index
    %c0_89 = arith.constant 0 : index
    %c0_90 = arith.constant 0 : index
    %177 = vector.load %arg5[%c4_88, %c0_89, %c0_90] : memref<8x8x32xf32, #tpu.memory_space<vmem>>, vector<1x8x32xf32>
    %178 = vector.shape_cast %177 : vector<1x8x32xf32> to vector<8x32xf32>
    %179 = vector.shape_cast %176 : vector<8x32xf32> to vector<1x8x32xf32>
    tpu.vector_store %arg5[%c4_88, %c0_89, %c0_90], %179 {strides = array<i32>} : memref<8x8x32xf32, #tpu.memory_space<vmem>>, vector<1x8x32xf32>,
    %180 = vector.broadcast %8 : vector<32x1xf32> to vector<32x8xf32>
    %181 = arith.mulf %175, %180 : vector<32x8xf32>
    %cst_91 = arith.constant dense<0.000000e+00> : vector<8xf32>
    %182 = vector.multi_reduction <add>, %181, %cst_91 [0] : vector<32x8xf32> to vector<8xf32>
    %183 = vector.shape_cast %182 : vector<8xf32> to vector<1x8xf32>
    %c0_92 = arith.constant 0 : index
    %c5 = arith.constant 5 : index
    %c0_93 = arith.constant 0 : index
    %184 = vector.load %arg1[%c0_92, %c5, %c0_93] : memref<3x8x8xi32, #tpu.memory_space<vmem>>, vector<1x1x8xi32>
    %185 = vector.shape_cast %184 : vector<1x1x8xi32> to vector<1x8xi32>
    %186 = vector.broadcast %185 : vector<1x8xi32> to vector<56x8xi32>
    %187 = arith.cmpi eq, %0, %186 : vector<56x8xi32>
    %188 = arith.extui %187 : vector<56x8xi1> to vector<56x8xi32>
    %189 = arith.sitofp %188 : vector<56x8xi32> to vector<56x8xf32>
    %cst_94 = arith.constant dense<0.000000e+00> : vector<32x8xf32>
    %190 = tpu.matmul %2, %189, %cst_94 {dimension_numbers = #tpu.dot_dimension_numbers<[1], [0], [0], [1], [0, 0, 1, 1], [], []>} : vector<32x56xf32>, vector<56x8xf32>, vector<32x8xf32> -> vector<32x8xf32>
    %191 = vector.broadcast %7 : vector<32x1xf32> to vector<32x8xf32>
    %192 = arith.addf %191, %190 : vector<32x8xf32>
    %c1_95 = arith.constant 1 : index
    %c5_96 = arith.constant 5 : index
    %c0_97 = arith.constant 0 : index
    %193 = vector.load %arg1[%c1_95, %c5_96, %c0_97] : memref<3x8x8xi32, #tpu.memory_space<vmem>>, vector<1x1x8xi32>
    %194 = vector.shape_cast %193 : vector<1x1x8xi32> to vector<1x8xi32>
    %195 = vector.broadcast %194 : vector<1x8xi32> to vector<56x8xi32>
    %196 = arith.cmpi eq, %0, %195 : vector<56x8xi32>
    %197 = arith.extui %196 : vector<56x8xi1> to vector<56x8xi32>
    %198 = arith.sitofp %197 : vector<56x8xi32> to vector<56x8xf32>
    %cst_98 = arith.constant dense<0.000000e+00> : vector<32x8xf32>
    %199 = tpu.matmul %4, %198, %cst_98 {dimension_numbers = #tpu.dot_dimension_numbers<[1], [0], [0], [1], [0, 0, 1, 1], [], []>} : vector<32x56xf32>, vector<56x8xf32>, vector<32x8xf32> -> vector<32x8xf32>
    %200 = arith.addf %192, %199 : vector<32x8xf32>
    %c2_99 = arith.constant 2 : index
    %c5_100 = arith.constant 5 : index
    %c0_101 = arith.constant 0 : index
    %201 = vector.load %arg1[%c2_99, %c5_100, %c0_101] : memref<3x8x8xi32, #tpu.memory_space<vmem>>, vector<1x1x8xi32>
    %202 = vector.shape_cast %201 : vector<1x1x8xi32> to vector<1x8xi32>
    %203 = vector.broadcast %202 : vector<1x8xi32> to vector<56x8xi32>
    %204 = arith.cmpi eq, %0, %203 : vector<56x8xi32>
    %205 = arith.extui %204 : vector<56x8xi1> to vector<56x8xi32>
    %206 = arith.sitofp %205 : vector<56x8xi32> to vector<56x8xf32>
    %cst_102 = arith.constant dense<0.000000e+00> : vector<32x8xf32>
    %207 = tpu.matmul %6, %206, %cst_102 {dimension_numbers = #tpu.dot_dimension_numbers<[1], [0], [0], [1], [0, 0, 1, 1], [], []>} : vector<32x56xf32>, vector<56x8xf32>, vector<32x8xf32> -> vector<32x8xf32>
    %208 = arith.addf %200, %207 : vector<32x8xf32>
    %cst_103 = arith.constant 0.000000e+00 : f32
    %209 = vector.broadcast %cst_103 : f32 to vector<32x8xf32>
    %210 = arith.maximumf %208, %209 : vector<32x8xf32>
    %211 = tpu.transpose %210, [1, 0] : vector<32x8xf32> -> vector<8x32xf32>
    %c5_104 = arith.constant 5 : index
    %c0_105 = arith.constant 0 : index
    %c0_106 = arith.constant 0 : index
    %212 = vector.load %arg5[%c5_104, %c0_105, %c0_106] : memref<8x8x32xf32, #tpu.memory_space<vmem>>, vector<1x8x32xf32>
    %213 = vector.shape_cast %212 : vector<1x8x32xf32> to vector<8x32xf32>
    %214 = vector.shape_cast %211 : vector<8x32xf32> to vector<1x8x32xf32>
    tpu.vector_store %arg5[%c5_104, %c0_105, %c0_106], %214 {strides = array<i32>} : memref<8x8x32xf32, #tpu.memory_space<vmem>>, vector<1x8x32xf32>,
    %215 = vector.broadcast %8 : vector<32x1xf32> to vector<32x8xf32>
    %216 = arith.mulf %210, %215 : vector<32x8xf32>
    %cst_107 = arith.constant dense<0.000000e+00> : vector<8xf32>
    %217 = vector.multi_reduction <add>, %216, %cst_107 [0] : vector<32x8xf32> to vector<8xf32>
    %218 = vector.shape_cast %217 : vector<8xf32> to vector<1x8xf32>
    %c0_108 = arith.constant 0 : index
    %c6 = arith.constant 6 : index
    %c0_109 = arith.constant 0 : index
    %219 = vector.load %arg1[%c0_108, %c6, %c0_109] : memref<3x8x8xi32, #tpu.memory_space<vmem>>, vector<1x1x8xi32>
    %220 = vector.shape_cast %219 : vector<1x1x8xi32> to vector<1x8xi32>
    %221 = vector.broadcast %220 : vector<1x8xi32> to vector<56x8xi32>
    %222 = arith.cmpi eq, %0, %221 : vector<56x8xi32>
    %223 = arith.extui %222 : vector<56x8xi1> to vector<56x8xi32>
    %224 = arith.sitofp %223 : vector<56x8xi32> to vector<56x8xf32>
    %cst_110 = arith.constant dense<0.000000e+00> : vector<32x8xf32>
    %225 = tpu.matmul %2, %224, %cst_110 {dimension_numbers = #tpu.dot_dimension_numbers<[1], [0], [0], [1], [0, 0, 1, 1], [], []>} : vector<32x56xf32>, vector<56x8xf32>, vector<32x8xf32> -> vector<32x8xf32>
    %226 = vector.broadcast %7 : vector<32x1xf32> to vector<32x8xf32>
    %227 = arith.addf %226, %225 : vector<32x8xf32>
    %c1_111 = arith.constant 1 : index
    %c6_112 = arith.constant 6 : index
    %c0_113 = arith.constant 0 : index
    %228 = vector.load %arg1[%c1_111, %c6_112, %c0_113] : memref<3x8x8xi32, #tpu.memory_space<vmem>>, vector<1x1x8xi32>
    %229 = vector.shape_cast %228 : vector<1x1x8xi32> to vector<1x8xi32>
    %230 = vector.broadcast %229 : vector<1x8xi32> to vector<56x8xi32>
    %231 = arith.cmpi eq, %0, %230 : vector<56x8xi32>
    %232 = arith.extui %231 : vector<56x8xi1> to vector<56x8xi32>
    %233 = arith.sitofp %232 : vector<56x8xi32> to vector<56x8xf32>
    %cst_114 = arith.constant dense<0.000000e+00> : vector<32x8xf32>
    %234 = tpu.matmul %4, %233, %cst_114 {dimension_numbers = #tpu.dot_dimension_numbers<[1], [0], [0], [1], [0, 0, 1, 1], [], []>} : vector<32x56xf32>, vector<56x8xf32>, vector<32x8xf32> -> vector<32x8xf32>
    %235 = arith.addf %227, %234 : vector<32x8xf32>
    %c2_115 = arith.constant 2 : index
    %c6_116 = arith.constant 6 : index
    %c0_117 = arith.constant 0 : index
    %236 = vector.load %arg1[%c2_115, %c6_116, %c0_117] : memref<3x8x8xi32, #tpu.memory_space<vmem>>, vector<1x1x8xi32>
    %237 = vector.shape_cast %236 : vector<1x1x8xi32> to vector<1x8xi32>
    %238 = vector.broadcast %237 : vector<1x8xi32> to vector<56x8xi32>
    %239 = arith.cmpi eq, %0, %238 : vector<56x8xi32>
    %240 = arith.extui %239 : vector<56x8xi1> to vector<56x8xi32>
    %241 = arith.sitofp %240 : vector<56x8xi32> to vector<56x8xf32>
    %cst_118 = arith.constant dense<0.000000e+00> : vector<32x8xf32>
    %242 = tpu.matmul %6, %241, %cst_118 {dimension_numbers = #tpu.dot_dimension_numbers<[1], [0], [0], [1], [0, 0, 1, 1], [], []>} : vector<32x56xf32>, vector<56x8xf32>, vector<32x8xf32> -> vector<32x8xf32>
    %243 = arith.addf %235, %242 : vector<32x8xf32>
    %cst_119 = arith.constant 0.000000e+00 : f32
    %244 = vector.broadcast %cst_119 : f32 to vector<32x8xf32>
    %245 = arith.maximumf %243, %244 : vector<32x8xf32>
    %246 = tpu.transpose %245, [1, 0] : vector<32x8xf32> -> vector<8x32xf32>
    %c6_120 = arith.constant 6 : index
    %c0_121 = arith.constant 0 : index
    %c0_122 = arith.constant 0 : index
    %247 = vector.load %arg5[%c6_120, %c0_121, %c0_122] : memref<8x8x32xf32, #tpu.memory_space<vmem>>, vector<1x8x32xf32>
    %248 = vector.shape_cast %247 : vector<1x8x32xf32> to vector<8x32xf32>
    %249 = vector.shape_cast %246 : vector<8x32xf32> to vector<1x8x32xf32>
    tpu.vector_store %arg5[%c6_120, %c0_121, %c0_122], %249 {strides = array<i32>} : memref<8x8x32xf32, #tpu.memory_space<vmem>>, vector<1x8x32xf32>,
    %250 = vector.broadcast %8 : vector<32x1xf32> to vector<32x8xf32>
    %251 = arith.mulf %245, %250 : vector<32x8xf32>
    %cst_123 = arith.constant dense<0.000000e+00> : vector<8xf32>
    %252 = vector.multi_reduction <add>, %251, %cst_123 [0] : vector<32x8xf32> to vector<8xf32>
    %253 = vector.shape_cast %252 : vector<8xf32> to vector<1x8xf32>
    %c0_124 = arith.constant 0 : index
    %c7 = arith.constant 7 : index
    %c0_125 = arith.constant 0 : index
    %254 = vector.load %arg1[%c0_124, %c7, %c0_125] : memref<3x8x8xi32, #tpu.memory_space<vmem>>, vector<1x1x8xi32>
    %255 = vector.shape_cast %254 : vector<1x1x8xi32> to vector<1x8xi32>
    %256 = vector.broadcast %255 : vector<1x8xi32> to vector<56x8xi32>
    %257 = arith.cmpi eq, %0, %256 : vector<56x8xi32>
    %258 = arith.extui %257 : vector<56x8xi1> to vector<56x8xi32>
    %259 = arith.sitofp %258 : vector<56x8xi32> to vector<56x8xf32>
    %cst_126 = arith.constant dense<0.000000e+00> : vector<32x8xf32>
    %260 = tpu.matmul %2, %259, %cst_126 {dimension_numbers = #tpu.dot_dimension_numbers<[1], [0], [0], [1], [0, 0, 1, 1], [], []>} : vector<32x56xf32>, vector<56x8xf32>, vector<32x8xf32> -> vector<32x8xf32>
    %261 = vector.broadcast %7 : vector<32x1xf32> to vector<32x8xf32>
    %262 = arith.addf %261, %260 : vector<32x8xf32>
    %c1_127 = arith.constant 1 : index
    %c7_128 = arith.constant 7 : index
    %c0_129 = arith.constant 0 : index
    %263 = vector.load %arg1[%c1_127, %c7_128, %c0_129] : memref<3x8x8xi32, #tpu.memory_space<vmem>>, vector<1x1x8xi32>
    %264 = vector.shape_cast %263 : vector<1x1x8xi32> to vector<1x8xi32>
    %265 = vector.broadcast %264 : vector<1x8xi32> to vector<56x8xi32>
    %266 = arith.cmpi eq, %0, %265 : vector<56x8xi32>
    %267 = arith.extui %266 : vector<56x8xi1> to vector<56x8xi32>
    %268 = arith.sitofp %267 : vector<56x8xi32> to vector<56x8xf32>
    %cst_130 = arith.constant dense<0.000000e+00> : vector<32x8xf32>
    %269 = tpu.matmul %4, %268, %cst_130 {dimension_numbers = #tpu.dot_dimension_numbers<[1], [0], [0], [1], [0, 0, 1, 1], [], []>} : vector<32x56xf32>, vector<56x8xf32>, vector<32x8xf32> -> vector<32x8xf32>
    %270 = arith.addf %262, %269 : vector<32x8xf32>
    %c2_131 = arith.constant 2 : index
    %c7_132 = arith.constant 7 : index
    %c0_133 = arith.constant 0 : index
    %271 = vector.load %arg1[%c2_131, %c7_132, %c0_133] : memref<3x8x8xi32, #tpu.memory_space<vmem>>, vector<1x1x8xi32>
    %272 = vector.shape_cast %271 : vector<1x1x8xi32> to vector<1x8xi32>
    %273 = vector.broadcast %272 : vector<1x8xi32> to vector<56x8xi32>
    %274 = arith.cmpi eq, %0, %273 : vector<56x8xi32>
    %275 = arith.extui %274 : vector<56x8xi1> to vector<56x8xi32>
    %276 = arith.sitofp %275 : vector<56x8xi32> to vector<56x8xf32>
    %cst_134 = arith.constant dense<0.000000e+00> : vector<32x8xf32>
    %277 = tpu.matmul %6, %276, %cst_134 {dimension_numbers = #tpu.dot_dimension_numbers<[1], [0], [0], [1], [0, 0, 1, 1], [], []>} : vector<32x56xf32>, vector<56x8xf32>, vector<32x8xf32> -> vector<32x8xf32>
    %278 = arith.addf %270, %277 : vector<32x8xf32>
    %cst_135 = arith.constant 0.000000e+00 : f32
    %279 = vector.broadcast %cst_135 : f32 to vector<32x8xf32>
    %280 = arith.maximumf %278, %279 : vector<32x8xf32>
    %281 = tpu.transpose %280, [1, 0] : vector<32x8xf32> -> vector<8x32xf32>
    %c7_136 = arith.constant 7 : index
    %c0_137 = arith.constant 0 : index
    %c0_138 = arith.constant 0 : index
    %282 = vector.load %arg5[%c7_136, %c0_137, %c0_138] : memref<8x8x32xf32, #tpu.memory_space<vmem>>, vector<1x8x32xf32>
    %283 = vector.shape_cast %282 : vector<1x8x32xf32> to vector<8x32xf32>
    %284 = vector.shape_cast %281 : vector<8x32xf32> to vector<1x8x32xf32>
    tpu.vector_store %arg5[%c7_136, %c0_137, %c0_138], %284 {strides = array<i32>} : memref<8x8x32xf32, #tpu.memory_space<vmem>>, vector<1x8x32xf32>,
    %285 = vector.broadcast %8 : vector<32x1xf32> to vector<32x8xf32>
    %286 = arith.mulf %280, %285 : vector<32x8xf32>
    %cst_139 = arith.constant dense<0.000000e+00> : vector<8xf32>
    %287 = vector.multi_reduction <add>, %286, %cst_139 [0] : vector<32x8xf32> to vector<8xf32>
    %288 = vector.shape_cast %287 : vector<8xf32> to vector<1x8xf32>
    %289 = arith.maximumf %43, %78 : vector<1x8xf32>
    %290 = arith.maximumf %289, %113 : vector<1x8xf32>
    %291 = arith.maximumf %290, %148 : vector<1x8xf32>
    %292 = arith.maximumf %291, %183 : vector<1x8xf32>
    %293 = arith.maximumf %292, %218 : vector<1x8xf32>
    %294 = arith.maximumf %293, %253 : vector<1x8xf32>
    %295 = arith.maximumf %294, %288 : vector<1x8xf32>
    %296 = arith.subf %43, %295 : vector<1x8xf32>
    %297 = math.exp %296 : vector<1x8xf32>
    %298 = arith.subf %78, %295 : vector<1x8xf32>
    %299 = math.exp %298 : vector<1x8xf32>
    %300 = arith.subf %113, %295 : vector<1x8xf32>
    %301 = math.exp %300 : vector<1x8xf32>
    %302 = arith.subf %148, %295 : vector<1x8xf32>
    %303 = math.exp %302 : vector<1x8xf32>
    %304 = arith.subf %183, %295 : vector<1x8xf32>
    %305 = math.exp %304 : vector<1x8xf32>
    %306 = arith.subf %218, %295 : vector<1x8xf32>
    %307 = math.exp %306 : vector<1x8xf32>
    %308 = arith.subf %253, %295 : vector<1x8xf32>
    %309 = math.exp %308 : vector<1x8xf32>
    %310 = arith.subf %288, %295 : vector<1x8xf32>
    %311 = math.exp %310 : vector<1x8xf32>
    %312 = arith.addf %297, %299 : vector<1x8xf32>
    %313 = arith.addf %312, %301 : vector<1x8xf32>
    %314 = arith.addf %313, %303 : vector<1x8xf32>
    %315 = arith.addf %314, %305 : vector<1x8xf32>
    %316 = arith.addf %315, %307 : vector<1x8xf32>
    %317 = arith.addf %316, %309 : vector<1x8xf32>
    %318 = arith.addf %317, %311 : vector<1x8xf32>
    %cst_140 = arith.constant 1.000000e+00 : f32
    %319 = vector.broadcast %cst_140 : f32 to vector<1x8xf32>
    %320 = arith.divf %319, %318 : vector<1x8xf32>
    %cst_141 = arith.constant 0.000000e+00 : f32
    %321 = vector.broadcast %cst_141 : f32 to vector<32x8xf32>
    %322 = arith.mulf %297, %320 : vector<1x8xf32>
    %323 = vector.broadcast %322 : vector<1x8xf32> to vector<32x8xf32>
    %324 = arith.mulf %35, %323 : vector<32x8xf32>
    %325 = arith.addf %321, %324 : vector<32x8xf32>
    %326 = arith.mulf %299, %320 : vector<1x8xf32>
    %327 = vector.broadcast %326 : vector<1x8xf32> to vector<32x8xf32>
    %328 = arith.mulf %70, %327 : vector<32x8xf32>
    %329 = arith.addf %325, %328 : vector<32x8xf32>
    %330 = arith.mulf %301, %320 : vector<1x8xf32>
    %331 = vector.broadcast %330 : vector<1x8xf32> to vector<32x8xf32>
    %332 = arith.mulf %105, %331 : vector<32x8xf32>
    %333 = arith.addf %329, %332 : vector<32x8xf32>
    %334 = arith.mulf %303, %320 : vector<1x8xf32>
    %335 = vector.broadcast %334 : vector<1x8xf32> to vector<32x8xf32>
    %336 = arith.mulf %140, %335 : vector<32x8xf32>
    %337 = arith.addf %333, %336 : vector<32x8xf32>
    %338 = arith.mulf %305, %320 : vector<1x8xf32>
    %339 = vector.broadcast %338 : vector<1x8xf32> to vector<32x8xf32>
    %340 = arith.mulf %175, %339 : vector<32x8xf32>
    %341 = arith.addf %337, %340 : vector<32x8xf32>
    %342 = arith.mulf %307, %320 : vector<1x8xf32>
    %343 = vector.broadcast %342 : vector<1x8xf32> to vector<32x8xf32>
    %344 = arith.mulf %210, %343 : vector<32x8xf32>
    %345 = arith.addf %341, %344 : vector<32x8xf32>
    %346 = arith.mulf %309, %320 : vector<1x8xf32>
    %347 = vector.broadcast %346 : vector<1x8xf32> to vector<32x8xf32>
    %348 = arith.mulf %245, %347 : vector<32x8xf32>
    %349 = arith.addf %345, %348 : vector<32x8xf32>
    %350 = arith.mulf %311, %320 : vector<1x8xf32>
    %351 = vector.broadcast %350 : vector<1x8xf32> to vector<32x8xf32>
    %352 = arith.mulf %280, %351 : vector<32x8xf32>
    %353 = arith.addf %349, %352 : vector<32x8xf32>
    %354 = tpu.transpose %353, [1, 0] : vector<32x8xf32> -> vector<8x32xf32>
    %c0_142 = arith.constant 0 : index
    %c0_143 = arith.constant 0 : index
    %355 = vector.load %arg6[%c0_142, %c0_143] : memref<8x32xf32, #tpu.memory_space<vmem>>, vector<8x32xf32>
    tpu.vector_store %arg6[%c0_142, %c0_143], %354 {strides = array<i32>} : memref<8x32xf32, #tpu.memory_space<vmem>>, vector<8x32xf32>,
    return
  }
  func.func @transform_0(%arg0: i32) -> (i32, i32, i32) {
    %c0_i32 = arith.constant 0 : i32
    %c0_i32_0 = arith.constant 0 : i32
    %c0_i32_1 = arith.constant 0 : i32
    return %c0_i32, %c0_i32_0, %arg0 : i32, i32, i32
  }
  func.func @transform_1(%arg0: i32) -> (i32, i32, i32) {
    %c0_i32 = arith.constant 0 : i32
    %c0_i32_0 = arith.constant 0 : i32
    %c0_i32_1 = arith.constant 0 : i32
    %c0_i32_2 = arith.constant 0 : i32
    return %c0_i32, %c0_i32_0, %c0_i32_1 : i32, i32, i32
  }
  func.func @transform_2(%arg0: i32) -> (i32, i32) {
    %c0_i32 = arith.constant 0 : i32
    %c0_i32_0 = arith.constant 0 : i32
    %c0_i32_1 = arith.constant 0 : i32
    return %c0_i32, %c0_i32_0 : i32, i32
  }
  func.func @transform_3(%arg0: i32) -> (i32, i32) {
    %c0_i32 = arith.constant 0 : i32
    %c0_i32_0 = arith.constant 0 : i32
    %c0_i32_1 = arith.constant 0 : i32
    return %c0_i32, %c0_i32_0 : i32, i32
  }
  func.func @transform_4(%arg0: i32) -> (i32, i32, i32) {
    %c0_i32 = arith.constant 0 : i32
    %c0_i32_0 = arith.constant 0 : i32
    %c0_i32_1 = arith.constant 0 : i32
    return %c0_i32, %arg0, %c0_i32_0 : i32, i32, i32
  }
  func.func @transform_5(%arg0: i32) -> (i32, i32) {
    %c0_i32 = arith.constant 0 : i32
    %c0_i32_0 = arith.constant 0 : i32
    return %arg0, %c0_i32 : i32, i32
  }
}

</mosaic_0001>

<llo_original>
// kernel: source_image_attention_encoder_v2.1
$region0: #{source_image_attention_encoder_v2.1}
  #allocation0 [shape = 'u32[]', space=smem, size = 0x4, offset = 0x4, fixed_abs, tag = 'smem constant byte address 0x4 - core index']
  #allocation1 [shape = 'u32[144,128]{1,0:T(1,128)}', space=vmem, size = 0x12000, scoped, tag = 'internal scratch']
  %s0 = inlined_call_operand.vmem [shape: s32[3,8,8], index: 0, kind: input, shape index: {}]
  %s1 = inlined_call_operand.vmem [shape: f32[3,32,56], index: 1, kind: input, shape index: {}]
  %s2 = inlined_call_operand.vmem [shape: f32[32,1], index: 2, kind: input, shape index: {}]
  %s3 = inlined_call_operand.vmem [shape: f32[32,1], index: 3, kind: input, shape index: {}]
  %s4 = inlined_call_operand.vmem [shape: f32[8,8,32], index: 4, kind: output, shape index: {0}]
  %s5 = inlined_call_operand.vmem [shape: f32[8,32], index: 5, kind: output, shape index: {1}]
  %6 = xla_tuple %s4, %s5
  %s7 = sld [smem:[#allocation0]]
  $region34: #{source_image_attention_encoder_v2.1} parent=0
    _
  %s9 = ssub.s32 1, %s7
  %s10 = scalar_select 0, %s9, %s7
  // Predicated region
  $region2: #{source_image_attention_encoder_v2.1} parent=0 // pred_check
    _
  $region3: #{source_image_attention_encoder_v2.1} parent=0 // pred_check_branch
    %12 = sbr.rel (0) target = $region5
  $region4: #{source_image_attention_encoder_v2.1} parent=0 // pred_region
    _
  $region5: #{source_image_attention_encoder_v2.1} parent=0 // pred_fallthru
    _
  // Predicated region
  $region6: #{source_image_attention_encoder_v2.1} parent=0 // pred_check
    _
  $region7: #{source_image_attention_encoder_v2.1} parent=0 // pred_check_branch
    %14 = sbr.rel (0) target = $region9
  $region8: #{source_image_attention_encoder_v2.1} parent=0 // pred_region
    _
  $region9: #{source_image_attention_encoder_v2.1} parent=0 // pred_fallthru
    _
  // Predicated region
  $region10: #{source_image_attention_encoder_v2.1} parent=0 // pred_check
    _
  $region11: #{source_image_attention_encoder_v2.1} parent=0 // pred_check_branch
    %16 = sbr.rel (0) target = $region13
  $region12: #{source_image_attention_encoder_v2.1} parent=0 // pred_region
    _
  $region13: #{source_image_attention_encoder_v2.1} parent=0 // pred_fallthru
    _
  // Predicated region
  $region14: #{source_image_attention_encoder_v2.1} parent=0 // pred_check
    _
  $region15: #{source_image_attention_encoder_v2.1} parent=0 // pred_check_branch
    %18 = sbr.rel (0) target = $region17
  $region16: #{source_image_attention_encoder_v2.1} parent=0 // pred_region
    _
  $region17: #{source_image_attention_encoder_v2.1} parent=0 // pred_fallthru
    _
  %v19 = vlaneseq
  %v20 = vshrl.u32 %v19, 7
  %v21 = vadd.s32 %v20, 8
  %v22 = vadd.s32 %v20, 16
  %v23 = vadd.s32 %v20, 24
  %v24 = vadd.s32 %v20, 32
  %v25 = vadd.s32 %v20, 40
  %v26 = vadd.s32 %v20, 48
  %v27 = vld [vmem:[%s1] sm:$0xff]
  %v28 = vld [vmem:[%s1 + $0x8] sm:$0xff]
  %v29 = vld [vmem:[%s1 + $0x10] sm:$0xff]
  %v30 = vld [vmem:[%s1 + $0x18] sm:$0xff]
  %s31 = scalar_lea.vmem %s1, 32
  %v32 = vld [vmem:[%s31] sm:$0xff]
  %v33 = vld [vmem:[%s31 + $0x8] sm:$0xff]
  %v34 = vld [vmem:[%s31 + $0x10] sm:$0xff]
  %v35 = vld [vmem:[%s31 + $0x18] sm:$0xff]
  %s36 = scalar_lea.vmem %s1, 64
  %v37 = vld [vmem:[%s36] sm:$0xff]
  %v38 = vld [vmem:[%s36 + $0x8] sm:$0xff]
  %v39 = vld [vmem:[%s36 + $0x10] sm:$0xff]
  %v40 = vld [vmem:[%s36 + $0x18] sm:$0xff]
  %v41 = vld [vmem:[%s2] sm:$0xff]
  %v42 = vld [vmem:[%s2 + $0x8] sm:$0xff]
  %v43 = vld [vmem:[%s2 + $0x10] sm:$0xff]
  %v44 = vld [vmem:[%s2 + $0x18] sm:$0xff]
  %v45 = vld [vmem:[%s3] sm:$0xff]
  %v46 = vld [vmem:[%s3 + $0x8] sm:$0xff]
  %v47 = vld [vmem:[%s3 + $0x10] sm:$0xff]
  %v48 = vld [vmem:[%s3 + $0x18] sm:$0xff]
  %v49 = vld [vmem:[%s0] sm:$0x1]
  %v50 = vlaneseq
  %v51 = vshrl.u32 %v50, 7
  %v52 = vsub.s32 0, %v51
  %v53 = vrot.slane %v49, %v52
  %vm54 = vcmp.eq.s32.totalorder %v20, %v53
  %vm55 = vcmp.eq.s32.totalorder %v21, %v53
  %vm56 = vcmp.eq.s32.totalorder %v22, %v53
  %vm57 = vcmp.eq.s32.totalorder %v23, %v53
  %vm58 = vcmp.eq.s32.totalorder %v24, %v53
  %vm59 = vcmp.eq.s32.totalorder %v25, %v53
  %vm60 = vcmp.eq.s32.totalorder %v26, %v53
  %v61 = vsel %vm54, 1, 0
  %v62 = vsel %vm55, 1, 0
  %v63 = vsel %vm56, 1, 0
  %v64 = vsel %vm57, 1, 0
  %v65 = vsel %vm58, 1, 0
  %v66 = vsel %vm59, 1, 0
  %v67 = vsel %vm60, 1, 0
  %v68 = vcvt.s32.f32 %v61
  %v69 = vcvt.s32.f32 %v62
  %v70 = vcvt.s32.f32 %v63
  %v71 = vcvt.s32.f32 %v64
  %v72 = vcvt.s32.f32 %v65
  %v73 = vcvt.s32.f32 %v66
  %v74 = vcvt.s32.f32 %v67
  %vm75 = vcmask 457728
  %v77 = vsel %vm75, %v27, 0
  %v80 = vsel %vm75, %v28, 0
  %v83 = vsel %vm75, %v29, 0
  %v86 = vsel %vm75, %v30, 0
  %88 = vmatprep.subr.mxu0 0.0
  %89 = vmatpush1.msra.mxu0 0.0
  %90 = vmatprep.subr.mxu0 0.0
  %91 = vmatpush1.msra.mxu0 0.0
  %92 = vmatprep.subr.mxu0 0.0
  %93 = vmatpush1.msra.mxu0 0.0
  %94 = vmatprep.subr.mxu0 0.0
  %95 = vmatpush1.msra.mxu0 0.0
  %96 = vmatprep.subr.mxu0 0.0
  %97 = vmatpush1.msra.mxu0 0.0
  %98 = vmatprep.subr.mxu0 0.0
  %99 = vmatpush1.msra.mxu0 0.0
  %100 = vmatprep.subr.mxu0 0.0
  %101 = vmatpush1.msra.mxu0 0.0
  %102 = vmatprep.subr.mxu0 0.0
  %103 = vmatpush1.msra.mxu0 0.0
  %104 = vmatprep.subr.mxu0 0.0
  %105 = vmatpush1.msra.mxu0 0.0
  %106 = vmatprep.subr.mxu0 0.0
  %107 = vmatpush1.msra.mxu0 %v74
  %108 = vmatprep.subr.mxu0 0.0
  %109 = vmatpush1.msra.mxu0 %v73
  %110 = vmatprep.subr.mxu0 0.0
  %111 = vmatpush1.msra.mxu0 %v72
  %112 = vmatprep.subr.mxu0 0.0
  %113 = vmatpush1.msra.mxu0 %v71
  %114 = vmatprep.subr.mxu0 0.0
  %115 = vmatpush1.msra.mxu0 %v70
  %116 = vmatprep.subr.mxu0 0.0
  %117 = vmatpush1.msra.mxu0 %v69
  %118 = vmatprep.subr.mxu0 0.0
  %119 = vmatpush1.msra.mxu0 %v68
  %120 = vmatprep.subr.mxu0 0.0
  %121 = vmatpush2.msra.mxu0 0.0
  %122 = vmatprep.subr.mxu0 0.0
  %123 = vmatpush2.msra.mxu0 0.0
  %124 = vmatprep.subr.mxu0 0.0
  %125 = vmatpush2.msra.mxu0 0.0
  %126 = vmatprep.subr.mxu0 0.0
  %127 = vmatpush2.msra.mxu0 0.0
  %128 = vmatprep.subr.mxu0 0.0
  %129 = vmatpush2.msra.mxu0 0.0
  %130 = vmatprep.subr.mxu0 0.0
  %131 = vmatpush2.msra.mxu0 0.0
  %132 = vmatprep.subr.mxu0 0.0
  %133 = vmatpush2.msra.mxu0 0.0
  %134 = vmatprep.subr.mxu0 0.0
  %135 = vmatpush2.msra.mxu0 0.0
  %136 = vmatprep.subr.mxu0 0.0
  %137 = vmatpush2.msra.mxu0 0.0
  %138 = vmatprep.subr.mxu0 0.0
  %139 = vmatpush2.msra.mxu0 0.0
  %140 = vmatprep.subr.mxu0 0.0
  %141 = vmatpush2.msra.mxu0 0.0
  %142 = vmatprep.subr.mxu0 0.0
  %143 = vmatpush2.msra.mxu0 0.0
  %144 = vmatprep.subr.mxu0 0.0
  %145 = vmatpush2.msra.mxu0 0.0
  %146 = vmatprep.subr.mxu0 0.0
  %147 = vmatpush2.msra.mxu0 0.0
  %148 = vmatprep.subr.mxu0 0.0
  %149 = vmatpush2.msra.mxu0 0.0
  %150 = vmatprep.subr.mxu0 0.0
  %151 = vmatpush2.msra.mxu0 0.0
  %152 = vmatprep.mubr.f32.mxu0 0.0
  %153 = vmatmul.mubr.f32.gmra.mxu0 %v77
  %v154 = vpop.f32.mrf.mxu0
  %v155 = vadd.f32 0.0, %v154
  %v156 = vpop.f32.mrf.mxu0
  %157 = vmatprep.mubr.f32.mxu0 0.0
  %158 = vmatmul.mubr.f32.gmra.mxu0 %v80
  %v159 = vpop.f32.mrf.mxu0
  %v160 = vadd.f32 0.0, %v159
  %v161 = vpop.f32.mrf.mxu0
  %162 = vmatprep.mubr.f32.mxu0 0.0
  %163 = vmatmul.mubr.f32.gmra.mxu0 %v83
  %v164 = vpop.f32.mrf.mxu0
  %v165 = vadd.f32 0.0, %v164
  %v166 = vpop.f32.mrf.mxu0
  %167 = vmatprep.mubr.f32.mxu0 0.0
  %168 = vmatmul.mubr.f32.gmra.mxu0 %v86
  %v169 = vpop.f32.mrf.mxu0
  %v170 = vadd.f32 0.0, %v169
  %v171 = vpop.f32.mrf.mxu0
  %172 = vdwg.mxu0
  %174 = vset.pattern.permute.xlu0 0
  %175 = vperm.xlu0 %174, %v41
  %v176 = vpop.permute.xlu0 %175
  %179 = vset.pattern.permute.xlu0 0
  %180 = vperm.xlu0 %179, %v42
  %v181 = vpop.permute.xlu0 %180
  %184 = vset.pattern.permute.xlu0 0
  %185 = vperm.xlu0 %184, %v43
  %v186 = vpop.permute.xlu0 %185
  %189 = vset.pattern.permute.xlu0 0
  %190 = vperm.xlu0 %189, %v44
  %v191 = vpop.permute.xlu0 %190
  %v193 = vadd.f32 %v176, %v155
  %v194 = vadd.f32 %v181, %v160
  %v195 = vadd.f32 %v186, %v165
  %v196 = vadd.f32 %v191, %v170
  %s197 = scalar_lea.vmem %s0, 8
  %v198 = vld [vmem:[%s197] sm:$0x1]
  %v199 = vlaneseq
  %v200 = vshrl.u32 %v199, 7
  %v201 = vsub.s32 0, %v200
  %v202 = vrot.slane %v198, %v201
  %vm203 = vcmp.eq.s32.totalorder %v20, %v202
  %vm204 = vcmp.eq.s32.totalorder %v21, %v202
  %vm205 = vcmp.eq.s32.totalorder %v22, %v202
  %vm206 = vcmp.eq.s32.totalorder %v23, %v202
  %vm207 = vcmp.eq.s32.totalorder %v24, %v202
  %vm208 = vcmp.eq.s32.totalorder %v25, %v202
  %vm209 = vcmp.eq.s32.totalorder %v26, %v202
  %v210 = vsel %vm203, 1, 0
  %v211 = vsel %vm204, 1, 0
  %v212 = vsel %vm205, 1, 0
  %v213 = vsel %vm206, 1, 0
  %v214 = vsel %vm207, 1, 0
  %v215 = vsel %vm208, 1, 0
  %v216 = vsel %vm209, 1, 0
  %v217 = vcvt.s32.f32 %v210
  %v218 = vcvt.s32.f32 %v211
  %v219 = vcvt.s32.f32 %v212
  %v220 = vcvt.s32.f32 %v213
  %v221 = vcvt.s32.f32 %v214
  %v222 = vcvt.s32.f32 %v215
  %v223 = vcvt.s32.f32 %v216
  %v225 = vsel %vm75, %v32, 0
  %v228 = vsel %vm75, %v33, 0
  %v231 = vsel %vm75, %v34, 0
  %v234 = vsel %vm75, %v35, 0
  %236 = vmatprep.subr.mxu0 0.0
  %237 = vmatpush1.msra.mxu0 0.0
  %238 = vmatprep.subr.mxu0 0.0
  %239 = vmatpush1.msra.mxu0 0.0
  %240 = vmatprep.subr.mxu0 0.0
  %241 = vmatpush1.msra.mxu0 0.0
  %242 = vmatprep.subr.mxu0 0.0
  %243 = vmatpush1.msra.mxu0 0.0
  %244 = vmatprep.subr.mxu0 0.0
  %245 = vmatpush1.msra.mxu0 0.0
  %246 = vmatprep.subr.mxu0 0.0
  %247 = vmatpush1.msra.mxu0 0.0
  %248 = vmatprep.subr.mxu0 0.0
  %249 = vmatpush1.msra.mxu0 0.0
  %250 = vmatprep.subr.mxu0 0.0
  %251 = vmatpush1.msra.mxu0 0.0
  %252 = vmatprep.subr.mxu0 0.0
  %253 = vmatpush1.msra.mxu0 0.0
  %254 = vmatprep.subr.mxu0 0.0
  %255 = vmatpush1.msra.mxu0 %v223
  %256 = vmatprep.subr.mxu0 0.0
  %257 = vmatpush1.msra.mxu0 %v222
  %258 = vmatprep.subr.mxu0 0.0
  %259 = vmatpush1.msra.mxu0 %v221
  %260 = vmatprep.subr.mxu0 0.0
  %261 = vmatpush1.msra.mxu0 %v220
  %262 = vmatprep.subr.mxu0 0.0
  %263 = vmatpush1.msra.mxu0 %v219
  %264 = vmatprep.subr.mxu0 0.0
  %265 = vmatpush1.msra.mxu0 %v218
  %266 = vmatprep.subr.mxu0 0.0
  %267 = vmatpush1.msra.mxu0 %v217
  %268 = vmatprep.subr.mxu0 0.0
  %269 = vmatpush2.msra.mxu0 0.0
  %270 = vmatprep.subr.mxu0 0.0
  %271 = vmatpush2.msra.mxu0 0.0
  %272 = vmatprep.subr.mxu0 0.0
  %273 = vmatpush2.msra.mxu0 0.0
  %274 = vmatprep.subr.mxu0 0.0
  %275 = vmatpush2.msra.mxu0 0.0
  %276 = vmatprep.subr.mxu0 0.0
  %277 = vmatpush2.msra.mxu0 0.0
  %278 = vmatprep.subr.mxu0 0.0
  %279 = vmatpush2.msra.mxu0 0.0
  %280 = vmatprep.subr.mxu0 0.0
  %281 = vmatpush2.msra.mxu0 0.0
  %282 = vmatprep.subr.mxu0 0.0
  %283 = vmatpush2.msra.mxu0 0.0
  %284 = vmatprep.subr.mxu0 0.0
  %285 = vmatpush2.msra.mxu0 0.0
  %286 = vmatprep.subr.mxu0 0.0
  %287 = vmatpush2.msra.mxu0 0.0
  %288 = vmatprep.subr.mxu0 0.0
  %289 = vmatpush2.msra.mxu0 0.0
  %290 = vmatprep.subr.mxu0 0.0
  %291 = vmatpush2.msra.mxu0 0.0
  %292 = vmatprep.subr.mxu0 0.0
  %293 = vmatpush2.msra.mxu0 0.0
  %294 = vmatprep.subr.mxu0 0.0
  %295 = vmatpush2.msra.mxu0 0.0
  %296 = vmatprep.subr.mxu0 0.0
  %297 = vmatpush2.msra.mxu0 0.0
  %298 = vmatprep.subr.mxu0 0.0
  %299 = vmatpush2.msra.mxu0 0.0
  %300 = vmatprep.mubr.f32.mxu0 0.0
  %301 = vmatmul.mubr.f32.gmra.mxu0 %v225
  %v302 = vpop.f32.mrf.mxu0
  %v303 = vadd.f32 0.0, %v302
  %v304 = vpop.f32.mrf.mxu0
  %305 = vmatprep.mubr.f32.mxu0 0.0
  %306 = vmatmul.mubr.f32.gmra.mxu0 %v228
  %v307 = vpop.f32.mrf.mxu0
  %v308 = vadd.f32 0.0, %v307
  %v309 = vpop.f32.mrf.mxu0
  %310 = vmatprep.mubr.f32.mxu0 0.0
  %311 = vmatmul.mubr.f32.gmra.mxu0 %v231
  %v312 = vpop.f32.mrf.mxu0
  %v313 = vadd.f32 0.0, %v312
  %v314 = vpop.f32.mrf.mxu0
  %315 = vmatprep.mubr.f32.mxu0 0.0
  %316 = vmatmul.mubr.f32.gmra.mxu0 %v234
  %v317 = vpop.f32.mrf.mxu0
  %v318 = vadd.f32 0.0, %v317
  %v319 = vpop.f32.mrf.mxu0
  %320 = vdwg.mxu0
  %v321 = vadd.f32 %v193, %v303
  %v322 = vadd.f32 %v194, %v308
  %v323 = vadd.f32 %v195, %v313
  %v324 = vadd.f32 %v196, %v318
  %s325 = scalar_lea.vmem %s0, 16
  %v326 = vld [vmem:[%s325] sm:$0x1]
  %v327 = vlaneseq
  %v328 = vshrl.u32 %v327, 7
  %v329 = vsub.s32 0, %v328
  %v330 = vrot.slane %v326, %v329
  %vm331 = vcmp.eq.s32.totalorder %v20, %v330
  %vm332 = vcmp.eq.s32.totalorder %v21, %v330
  %vm333 = vcmp.eq.s32.totalorder %v22, %v330
  %vm334 = vcmp.eq.s32.totalorder %v23, %v330
  %vm335 = vcmp.eq.s32.totalorder %v24, %v330
  %vm336 = vcmp.eq.s32.totalorder %v25, %v330
  %vm337 = vcmp.eq.s32.totalorder %v26, %v330
  %v338 = vsel %vm331, 1, 0
  %v339 = vsel %vm332, 1, 0
  %v340 = vsel %vm333, 1, 0
  %v341 = vsel %vm334, 1, 0
  %v342 = vsel %vm335, 1, 0
  %v343 = vsel %vm336, 1, 0
  %v344 = vsel %vm337, 1, 0
  %v345 = vcvt.s32.f32 %v338
  %v346 = vcvt.s32.f32 %v339
  %v347 = vcvt.s32.f32 %v340
  %v348 = vcvt.s32.f32 %v341
  %v349 = vcvt.s32.f32 %v342
  %v350 = vcvt.s32.f32 %v343
  %v351 = vcvt.s32.f32 %v344
  %v353 = vsel %vm75, %v37, 0
  %v356 = vsel %vm75, %v38, 0
  %v359 = vsel %vm75, %v39, 0
  %v362 = vsel %vm75, %v40, 0
  %364 = vmatprep.subr.mxu0 0.0
  %365 = vmatpush1.msra.mxu0 0.0
  %366 = vmatprep.subr.mxu0 0.0
  %367 = vmatpush1.msra.mxu0 0.0
  %368 = vmatprep.subr.mxu0 0.0
  %369 = vmatpush1.msra.mxu0 0.0
  %370 = vmatprep.subr.mxu0 0.0
  %371 = vmatpush1.msra.mxu0 0.0
  %372 = vmatprep.subr.mxu0 0.0
  %373 = vmatpush1.msra.mxu0 0.0
  %374 = vmatprep.subr.mxu0 0.0
  %375 = vmatpush1.msra.mxu0 0.0
  %376 = vmatprep.subr.mxu0 0.0
  %377 = vmatpush1.msra.mxu0 0.0
  %378 = vmatprep.subr.mxu0 0.0
  %379 = vmatpush1.msra.mxu0 0.0
  %380 = vmatprep.subr.mxu0 0.0
  %381 = vmatpush1.msra.mxu0 0.0
  %382 = vmatprep.subr.mxu0 0.0
  %383 = vmatpush1.msra.mxu0 %v351
  %384 = vmatprep.subr.mxu0 0.0
  %385 = vmatpush1.msra.mxu0 %v350
  %386 = vmatprep.subr.mxu0 0.0
  %387 = vmatpush1.msra.mxu0 %v349
  %388 = vmatprep.subr.mxu0 0.0
  %389 = vmatpush1.msra.mxu0 %v348
  %390 = vmatprep.subr.mxu0 0.0
  %391 = vmatpush1.msra.mxu0 %v347
  %392 = vmatprep.subr.mxu0 0.0
  %393 = vmatpush1.msra.mxu0 %v346
  %394 = vmatprep.subr.mxu0 0.0
  %395 = vmatpush1.msra.mxu0 %v345
  %396 = vmatprep.subr.mxu0 0.0
  %397 = vmatpush2.msra.mxu0 0.0
  %398 = vmatprep.subr.mxu0 0.0
  %399 = vmatpush2.msra.mxu0 0.0
  %400 = vmatprep.subr.mxu0 0.0
  %401 = vmatpush2.msra.mxu0 0.0
  %402 = vmatprep.subr.mxu0 0.0
  %403 = vmatpush2.msra.mxu0 0.0
  %404 = vmatprep.subr.mxu0 0.0
  %405 = vmatpush2.msra.mxu0 0.0
  %406 = vmatprep.subr.mxu0 0.0
  %407 = vmatpush2.msra.mxu0 0.0
  %408 = vmatprep.subr.mxu0 0.0
  %409 = vmatpush2.msra.mxu0 0.0
  %410 = vmatprep.subr.mxu0 0.0
  %411 = vmatpush2.msra.mxu0 0.0
  %412 = vmatprep.subr.mxu0 0.0
  %413 = vmatpush2.msra.mxu0 0.0
  %414 = vmatprep.subr.mxu0 0.0
  %415 = vmatpush2.msra.mxu0 0.0
  %416 = vmatprep.subr.mxu0 0.0
  %417 = vmatpush2.msra.mxu0 0.0
  %418 = vmatprep.subr.mxu0 0.0
  %419 = vmatpush2.msra.mxu0 0.0
  %420 = vmatprep.subr.mxu0 0.0
  %421 = vmatpush2.msra.mxu0 0.0
  %422 = vmatprep.subr.mxu0 0.0
  %423 = vmatpush2.msra.mxu0 0.0
  %424 = vmatprep.subr.mxu0 0.0
  %425 = vmatpush2.msra.mxu0 0.0
  %426 = vmatprep.subr.mxu0 0.0
  %427 = vmatpush2.msra.mxu0 0.0
  %428 = vmatprep.mubr.f32.mxu0 0.0
  %429 = vmatmul.mubr.f32.gmra.mxu0 %v353
  %v430 = vpop.f32.mrf.mxu0
  %v431 = vadd.f32 0.0, %v430
  %v432 = vpop.f32.mrf.mxu0
  %433 = vmatprep.mubr.f32.mxu0 0.0
  %434 = vmatmul.mubr.f32.gmra.mxu0 %v356
  %v435 = vpop.f32.mrf.mxu0
  %v436 = vadd.f32 0.0, %v435
  %v437 = vpop.f32.mrf.mxu0
  %438 = vmatprep.mubr.f32.mxu0 0.0
  %439 = vmatmul.mubr.f32.gmra.mxu0 %v359
  %v440 = vpop.f32.mrf.mxu0
  %v441 = vadd.f32 0.0, %v440
  %v442 = vpop.f32.mrf.mxu0
  %443 = vmatprep.mubr.f32.mxu0 0.0
  %444 = vmatmul.mubr.f32.gmra.mxu0 %v362
  %v445 = vpop.f32.mrf.mxu0
  %v446 = vadd.f32 0.0, %v445
  %v447 = vpop.f32.mrf.mxu0
  %448 = vdwg.mxu0
  %v449 = vadd.f32 %v321, %v431
  %v450 = vadd.f32 %v322, %v436
  %v451 = vadd.f32 %v323, %v441
  %v452 = vadd.f32 %v324, %v446
  %v453 = vmax.f32 %v449, 0.0
  %v454 = vmax.f32 %v450, 0.0
  %v455 = vmax.f32 %v451, 0.0
  %v456 = vmax.f32 %v452, 0.0
  %457 = vxpose.xlu0.b32.start [1/16] %v453, 128
  %458 = vxpose.xlu0.b32.cont [2/16] %v454, 128
  %459 = vxpose.xlu0.b32.cont [3/16] %v455, 128
  %460 = vxpose.xlu0.b32.cont [4/16] %v456, 128
  %461 = vxpose.xlu0.b32.cont [5/16] 0.0, 128
  %462 = vxpose.xlu0.b32.cont [6/16] 0.0, 128
  %463 = vxpose.xlu0.b32.cont [7/16] 0.0, 128
  %464 = vxpose.xlu0.b32.cont [8/16] 0.0, 128
  %465 = vxpose.xlu0.b32.cont [9/16] 0.0, 128
  %466 = vxpose.xlu0.b32.cont [10/16] 0.0, 128
  %467 = vxpose.xlu0.b32.cont [11/16] 0.0, 128
  %468 = vxpose.xlu0.b32.cont [12/16] 0.0, 128
  %469 = vxpose.xlu0.b32.cont [13/16] 0.0, 128
  %470 = vxpose.xlu0.b32.cont [14/16] 0.0, 128
  %471 = vxpose.xlu0.b32.cont [15/16] 0.0, 128
  %472 = vxpose.xlu0.b32.end [16/16] 0.0, 128
  %v473 = vpop.trf.xlu0
  %v474 = vpop.trf.xlu0
  %v475 = vpop.trf.xlu0
  %v476 = vpop.trf.xlu0
  %v477 = vpop.trf.xlu0
  %v478 = vpop.trf.xlu0
  %v479 = vpop.trf.xlu0
  %v480 = vpop.trf.xlu0
  %v481 = vpop.trf.xlu0
  %v482 = vpop.trf.xlu0
  %v483 = vpop.trf.xlu0
  %v484 = vpop.trf.xlu0
  %v485 = vpop.trf.xlu0
  %v486 = vpop.trf.xlu0
  %v487 = vpop.trf.xlu0
  %v488 = vpop.trf.xlu0
  %vm489 = vcmask 261120
  %490 = vst.msk [vmem:[%s4] sm:$0xff] %vm489, %v473
  %492 = vset.pattern.permute.xlu0 0
  %493 = vperm.xlu0 %492, %v45
  %v494 = vpop.permute.xlu0 %493
  %497 = vset.pattern.permute.xlu0 0
  %498 = vperm.xlu0 %497, %v46
  %v499 = vpop.permute.xlu0 %498
  %502 = vset.pattern.permute.xlu0 0
  %503 = vperm.xlu0 %502, %v47
  %v504 = vpop.permute.xlu0 %503
  %507 = vset.pattern.permute.xlu0 0
  %508 = vperm.xlu0 %507, %v48
  %v509 = vpop.permute.xlu0 %508
  %v511 = vmul.f32 %v453, %v494
  %v512 = vmul.f32 %v454, %v499
  %v513 = vmul.f32 %v455, %v504
  %v514 = vmul.f32 %v456, %v509
  %vm515 = vcmask 64512
  %v516 = vsel %vm515, %v511, 0.0
  %v517 = vsel %vm515, %v512, 0.0
  %v518 = vadd.f32 %v516, %v517
  %v519 = vsel %vm515, %v513, 0.0
  %v520 = vadd.f32 %v518, %v519
  %v521 = vsel %vm515, %v514, 0.0
  %v522 = vadd.f32 %v520, %v521
  %v523 = vrot.slane %v522, 4
  %v524 = vadd.f32 %v522, %v523
  %v525 = vrot.slane %v524, 2
  %v526 = vadd.f32 %v524, %v525
  %v527 = vrot.slane %v526, 1
  %v528 = vadd.f32 %v526, %v527
  %v529 = vld [vmem:[%s0 + $0x1] sm:$0x1]
  %v530 = vlaneseq
  %v531 = vshrl.u32 %v530, 7
  %v532 = vsub.s32 0, %v531
  %v533 = vrot.slane %v529, %v532
  %vm534 = vcmp.eq.s32.totalorder %v20, %v533
  %vm535 = vcmp.eq.s32.totalorder %v21, %v533
  %vm536 = vcmp.eq.s32.totalorder %v22, %v533
  %vm537 = vcmp.eq.s32.totalorder %v23, %v533
  %vm538 = vcmp.eq.s32.totalorder %v24, %v533
  %vm539 = vcmp.eq.s32.totalorder %v25, %v533
  %vm540 = vcmp.eq.s32.totalorder %v26, %v533
  %v541 = vsel %vm534, 1, 0
  %v542 = vsel %vm535, 1, 0
  %v543 = vsel %vm536, 1, 0
  %v544 = vsel %vm537, 1, 0
  %v545 = vsel %vm538, 1, 0
  %v546 = vsel %vm539, 1, 0
  %v547 = vsel %vm540, 1, 0
  %v548 = vcvt.s32.f32 %v541
  %v549 = vcvt.s32.f32 %v542
  %v550 = vcvt.s32.f32 %v543
  %v551 = vcvt.s32.f32 %v544
  %v552 = vcvt.s32.f32 %v545
  %v553 = vcvt.s32.f32 %v546
  %v554 = vcvt.s32.f32 %v547
  %555 = vmatprep.subr.mxu0 0.0
  %556 = vmatpush1.msra.mxu0 0.0
  %557 = vmatprep.subr.mxu0 0.0
  %558 = vmatpush1.msra.mxu0 0.0
  %559 = vmatprep.subr.mxu0 0.0
  %560 = vmatpush1.msra.mxu0 0.0
  %561 = vmatprep.subr.mxu0 0.0
  %562 = vmatpush1.msra.mxu0 0.0
  %563 = vmatprep.subr.mxu0 0.0
  %564 = vmatpush1.msra.mxu0 0.0
  %565 = vmatprep.subr.mxu0 0.0
  %566 = vmatpush1.msra.mxu0 0.0
  %567 = vmatprep.subr.mxu0 0.0
  %568 = vmatpush1.msra.mxu0 0.0
  %569 = vmatprep.subr.mxu0 0.0
  %570 = vmatpush1.msra.mxu0 0.0
  %571 = vmatprep.subr.mxu0 0.0
  %572 = vmatpush1.msra.mxu0 0.0
  %573 = vmatprep.subr.mxu0 0.0
  %574 = vmatpush1.msra.mxu0 %v554
  %575 = vmatprep.subr.mxu0 0.0
  %576 = vmatpush1.msra.mxu0 %v553
  %577 = vmatprep.subr.mxu0 0.0
  %578 = vmatpush1.msra.mxu0 %v552
  %579 = vmatprep.subr.mxu0 0.0
  %580 = vmatpush1.msra.mxu0 %v551
  %581 = vmatprep.subr.mxu0 0.0
  %582 = vmatpush1.msra.mxu0 %v550
  %583 = vmatprep.subr.mxu0 0.0
  %584 = vmatpush1.msra.mxu0 %v549
  %585 = vmatprep.subr.mxu0 0.0
  %586 = vmatpush1.msra.mxu0 %v548
  %587 = vmatprep.subr.mxu0 0.0
  %588 = vmatpush2.msra.mxu0 0.0
  %589 = vmatprep.subr.mxu0 0.0
  %590 = vmatpush2.msra.mxu0 0.0
  %591 = vmatprep.subr.mxu0 0.0
  %592 = vmatpush2.msra.mxu0 0.0
  %593 = vmatprep.subr.mxu0 0.0
  %594 = vmatpush2.msra.mxu0 0.0
  %595 = vmatprep.subr.mxu0 0.0
  %596 = vmatpush2.msra.mxu0 0.0
  %597 = vmatprep.subr.mxu0 0.0
  %598 = vmatpush2.msra.mxu0 0.0
  %599 = vmatprep.subr.mxu0 0.0
  %600 = vmatpush2.msra.mxu0 0.0
  %601 = vmatprep.subr.mxu0 0.0
  %602 = vmatpush2.msra.mxu0 0.0
  %603 = vmatprep.subr.mxu0 0.0
  %604 = vmatpush2.msra.mxu0 0.0
  %605 = vmatprep.subr.mxu0 0.0
  %606 = vmatpush2.msra.mxu0 0.0
  %607 = vmatprep.subr.mxu0 0.0
  %608 = vmatpush2.msra.mxu0 0.0
  %609 = vmatprep.subr.mxu0 0.0
  %610 = vmatpush2.msra.mxu0 0.0
  %611 = vmatprep.subr.mxu0 0.0
  %612 = vmatpush2.msra.mxu0 0.0
  %613 = vmatprep.subr.mxu0 0.0
  %614 = vmatpush2.msra.mxu0 0.0
  %615 = vmatprep.subr.mxu0 0.0
  %616 = vmatpush2.msra.mxu0 0.0
  %617 = vmatprep.subr.mxu0 0.0
  %618 = vmatpush2.msra.mxu0 0.0
  %619 = vmatprep.mubr.f32.mxu0 0.0
  %620 = vmatmul.mubr.f32.gmra.mxu0 %v77
  %v621 = vpop.f32.mrf.mxu0
  %v622 = vadd.f32 0.0, %v621
  %v623 = vpop.f32.mrf.mxu0
  %624 = vmatprep.mubr.f32.mxu0 0.0
  %625 = vmatmul.mubr.f32.gmra.mxu0 %v80
  %v626 = vpop.f32.mrf.mxu0
  %v627 = vadd.f32 0.0, %v626
  %v628 = vpop.f32.mrf.mxu0
  %629 = vmatprep.mubr.f32.mxu0 0.0
  %630 = vmatmul.mubr.f32.gmra.mxu0 %v83
  %v631 = vpop.f32.mrf.mxu0
  %v632 = vadd.f32 0.0, %v631
  %v633 = vpop.f32.mrf.mxu0
  %634 = vmatprep.mubr.f32.mxu0 0.0
  %635 = vmatmul.mubr.f32.gmra.mxu0 %v86
  %v636 = vpop.f32.mrf.mxu0
  %v637 = vadd.f32 0.0, %v636
  %v638 = vpop.f32.mrf.mxu0
  %639 = vdwg.mxu0
  %v640 = vadd.f32 %v176, %v622
  %v641 = vadd.f32 %v181, %v627
  %v642 = vadd.f32 %v186, %v632
  %v643 = vadd.f32 %v191, %v637
  %v644 = vld [vmem:[%s197 + $0x1] sm:$0x1]
  %v645 = vlaneseq
  %v646 = vshrl.u32 %v645, 7
  %v647 = vsub.s32 0, %v646
  %v648 = vrot.slane %v644, %v647
  %vm649 = vcmp.eq.s32.totalorder %v20, %v648
  %vm650 = vcmp.eq.s32.totalorder %v21, %v648
  %vm651 = vcmp.eq.s32.totalorder %v22, %v648
  %vm652 = vcmp.eq.s32.totalorder %v23, %v648
  %vm653 = vcmp.eq.s32.totalorder %v24, %v648
  %vm654 = vcmp.eq.s32.totalorder %v25, %v648
  %vm655 = vcmp.eq.s32.totalorder %v26, %v648
  %v656 = vsel %vm649, 1, 0
  %v657 = vsel %vm650, 1, 0
  %v658 = vsel %vm651, 1, 0
  %v659 = vsel %vm652, 1, 0
  %v660 = vsel %vm653, 1, 0
  %v661 = vsel %vm654, 1, 0
  %v662 = vsel %vm655, 1, 0
  %v663 = vcvt.s32.f32 %v656
  %v664 = vcvt.s32.f32 %v657
  %v665 = vcvt.s32.f32 %v658
  %v666 = vcvt.s32.f32 %v659
  %v667 = vcvt.s32.f32 %v660
  %v668 = vcvt.s32.f32 %v661
  %v669 = vcvt.s32.f32 %v662
  %670 = vmatprep.subr.mxu0 0.0
  %671 = vmatpush1.msra.mxu0 0.0
  %672 = vmatprep.subr.mxu0 0.0
  %673 = vmatpush1.msra.mxu0 0.0
  %674 = vmatprep.subr.mxu0 0.0
  %675 = vmatpush1.msra.mxu0 0.0
  %676 = vmatprep.subr.mxu0 0.0
  %677 = vmatpush1.msra.mxu0 0.0
  %678 = vmatprep.subr.mxu0 0.0
  %679 = vmatpush1.msra.mxu0 0.0
  %680 = vmatprep.subr.mxu0 0.0
  %681 = vmatpush1.msra.mxu0 0.0
  %682 = vmatprep.subr.mxu0 0.0
  %683 = vmatpush1.msra.mxu0 0.0
  %684 = vmatprep.subr.mxu0 0.0
  %685 = vmatpush1.msra.mxu0 0.0
  %686 = vmatprep.subr.mxu0 0.0
  %687 = vmatpush1.msra.mxu0 0.0
  %688 = vmatprep.subr.mxu0 0.0
  %689 = vmatpush1.msra.mxu0 %v669
  %690 = vmatprep.subr.mxu0 0.0
  %691 = vmatpush1.msra.mxu0 %v668
  %692 = vmatprep.subr.mxu0 0.0
  %693 = vmatpush1.msra.mxu0 %v667
  %694 = vmatprep.subr.mxu0 0.0
  %695 = vmatpush1.msra.mxu0 %v666
  %696 = vmatprep.subr.mxu0 0.0
  %697 = vmatpush1.msra.mxu0 %v665
  %698 = vmatprep.subr.mxu0 0.0
  %699 = vmatpush1.msra.mxu0 %v664
  %700 = vmatprep.subr.mxu0 0.0
  %701 = vmatpush1.msra.mxu0 %v663
  %702 = vmatprep.subr.mxu0 0.0
  %703 = vmatpush2.msra.mxu0 0.0
  %704 = vmatprep.subr.mxu0 0.0
  %705 = vmatpush2.msra.mxu0 0.0
  %706 = vmatprep.subr.mxu0 0.0
  %707 = vmatpush2.msra.mxu0 0.0
  %708 = vmatprep.subr.mxu0 0.0
  %709 = vmatpush2.msra.mxu0 0.0
  %710 = vmatprep.subr.mxu0 0.0
  %711 = vmatpush2.msra.mxu0 0.0
  %712 = vmatprep.subr.mxu0 0.0
  %713 = vmatpush2.msra.mxu0 0.0
  %714 = vmatprep.subr.mxu0 0.0
  %715 = vmatpush2.msra.mxu0 0.0
  %716 = vmatprep.subr.mxu0 0.0
  %717 = vmatpush2.msra.mxu0 0.0
  %718 = vmatprep.subr.mxu0 0.0
  %719 = vmatpush2.msra.mxu0 0.0
  %720 = vmatprep.subr.mxu0 0.0
  %721 = vmatpush2.msra.mxu0 0.0
  %722 = vmatprep.subr.mxu0 0.0
  %723 = vmatpush2.msra.mxu0 0.0
  %724 = vmatprep.subr.mxu0 0.0
  %725 = vmatpush2.msra.mxu0 0.0
  %726 = vmatprep.subr.mxu0 0.0
  %727 = vmatpush2.msra.mxu0 0.0
  %728 = vmatprep.subr.mxu0 0.0
  %729 = vmatpush2.msra.mxu0 0.0
  %730 = vmatprep.subr.mxu0 0.0
  %731 = vmatpush2.msra.mxu0 0.0
  %732 = vmatprep.subr.mxu0 0.0
  %733 = vmatpush2.msra.mxu0 0.0
  %734 = vmatprep.mubr.f32.mxu0 0.0
  %735 = vmatmul.mubr.f32.gmra.mxu0 %v225
  %v736 = vpop.f32.mrf.mxu0
  %v737 = vadd.f32 0.0, %v736
  %v738 = vpop.f32.mrf.mxu0
  %739 = vmatprep.mubr.f32.mxu0 0.0
  %740 = vmatmul.mubr.f32.gmra.mxu0 %v228
  %v741 = vpop.f32.mrf.mxu0
  %v742 = vadd.f32 0.0, %v741
  %v743 = vpop.f32.mrf.mxu0
  %744 = vmatprep.mubr.f32.mxu0 0.0
  %745 = vmatmul.mubr.f32.gmra.mxu0 %v231
  %v746 = vpop.f32.mrf.mxu0
  %v747 = vadd.f32 0.0, %v746
  %v748 = vpop.f32.mrf.mxu0
  %749 = vmatprep.mubr.f32.mxu0 0.0
  %750 = vmatmul.mubr.f32.gmra.mxu0 %v234
  %v751 = vpop.f32.mrf.mxu0
  %v752 = vadd.f32 0.0, %v751
  %v753 = vpop.f32.mrf.mxu0
  %754 = vdwg.mxu0
  %v755 = vadd.f32 %v640, %v737
  %v756 = vadd.f32 %v641, %v742
  %v757 = vadd.f32 %v642, %v747
  %v758 = vadd.f32 %v643, %v752
  %v759 = vld [vmem:[%s325 + $0x1] sm:$0x1]
  %v760 = vlaneseq
  %v761 = vshrl.u32 %v760, 7
  %v762 = vsub.s32 0, %v761
  %v763 = vrot.slane %v759, %v762
  %vm764 = vcmp.eq.s32.totalorder %v20, %v763
  %vm765 = vcmp.eq.s32.totalorder %v21, %v763
  %vm766 = vcmp.eq.s32.totalorder %v22, %v763
  %vm767 = vcmp.eq.s32.totalorder %v23, %v763
  %vm768 = vcmp.eq.s32.totalorder %v24, %v763
  %vm769 = vcmp.eq.s32.totalorder %v25, %v763
  %vm770 = vcmp.eq.s32.totalorder %v26, %v763
  %v771 = vsel %vm764, 1, 0
  %v772 = vsel %vm765, 1, 0
  %v773 = vsel %vm766, 1, 0
  %v774 = vsel %vm767, 1, 0
  %v775 = vsel %vm768, 1, 0
  %v776 = vsel %vm769, 1, 0
  %v777 = vsel %vm770, 1, 0
  %v778 = vcvt.s32.f32 %v771
  %v779 = vcvt.s32.f32 %v772
  %v780 = vcvt.s32.f32 %v773
  %v781 = vcvt.s32.f32 %v774
  %v782 = vcvt.s32.f32 %v775
  %v783 = vcvt.s32.f32 %v776
  %v784 = vcvt.s32.f32 %v777
  %785 = vmatprep.subr.mxu0 0.0
  %786 = vmatpush1.msra.mxu0 0.0
  %787 = vmatprep.subr.mxu0 0.0
  %788 = vmatpush1.msra.mxu0 0.0
  %789 = vmatprep.subr.mxu0 0.0
  %790 = vmatpush1.msra.mxu0 0.0
  %791 = vmatprep.subr.mxu0 0.0
  %792 = vmatpush1.msra.mxu0 0.0
  %793 = vmatprep.subr.mxu0 0.0
  %794 = vmatpush1.msra.mxu0 0.0
  %795 = vmatprep.subr.mxu0 0.0
  %796 = vmatpush1.msra.mxu0 0.0
  %797 = vmatprep.subr.mxu0 0.0
  %798 = vmatpush1.msra.mxu0 0.0
  %799 = vmatprep.subr.mxu0 0.0
  %800 = vmatpush1.msra.mxu0 0.0
  %801 = vmatprep.subr.mxu0 0.0
  %802 = vmatpush1.msra.mxu0 0.0
  %803 = vmatprep.subr.mxu0 0.0
  %804 = vmatpush1.msra.mxu0 %v784
  %805 = vmatprep.subr.mxu0 0.0
  %806 = vmatpush1.msra.mxu0 %v783
  %807 = vmatprep.subr.mxu0 0.0
  %808 = vmatpush1.msra.mxu0 %v782
  %809 = vmatprep.subr.mxu0 0.0
  %810 = vmatpush1.msra.mxu0 %v781
  %811 = vmatprep.subr.mxu0 0.0
  %812 = vmatpush1.msra.mxu0 %v780
  %813 = vmatprep.subr.mxu0 0.0
  %814 = vmatpush1.msra.mxu0 %v779
  %815 = vmatprep.subr.mxu0 0.0
  %816 = vmatpush1.msra.mxu0 %v778
  %817 = vmatprep.subr.mxu0 0.0
  %818 = vmatpush2.msra.mxu0 0.0
  %819 = vmatprep.subr.mxu0 0.0
  %820 = vmatpush2.msra.mxu0 0.0
  %821 = vmatprep.subr.mxu0 0.0
  %822 = vmatpush2.msra.mxu0 0.0
  %823 = vmatprep.subr.mxu0 0.0
  %824 = vmatpush2.msra.mxu0 0.0
  %825 = vmatprep.subr.mxu0 0.0
  %826 = vmatpush2.msra.mxu0 0.0
  %827 = vmatprep.subr.mxu0 0.0
  %828 = vmatpush2.msra.mxu0 0.0
  %829 = vmatprep.subr.mxu0 0.0
  %830 = vmatpush2.msra.mxu0 0.0
  %831 = vmatprep.subr.mxu0 0.0
  %832 = vmatpush2.msra.mxu0 0.0
  %833 = vmatprep.subr.mxu0 0.0
  %834 = vmatpush2.msra.mxu0 0.0
  %835 = vmatprep.subr.mxu0 0.0
  %836 = vmatpush2.msra.mxu0 0.0
  %837 = vmatprep.subr.mxu0 0.0
  %838 = vmatpush2.msra.mxu0 0.0
  %839 = vmatprep.subr.mxu0 0.0
  %840 = vmatpush2.msra.mxu0 0.0
  %841 = vmatprep.subr.mxu0 0.0
  %842 = vmatpush2.msra.mxu0 0.0
  %843 = vmatprep.subr.mxu0 0.0
  %844 = vmatpush2.msra.mxu0 0.0
  %845 = vmatprep.subr.mxu0 0.0
  %846 = vmatpush2.msra.mxu0 0.0
  %847 = vmatprep.subr.mxu0 0.0
  %848 = vmatpush2.msra.mxu0 0.0
  %849 = vmatprep.mubr.f32.mxu0 0.0
  %850 = vmatmul.mubr.f32.gmra.mxu0 %v353
  %v851 = vpop.f32.mrf.mxu0
  %v852 = vadd.f32 0.0, %v851
  %v853 = vpop.f32.mrf.mxu0
  %854 = vmatprep.mubr.f32.mxu0 0.0
  %855 = vmatmul.mubr.f32.gmra.mxu0 %v356
  %v856 = vpop.f32.mrf.mxu0
  %v857 = vadd.f32 0.0, %v856
  %v858 = vpop.f32.mrf.mxu0
  %859 = vmatprep.mubr.f32.mxu0 0.0
  %860 = vmatmul.mubr.f32.gmra.mxu0 %v359
  %v861 = vpop.f32.mrf.mxu0
  %v862 = vadd.f32 0.0, %v861
  %v863 = vpop.f32.mrf.mxu0
  %864 = vmatprep.mubr.f32.mxu0 0.0
  %865 = vmatmul.mubr.f32.gmra.mxu0 %v362
  %v866 = vpop.f32.mrf.mxu0
  %v867 = vadd.f32 0.0, %v866
  %v868 = vpop.f32.mrf.mxu0
  %869 = vdwg.mxu0
  %v870 = vadd.f32 %v755, %v852
  %v871 = vadd.f32 %v756, %v857
  %v872 = vadd.f32 %v757, %v862
  %v873 = vadd.f32 %v758, %v867
  %v874 = vmax.f32 %v870, 0.0
  %v875 = vmax.f32 %v871, 0.0
  %v876 = vmax.f32 %v872, 0.0
  %v877 = vmax.f32 %v873, 0.0
  %878 = vxpose.xlu0.b32.start [1/16] %v874, 128
  %879 = vxpose.xlu0.b32.cont [2/16] %v875, 128
  %880 = vxpose.xlu0.b32.cont [3/16] %v876, 128
  %881 = vxpose.xlu0.b32.cont [4/16] %v877, 128
  %882 = vxpose.xlu0.b32.cont [5/16] 0.0, 128
  %883 = vxpose.xlu0.b32.cont [6/16] 0.0, 128
  %884 = vxpose.xlu0.b32.cont [7/16] 0.0, 128
  %885 = vxpose.xlu0.b32.cont [8/16] 0.0, 128
  %886 = vxpose.xlu0.b32.cont [9/16] 0.0, 128
  %887 = vxpose.xlu0.b32.cont [10/16] 0.0, 128
  %888 = vxpose.xlu0.b32.cont [11/16] 0.0, 128
  %889 = vxpose.xlu0.b32.cont [12/16] 0.0, 128
  %890 = vxpose.xlu0.b32.cont [13/16] 0.0, 128
  %891 = vxpose.xlu0.b32.cont [14/16] 0.0, 128
  %892 = vxpose.xlu0.b32.cont [15/16] 0.0, 128
  %893 = vxpose.xlu0.b32.end [16/16] 0.0, 128
  %v894 = vpop.trf.xlu0
  %v895 = vpop.trf.xlu0
  %v896 = vpop.trf.xlu0
  %v897 = vpop.trf.xlu0
  %v898 = vpop.trf.xlu0
  %v899 = vpop.trf.xlu0
  %v900 = vpop.trf.xlu0
  %v901 = vpop.trf.xlu0
  %v902 = vpop.trf.xlu0
  %v903 = vpop.trf.xlu0
  %v904 = vpop.trf.xlu0
  %v905 = vpop.trf.xlu0
  %v906 = vpop.trf.xlu0
  %v907 = vpop.trf.xlu0
  %v908 = vpop.trf.xlu0
  %v909 = vpop.trf.xlu0
  %s910 = scalar_lea.vmem %s4, 8
  %911 = vst.msk [vmem:[%s910] sm:$0xff] %vm489, %v894
  %v912 = vmul.f32 %v874, %v494
  %v913 = vmul.f32 %v875, %v499
  %v914 = vmul.f32 %v876, %v504
  %v915 = vmul.f32 %v877, %v509
  %v916 = vsel %vm515, %v912, 0.0
  %v917 = vsel %vm515, %v913, 0.0
  %v918 = vadd.f32 %v916, %v917
  %v919 = vsel %vm515, %v914, 0.0
  %v920 = vadd.f32 %v918, %v919
  %v921 = vsel %vm515, %v915, 0.0
  %v922 = vadd.f32 %v920, %v921
  %v923 = vrot.slane %v922, 4
  %v924 = vadd.f32 %v922, %v923
  %v925 = vrot.slane %v924, 2
  %v926 = vadd.f32 %v924, %v925
  %v927 = vrot.slane %v926, 1
  %v928 = vadd.f32 %v926, %v927
  %v929 = vld [vmem:[%s0 + $0x2] sm:$0x1]
  %v930 = vlaneseq
  %v931 = vshrl.u32 %v930, 7
  %v932 = vsub.s32 0, %v931
  %v933 = vrot.slane %v929, %v932
  %vm934 = vcmp.eq.s32.totalorder %v20, %v933
  %vm935 = vcmp.eq.s32.totalorder %v21, %v933
  %vm936 = vcmp.eq.s32.totalorder %v22, %v933
  %vm937 = vcmp.eq.s32.totalorder %v23, %v933
  %vm938 = vcmp.eq.s32.totalorder %v24, %v933
  %vm939 = vcmp.eq.s32.totalorder %v25, %v933
  %vm940 = vcmp.eq.s32.totalorder %v26, %v933
  %v941 = vsel %vm934, 1, 0
  %v942 = vsel %vm935, 1, 0
  %v943 = vsel %vm936, 1, 0
  %v944 = vsel %vm937, 1, 0
  %v945 = vsel %vm938, 1, 0
  %v946 = vsel %vm939, 1, 0
  %v947 = vsel %vm940, 1, 0
  %v948 = vcvt.s32.f32 %v941
  %v949 = vcvt.s32.f32 %v942
  %v950 = vcvt.s32.f32 %v943
  %v951 = vcvt.s32.f32 %v944
  %v952 = vcvt.s32.f32 %v945
  %v953 = vcvt.s32.f32 %v946
  %v954 = vcvt.s32.f32 %v947
  %955 = vmatprep.subr.mxu0 0.0
  %956 = vmatpush1.msra.mxu0 0.0
  %957 = vmatprep.subr.mxu0 0.0
  %958 = vmatpush1.msra.mxu0 0.0
  %959 = vmatprep.subr.mxu0 0.0
  %960 = vmatpush1.msra.mxu0 0.0
  %961 = vmatprep.subr.mxu0 0.0
  %962 = vmatpush1.msra.mxu0 0.0
  %963 = vmatprep.subr.mxu0 0.0
  %964 = vmatpush1.msra.mxu0 0.0
  %965 = vmatprep.subr.mxu0 0.0
  %966 = vmatpush1.msra.mxu0 0.0
  %967 = vmatprep.subr.mxu0 0.0
  %968 = vmatpush1.msra.mxu0 0.0
  %969 = vmatprep.subr.mxu0 0.0
  %970 = vmatpush1.msra.mxu0 0.0
  %971 = vmatprep.subr.mxu0 0.0
  %972 = vmatpush1.msra.mxu0 0.0
  %973 = vmatprep.subr.mxu0 0.0
  %974 = vmatpush1.msra.mxu0 %v954
  %975 = vmatprep.subr.mxu0 0.0
  %976 = vmatpush1.msra.mxu0 %v953
  %977 = vmatprep.subr.mxu0 0.0
  %978 = vmatpush1.msra.mxu0 %v952
  %979 = vmatprep.subr.mxu0 0.0
  %980 = vmatpush1.msra.mxu0 %v951
  %981 = vmatprep.subr.mxu0 0.0
  %982 = vmatpush1.msra.mxu0 %v950
  %983 = vmatprep.subr.mxu0 0.0
  %984 = vmatpush1.msra.mxu0 %v949
  %985 = vmatprep.subr.mxu0 0.0
  %986 = vmatpush1.msra.mxu0 %v948
  %987 = vmatprep.subr.mxu0 0.0
  %988 = vmatpush2.msra.mxu0 0.0
  %989 = vmatprep.subr.mxu0 0.0
  %990 = vmatpush2.msra.mxu0 0.0
  %991 = vmatprep.subr.mxu0 0.0
  %992 = vmatpush2.msra.mxu0 0.0
  %993 = vmatprep.subr.mxu0 0.0
  %994 = vmatpush2.msra.mxu0 0.0
  %995 = vmatprep.subr.mxu0 0.0
  %996 = vmatpush2.msra.mxu0 0.0
  %997 = vmatprep.subr.mxu0 0.0
  %998 = vmatpush2.msra.mxu0 0.0
  %999 = vmatprep.subr.mxu0 0.0
  %1000 = vmatpush2.msra.mxu0 0.0
  %1001 = vmatprep.subr.mxu0 0.0
  %1002 = vmatpush2.msra.mxu0 0.0
  %1003 = vmatprep.subr.mxu0 0.0
  %1004 = vmatpush2.msra.mxu0 0.0
  %1005 = vmatprep.subr.mxu0 0.0
  %1006 = vmatpush2.msra.mxu0 0.0
  %1007 = vmatprep.subr.mxu0 0.0
  %1008 = vmatpush2.msra.mxu0 0.0
  %1009 = vmatprep.subr.mxu0 0.0
  %1010 = vmatpush2.msra.mxu0 0.0
  %1011 = vmatprep.subr.mxu0 0.0
  %1012 = vmatpush2.msra.mxu0 0.0
  %1013 = vmatprep.subr.mxu0 0.0
  %1014 = vmatpush2.msra.mxu0 0.0
  %1015 = vmatprep.subr.mxu0 0.0
  %1016 = vmatpush2.msra.mxu0 0.0
  %1017 = vmatprep.subr.mxu0 0.0
  %1018 = vmatpush2.msra.mxu0 0.0
  %1019 = vmatprep.mubr.f32.mxu0 0.0
  %1020 = vmatmul.mubr.f32.gmra.mxu0 %v77
  %v1021 = vpop.f32.mrf.mxu0
  %v1022 = vadd.f32 0.0, %v1021
  %v1023 = vpop.f32.mrf.mxu0
  %1024 = vmatprep.mubr.f32.mxu0 0.0
  %1025 = vmatmul.mubr.f32.gmra.mxu0 %v80
  %v1026 = vpop.f32.mrf.mxu0
  %v1027 = vadd.f32 0.0, %v1026
  %v1028 = vpop.f32.mrf.mxu0
  %1029 = vmatprep.mubr.f32.mxu0 0.0
  %1030 = vmatmul.mubr.f32.gmra.mxu0 %v83
  %v1031 = vpop.f32.mrf.mxu0
  %v1032 = vadd.f32 0.0, %v1031
  %v1033 = vpop.f32.mrf.mxu0
  %1034 = vmatprep.mubr.f32.mxu0 0.0
  %1035 = vmatmul.mubr.f32.gmra.mxu0 %v86
  %v1036 = vpop.f32.mrf.mxu0
  %v1037 = vadd.f32 0.0, %v1036
  %v1038 = vpop.f32.mrf.mxu0
  %1039 = vdwg.mxu0
  %v1040 = vadd.f32 %v176, %v1022
  %v1041 = vadd.f32 %v181, %v1027
  %v1042 = vadd.f32 %v186, %v1032
  %v1043 = vadd.f32 %v191, %v1037
  %v1044 = vld [vmem:[%s197 + $0x2] sm:$0x1]
  %v1045 = vlaneseq
  %v1046 = vshrl.u32 %v1045, 7
  %v1047 = vsub.s32 0, %v1046
  %v1048 = vrot.slane %v1044, %v1047
  %vm1049 = vcmp.eq.s32.totalorder %v20, %v1048
  %vm1050 = vcmp.eq.s32.totalorder %v21, %v1048
  %vm1051 = vcmp.eq.s32.totalorder %v22, %v1048
  %vm1052 = vcmp.eq.s32.totalorder %v23, %v1048
  %vm1053 = vcmp.eq.s32.totalorder %v24, %v1048
  %vm1054 = vcmp.eq.s32.totalorder %v25, %v1048
  %vm1055 = vcmp.eq.s32.totalorder %v26, %v1048
  %v1056 = vsel %vm1049, 1, 0
  %v1057 = vsel %vm1050, 1, 0
  %v1058 = vsel %vm1051, 1, 0
  %v1059 = vsel %vm1052, 1, 0
  %v1060 = vsel %vm1053, 1, 0
  %v1061 = vsel %vm1054, 1, 0
  %v1062 = vsel %vm1055, 1, 0
  %v1063 = vcvt.s32.f32 %v1056
  %v1064 = vcvt.s32.f32 %v1057
  %v1065 = vcvt.s32.f32 %v1058
  %v1066 = vcvt.s32.f32 %v1059
  %v1067 = vcvt.s32.f32 %v1060
  %v1068 = vcvt.s32.f32 %v1061
  %v1069 = vcvt.s32.f32 %v1062
  %1070 = vmatprep.subr.mxu0 0.0
  %1071 = vmatpush1.msra.mxu0 0.0
  %1072 = vmatprep.subr.mxu0 0.0
  %1073 = vmatpush1.msra.mxu0 0.0
  %1074 = vmatprep.subr.mxu0 0.0
  %1075 = vmatpush1.msra.mxu0 0.0
  %1076 = vmatprep.subr.mxu0 0.0
  %1077 = vmatpush1.msra.mxu0 0.0
  %1078 = vmatprep.subr.mxu0 0.0
  %1079 = vmatpush1.msra.mxu0 0.0
  %1080 = vmatprep.subr.mxu0 0.0
  %1081 = vmatpush1.msra.mxu0 0.0
  %1082 = vmatprep.subr.mxu0 0.0
  %1083 = vmatpush1.msra.mxu0 0.0
  %1084 = vmatprep.subr.mxu0 0.0
  %1085 = vmatpush1.msra.mxu0 0.0
  %1086 = vmatprep.subr.mxu0 0.0
  %1087 = vmatpush1.msra.mxu0 0.0
  %1088 = vmatprep.subr.mxu0 0.0
  %1089 = vmatpush1.msra.mxu0 %v1069
  %1090 = vmatprep.subr.mxu0 0.0
  %1091 = vmatpush1.msra.mxu0 %v1068
  %1092 = vmatprep.subr.mxu0 0.0
  %1093 = vmatpush1.msra.mxu0 %v1067
  %1094 = vmatprep.subr.mxu0 0.0
  %1095 = vmatpush1.msra.mxu0 %v1066
  %1096 = vmatprep.subr.mxu0 0.0
  %1097 = vmatpush1.msra.mxu0 %v1065
  %1098 = vmatprep.subr.mxu0 0.0
  %1099 = vmatpush1.msra.mxu0 %v1064
  %1100 = vmatprep.subr.mxu0 0.0
  %1101 = vmatpush1.msra.mxu0 %v1063
  %1102 = vmatprep.subr.mxu0 0.0
  %1103 = vmatpush2.msra.mxu0 0.0
  %1104 = vmatprep.subr.mxu0 0.0
  %1105 = vmatpush2.msra.mxu0 0.0
  %1106 = vmatprep.subr.mxu0 0.0
  %1107 = vmatpush2.msra.mxu0 0.0
  %1108 = vmatprep.subr.mxu0 0.0
  %1109 = vmatpush2.msra.mxu0 0.0
  %1110 = vmatprep.subr.mxu0 0.0
  %1111 = vmatpush2.msra.mxu0 0.0
  %1112 = vmatprep.subr.mxu0 0.0
  %1113 = vmatpush2.msra.mxu0 0.0
  %1114 = vmatprep.subr.mxu0 0.0
  %1115 = vmatpush2.msra.mxu0 0.0
  %1116 = vmatprep.subr.mxu0 0.0
  %1117 = vmatpush2.msra.mxu0 0.0
  %1118 = vmatprep.subr.mxu0 0.0
  %1119 = vmatpush2.msra.mxu0 0.0
  %1120 = vmatprep.subr.mxu0 0.0
  %1121 = vmatpush2.msra.mxu0 0.0
  %1122 = vmatprep.subr.mxu0 0.0
  %1123 = vmatpush2.msra.mxu0 0.0
  %1124 = vmatprep.subr.mxu0 0.0
  %1125 = vmatpush2.msra.mxu0 0.0
  %1126 = vmatprep.subr.mxu0 0.0
  %1127 = vmatpush2.msra.mxu0 0.0
  %1128 = vmatprep.subr.mxu0 0.0
  %1129 = vmatpush2.msra.mxu0 0.0
  %1130 = vmatprep.subr.mxu0 0.0
  %1131 = vmatpush2.msra.mxu0 0.0
  %1132 = vmatprep.subr.mxu0 0.0
  %1133 = vmatpush2.msra.mxu0 0.0
  %1134 = vmatprep.mubr.f32.mxu0 0.0
  %1135 = vmatmul.mubr.f32.gmra.mxu0 %v225
  %v1136 = vpop.f32.mrf.mxu0
  %v1137 = vadd.f32 0.0, %v1136
  %v1138 = vpop.f32.mrf.mxu0
  %1139 = vmatprep.mubr.f32.mxu0 0.0
  %1140 = vmatmul.mubr.f32.gmra.mxu0 %v228
  %v1141 = vpop.f32.mrf.mxu0
  %v1142 = vadd.f32 0.0, %v1141
  %v1143 = vpop.f32.mrf.mxu0
  %1144 = vmatprep.mubr.f32.mxu0 0.0
  %1145 = vmatmul.mubr.f32.gmra.mxu0 %v231
  %v1146 = vpop.f32.mrf.mxu0
  %v1147 = vadd.f32 0.0, %v1146
  %v1148 = vpop.f32.mrf.mxu0
  %1149 = vmatprep.mubr.f32.mxu0 0.0
  %1150 = vmatmul.mubr.f32.gmra.mxu0 %v234
  %v1151 = vpop.f32.mrf.mxu0
  %v1152 = vadd.f32 0.0, %v1151
  %v1153 = vpop.f32.mrf.mxu0
  %1154 = vdwg.mxu0
  %v1155 = vadd.f32 %v1040, %v1137
  %v1156 = vadd.f32 %v1041, %v1142
  %v1157 = vadd.f32 %v1042, %v1147
  %v1158 = vadd.f32 %v1043, %v1152
  %v1159 = vld [vmem:[%s325 + $0x2] sm:$0x1]
  %v1160 = vlaneseq
  %v1161 = vshrl.u32 %v1160, 7
  %v1162 = vsub.s32 0, %v1161
  %v1163 = vrot.slane %v1159, %v1162
  %vm1164 = vcmp.eq.s32.totalorder %v20, %v1163
  %vm1165 = vcmp.eq.s32.totalorder %v21, %v1163
  %vm1166 = vcmp.eq.s32.totalorder %v22, %v1163
  %vm1167 = vcmp.eq.s32.totalorder %v23, %v1163
  %vm1168 = vcmp.eq.s32.totalorder %v24, %v1163
  %vm1169 = vcmp.eq.s32.totalorder %v25, %v1163
  %vm1170 = vcmp.eq.s32.totalorder %v26, %v1163
  %v1171 = vsel %vm1164, 1, 0
  %v1172 = vsel %vm1165, 1, 0
  %v1173 = vsel %vm1166, 1, 0
  %v1174 = vsel %vm1167, 1, 0
  %v1175 = vsel %vm1168, 1, 0
  %v1176 = vsel %vm1169, 1, 0
  %v1177 = vsel %vm1170, 1, 0
  %v1178 = vcvt.s32.f32 %v1171
  %v1179 = vcvt.s32.f32 %v1172
  %v1180 = vcvt.s32.f32 %v1173
  %v1181 = vcvt.s32.f32 %v1174
  %v1182 = vcvt.s32.f32 %v1175
  %v1183 = vcvt.s32.f32 %v1176
  %v1184 = vcvt.s32.f32 %v1177
  %1185 = vmatprep.subr.mxu0 0.0
  %1186 = vmatpush1.msra.mxu0 0.0
  %1187 = vmatprep.subr.mxu0 0.0
  %1188 = vmatpush1.msra.mxu0 0.0
  %1189 = vmatprep.subr.mxu0 0.0
  %1190 = vmatpush1.msra.mxu0 0.0
  %1191 = vmatprep.subr.mxu0 0.0
  %1192 = vmatpush1.msra.mxu0 0.0
  %1193 = vmatprep.subr.mxu0 0.0
  %1194 = vmatpush1.msra.mxu0 0.0
  %1195 = vmatprep.subr.mxu0 0.0
  %1196 = vmatpush1.msra.mxu0 0.0
  %1197 = vmatprep.subr.mxu0 0.0
  %1198 = vmatpush1.msra.mxu0 0.0
  %1199 = vmatprep.subr.mxu0 0.0
  %1200 = vmatpush1.msra.mxu0 0.0
  %1201 = vmatprep.subr.mxu0 0.0
  %1202 = vmatpush1.msra.mxu0 0.0
  %1203 = vmatprep.subr.mxu0 0.0
  %1204 = vmatpush1.msra.mxu0 %v1184
  %1205 = vmatprep.subr.mxu0 0.0
  %1206 = vmatpush1.msra.mxu0 %v1183
  %1207 = vmatprep.subr.mxu0 0.0
  %1208 = vmatpush1.msra.mxu0 %v1182
  %1209 = vmatprep.subr.mxu0 0.0
  %1210 = vmatpush1.msra.mxu0 %v1181
  %1211 = vmatprep.subr.mxu0 0.0
  %1212 = vmatpush1.msra.mxu0 %v1180
  %1213 = vmatprep.subr.mxu0 0.0
  %1214 = vmatpush1.msra.mxu0 %v1179
  %1215 = vmatprep.subr.mxu0 0.0
  %1216 = vmatpush1.msra.mxu0 %v1178
  %1217 = vmatprep.subr.mxu0 0.0
  %1218 = vmatpush2.msra.mxu0 0.0
  %1219 = vmatprep.subr.mxu0 0.0
  %1220 = vmatpush2.msra.mxu0 0.0
  %1221 = vmatprep.subr.mxu0 0.0
  %1222 = vmatpush2.msra.mxu0 0.0
  %1223 = vmatprep.subr.mxu0 0.0
  %1224 = vmatpush2.msra.mxu0 0.0
  %1225 = vmatprep.subr.mxu0 0.0
  %1226 = vmatpush2.msra.mxu0 0.0
  %1227 = vmatprep.subr.mxu0 0.0
  %1228 = vmatpush2.msra.mxu0 0.0
  %1229 = vmatprep.subr.mxu0 0.0
  %1230 = vmatpush2.msra.mxu0 0.0
  %1231 = vmatprep.subr.mxu0 0.0
  %1232 = vmatpush2.msra.mxu0 0.0
  %1233 = vmatprep.subr.mxu0 0.0
  %1234 = vmatpush2.msra.mxu0 0.0
  %1235 = vmatprep.subr.mxu0 0.0
  %1236 = vmatpush2.msra.mxu0 0.0
  %1237 = vmatprep.subr.mxu0 0.0
  %1238 = vmatpush2.msra.mxu0 0.0
  %1239 = vmatprep.subr.mxu0 0.0
  %1240 = vmatpush2.msra.mxu0 0.0
  %1241 = vmatprep.subr.mxu0 0.0
  %1242 = vmatpush2.msra.mxu0 0.0
  %1243 = vmatprep.subr.mxu0 0.0
  %1244 = vmatpush2.msra.mxu0 0.0
  %1245 = vmatprep.subr.mxu0 0.0
  %1246 = vmatpush2.msra.mxu0 0.0
  %1247 = vmatprep.subr.mxu0 0.0
  %1248 = vmatpush2.msra.mxu0 0.0
  %1249 = vmatprep.mubr.f32.mxu0 0.0
  %1250 = vmatmul.mubr.f32.gmra.mxu0 %v353
  %v1251 = vpop.f32.mrf.mxu0
  %v1252 = vadd.f32 0.0, %v1251
  %v1253 = vpop.f32.mrf.mxu0
  %1254 = vmatprep.mubr.f32.mxu0 0.0
  %1255 = vmatmul.mubr.f32.gmra.mxu0 %v356
  %v1256 = vpop.f32.mrf.mxu0
  %v1257 = vadd.f32 0.0, %v1256
  %v1258 = vpop.f32.mrf.mxu0
  %1259 = vmatprep.mubr.f32.mxu0 0.0
  %1260 = vmatmul.mubr.f32.gmra.mxu0 %v359
  %v1261 = vpop.f32.mrf.mxu0
  %v1262 = vadd.f32 0.0, %v1261
  %v1263 = vpop.f32.mrf.mxu0
  %1264 = vmatprep.mubr.f32.mxu0 0.0
  %1265 = vmatmul.mubr.f32.gmra.mxu0 %v362
  %v1266 = vpop.f32.mrf.mxu0
  %v1267 = vadd.f32 0.0, %v1266
  %v1268 = vpop.f32.mrf.mxu0
  %1269 = vdwg.mxu0
  %v1270 = vadd.f32 %v1155, %v1252
  %v1271 = vadd.f32 %v1156, %v1257
  %v1272 = vadd.f32 %v1157, %v1262
  %v1273 = vadd.f32 %v1158, %v1267
  %v1274 = vmax.f32 %v1270, 0.0
  %v1275 = vmax.f32 %v1271, 0.0
  %v1276 = vmax.f32 %v1272, 0.0
  %v1277 = vmax.f32 %v1273, 0.0
  %1278 = vxpose.xlu0.b32.start [1/16] %v1274, 128
  %1279 = vxpose.xlu0.b32.cont [2/16] %v1275, 128
  %1280 = vxpose.xlu0.b32.cont [3/16] %v1276, 128
  %1281 = vxpose.xlu0.b32.cont [4/16] %v1277, 128
  %1282 = vxpose.xlu0.b32.cont [5/16] 0.0, 128
  %1283 = vxpose.xlu0.b32.cont [6/16] 0.0, 128
  %1284 = vxpose.xlu0.b32.cont [7/16] 0.0, 128
  %1285 = vxpose.xlu0.b32.cont [8/16] 0.0, 128
  %1286 = vxpose.xlu0.b32.cont [9/16] 0.0, 128
  %1287 = vxpose.xlu0.b32.cont [10/16] 0.0, 128
  %1288 = vxpose.xlu0.b32.cont [11/16] 0.0, 128
  %1289 = vxpose.xlu0.b32.cont [12/16] 0.0, 128
  %1290 = vxpose.xlu0.b32.cont [13/16] 0.0, 128
  %1291 = vxpose.xlu0.b32.cont [14/16] 0.0, 128
  %1292 = vxpose.xlu0.b32.cont [15/16] 0.0, 128
  %1293 = vxpose.xlu0.b32.end [16/16] 0.0, 128
  %v1294 = vpop.trf.xlu0
  %v1295 = vpop.trf.xlu0
  %v1296 = vpop.trf.xlu0
  %v1297 = vpop.trf.xlu0
  %v1298 = vpop.trf.xlu0
  %v1299 = vpop.trf.xlu0
  %v1300 = vpop.trf.xlu0
  %v1301 = vpop.trf.xlu0
  %v1302 = vpop.trf.xlu0
  %v1303 = vpop.trf.xlu0
  %v1304 = vpop.trf.xlu0
  %v1305 = vpop.trf.xlu0
  %v1306 = vpop.trf.xlu0
  %v1307 = vpop.trf.xlu0
  %v1308 = vpop.trf.xlu0
  %v1309 = vpop.trf.xlu0
  %s1310 = scalar_lea.vmem %s4, 16
  %1311 = vst.msk [vmem:[%s1310] sm:$0xff] %vm489, %v1294
  %v1312 = vmul.f32 %v1274, %v494
  %v1313 = vmul.f32 %v1275, %v499
  %v1314 = vmul.f32 %v1276, %v504
  %v1315 = vmul.f32 %v1277, %v509
  %v1316 = vsel %vm515, %v1312, 0.0
  %v1317 = vsel %vm515, %v1313, 0.0
  %v1318 = vadd.f32 %v1316, %v1317
  %v1319 = vsel %vm515, %v1314, 0.0
  %v1320 = vadd.f32 %v1318, %v1319
  %v1321 = vsel %vm515, %v1315, 0.0
  %v1322 = vadd.f32 %v1320, %v1321
  %v1323 = vrot.slane %v1322, 4
  %v1324 = vadd.f32 %v1322, %v1323
  %v1325 = vrot.slane %v1324, 2
  %v1326 = vadd.f32 %v1324, %v1325
  %v1327 = vrot.slane %v1326, 1
  %v1328 = vadd.f32 %v1326, %v1327
  %v1329 = vld [vmem:[%s0 + $0x3] sm:$0x1]
  %v1330 = vlaneseq
  %v1331 = vshrl.u32 %v1330, 7
  %v1332 = vsub.s32 0, %v1331
  %v1333 = vrot.slane %v1329, %v1332
  %vm1334 = vcmp.eq.s32.totalorder %v20, %v1333
  %vm1335 = vcmp.eq.s32.totalorder %v21, %v1333
  %vm1336 = vcmp.eq.s32.totalorder %v22, %v1333
  %vm1337 = vcmp.eq.s32.totalorder %v23, %v1333
  %vm1338 = vcmp.eq.s32.totalorder %v24, %v1333
  %vm1339 = vcmp.eq.s32.totalorder %v25, %v1333
  %vm1340 = vcmp.eq.s32.totalorder %v26, %v1333
  %v1341 = vsel %vm1334, 1, 0
  %v1342 = vsel %vm1335, 1, 0
  %v1343 = vsel %vm1336, 1, 0
  %v1344 = vsel %vm1337, 1, 0
  %v1345 = vsel %vm1338, 1, 0
  %v1346 = vsel %vm1339, 1, 0
  %v1347 = vsel %vm1340, 1, 0
  %v1348 = vcvt.s32.f32 %v1341
  %v1349 = vcvt.s32.f32 %v1342
  %v1350 = vcvt.s32.f32 %v1343
  %v1351 = vcvt.s32.f32 %v1344
  %v1352 = vcvt.s32.f32 %v1345
  %v1353 = vcvt.s32.f32 %v1346
  %v1354 = vcvt.s32.f32 %v1347
  %1355 = vmatprep.subr.mxu0 0.0
  %1356 = vmatpush1.msra.mxu0 0.0
  %1357 = vmatprep.subr.mxu0 0.0
  %1358 = vmatpush1.msra.mxu0 0.0
  %1359 = vmatprep.subr.mxu0 0.0
  %1360 = vmatpush1.msra.mxu0 0.0
  %1361 = vmatprep.subr.mxu0 0.0
  %1362 = vmatpush1.msra.mxu0 0.0
  %1363 = vmatprep.subr.mxu0 0.0
  %1364 = vmatpush1.msra.mxu0 0.0
  %1365 = vmatprep.subr.mxu0 0.0
  %1366 = vmatpush1.msra.mxu0 0.0
  %1367 = vmatprep.subr.mxu0 0.0
  %1368 = vmatpush1.msra.mxu0 0.0
  %1369 = vmatprep.subr.mxu0 0.0
  %1370 = vmatpush1.msra.mxu0 0.0
  %1371 = vmatprep.subr.mxu0 0.0
  %1372 = vmatpush1.msra.mxu0 0.0
  %1373 = vmatprep.subr.mxu0 0.0
  %1374 = vmatpush1.msra.mxu0 %v1354
  %1375 = vmatprep.subr.mxu0 0.0
  %1376 = vmatpush1.msra.mxu0 %v1353
  %1377 = vmatprep.subr.mxu0 0.0
  %1378 = vmatpush1.msra.mxu0 %v1352
  %1379 = vmatprep.subr.mxu0 0.0
  %1380 = vmatpush1.msra.mxu0 %v1351
  %1381 = vmatprep.subr.mxu0 0.0
  %1382 = vmatpush1.msra.mxu0 %v1350
  %1383 = vmatprep.subr.mxu0 0.0
  %1384 = vmatpush1.msra.mxu0 %v1349
  %1385 = vmatprep.subr.mxu0 0.0
  %1386 = vmatpush1.msra.mxu0 %v1348
  %1387 = vmatprep.subr.mxu0 0.0
  %1388 = vmatpush2.msra.mxu0 0.0
  %1389 = vmatprep.subr.mxu0 0.0
  %1390 = vmatpush2.msra.mxu0 0.0
  %1391 = vmatprep.subr.mxu0 0.0
  %1392 = vmatpush2.msra.mxu0 0.0
  %1393 = vmatprep.subr.mxu0 0.0
  %1394 = vmatpush2.msra.mxu0 0.0
  %1395 = vmatprep.subr.mxu0 0.0
  %1396 = vmatpush2.msra.mxu0 0.0
  %1397 = vmatprep.subr.mxu0 0.0
  %1398 = vmatpush2.msra.mxu0 0.0
  %1399 = vmatprep.subr.mxu0 0.0
  %1400 = vmatpush2.msra.mxu0 0.0
  %1401 = vmatprep.subr.mxu0 0.0
  %1402 = vmatpush2.msra.mxu0 0.0
  %1403 = vmatprep.subr.mxu0 0.0
  %1404 = vmatpush2.msra.mxu0 0.0
  %1405 = vmatprep.subr.mxu0 0.0
  %1406 = vmatpush2.msra.mxu0 0.0
  %1407 = vmatprep.subr.mxu0 0.0
  %1408 = vmatpush2.msra.mxu0 0.0
  %1409 = vmatprep.subr.mxu0 0.0
  %1410 = vmatpush2.msra.mxu0 0.0
  %1411 = vmatprep.subr.mxu0 0.0
  %1412 = vmatpush2.msra.mxu0 0.0
  %1413 = vmatprep.subr.mxu0 0.0
  %1414 = vmatpush2.msra.mxu0 0.0
  %1415 = vmatprep.subr.mxu0 0.0
  %1416 = vmatpush2.msra.mxu0 0.0
  %1417 = vmatprep.subr.mxu0 0.0
  %1418 = vmatpush2.msra.mxu0 0.0
  %1419 = vmatprep.mubr.f32.mxu0 0.0
  %1420 = vmatmul.mubr.f32.gmra.mxu0 %v77
  %v1421 = vpop.f32.mrf.mxu0
  %v1422 = vadd.f32 0.0, %v1421
  %v1423 = vpop.f32.mrf.mxu0
  %1424 = vmatprep.mubr.f32.mxu0 0.0
  %1425 = vmatmul.mubr.f32.gmra.mxu0 %v80
  %v1426 = vpop.f32.mrf.mxu0
  %v1427 = vadd.f32 0.0, %v1426
  %v1428 = vpop.f32.mrf.mxu0
  %1429 = vmatprep.mubr.f32.mxu0 0.0
  %1430 = vmatmul.mubr.f32.gmra.mxu0 %v83
  %v1431 = vpop.f32.mrf.mxu0
  %v1432 = vadd.f32 0.0, %v1431
  %v1433 = vpop.f32.mrf.mxu0
  %1434 = vmatprep.mubr.f32.mxu0 0.0
  %1435 = vmatmul.mubr.f32.gmra.mxu0 %v86
  %v1436 = vpop.f32.mrf.mxu0
  %v1437 = vadd.f32 0.0, %v1436
  %v1438 = vpop.f32.mrf.mxu0
  %1439 = vdwg.mxu0
  %v1440 = vadd.f32 %v176, %v1422
  %v1441 = vadd.f32 %v181, %v1427
  %v1442 = vadd.f32 %v186, %v1432
  %v1443 = vadd.f32 %v191, %v1437
  %v1444 = vld [vmem:[%s197 + $0x3] sm:$0x1]
  %v1445 = vlaneseq
  %v1446 = vshrl.u32 %v1445, 7
  %v1447 = vsub.s32 0, %v1446
  %v1448 = vrot.slane %v1444, %v1447
  %vm1449 = vcmp.eq.s32.totalorder %v20, %v1448
  %vm1450 = vcmp.eq.s32.totalorder %v21, %v1448
  %vm1451 = vcmp.eq.s32.totalorder %v22, %v1448
  %vm1452 = vcmp.eq.s32.totalorder %v23, %v1448
  %vm1453 = vcmp.eq.s32.totalorder %v24, %v1448
  %vm1454 = vcmp.eq.s32.totalorder %v25, %v1448
  %vm1455 = vcmp.eq.s32.totalorder %v26, %v1448
  %v1456 = vsel %vm1449, 1, 0
  %v1457 = vsel %vm1450, 1, 0
  %v1458 = vsel %vm1451, 1, 0
  %v1459 = vsel %vm1452, 1, 0
  %v1460 = vsel %vm1453, 1, 0
  %v1461 = vsel %vm1454, 1, 0
  %v1462 = vsel %vm1455, 1, 0
  %v1463 = vcvt.s32.f32 %v1456
  %v1464 = vcvt.s32.f32 %v1457
  %v1465 = vcvt.s32.f32 %v1458
  %v1466 = vcvt.s32.f32 %v1459
  %v1467 = vcvt.s32.f32 %v1460
  %v1468 = vcvt.s32.f32 %v1461
  %v1469 = vcvt.s32.f32 %v1462
  %1470 = vmatprep.subr.mxu0 0.0
  %1471 = vmatpush1.msra.mxu0 0.0
  %1472 = vmatprep.subr.mxu0 0.0
  %1473 = vmatpush1.msra.mxu0 0.0
  %1474 = vmatprep.subr.mxu0 0.0
  %1475 = vmatpush1.msra.mxu0 0.0
  %1476 = vmatprep.subr.mxu0 0.0
  %1477 = vmatpush1.msra.mxu0 0.0
  %1478 = vmatprep.subr.mxu0 0.0
  %1479 = vmatpush1.msra.mxu0 0.0
  %1480 = vmatprep.subr.mxu0 0.0
  %1481 = vmatpush1.msra.mxu0 0.0
  %1482 = vmatprep.subr.mxu0 0.0
  %1483 = vmatpush1.msra.mxu0 0.0
  %1484 = vmatprep.subr.mxu0 0.0
  %1485 = vmatpush1.msra.mxu0 0.0
  %1486 = vmatprep.subr.mxu0 0.0
  %1487 = vmatpush1.msra.mxu0 0.0
  %1488 = vmatprep.subr.mxu0 0.0
  %1489 = vmatpush1.msra.mxu0 %v1469
  %1490 = vmatprep.subr.mxu0 0.0
  %1491 = vmatpush1.msra.mxu0 %v1468
  %1492 = vmatprep.subr.mxu0 0.0
  %1493 = vmatpush1.msra.mxu0 %v1467
  %1494 = vmatprep.subr.mxu0 0.0
  %1495 = vmatpush1.msra.mxu0 %v1466
  %1496 = vmatprep.subr.mxu0 0.0
  %1497 = vmatpush1.msra.mxu0 %v1465
  %1498 = vmatprep.subr.mxu0 0.0
  %1499 = vmatpush1.msra.mxu0 %v1464
  %1500 = vmatprep.subr.mxu0 0.0
  %1501 = vmatpush1.msra.mxu0 %v1463
  %1502 = vmatprep.subr.mxu0 0.0
  %1503 = vmatpush2.msra.mxu0 0.0
  %1504 = vmatprep.subr.mxu0 0.0
  %1505 = vmatpush2.msra.mxu0 0.0
  %1506 = vmatprep.subr.mxu0 0.0
  %1507 = vmatpush2.msra.mxu0 0.0
  %1508 = vmatprep.subr.mxu0 0.0
  %1509 = vmatpush2.msra.mxu0 0.0
  %1510 = vmatprep.subr.mxu0 0.0
  %1511 = vmatpush2.msra.mxu0 0.0
  %1512 = vmatprep.subr.mxu0 0.0
  %1513 = vmatpush2.msra.mxu0 0.0
  %1514 = vmatprep.subr.mxu0 0.0
  %1515 = vmatpush2.msra.mxu0 0.0
  %1516 = vmatprep.subr.mxu0 0.0
  %1517 = vmatpush2.msra.mxu0 0.0
  %1518 = vmatprep.subr.mxu0 0.0
  %1519 = vmatpush2.msra.mxu0 0.0
  %1520 = vmatprep.subr.mxu0 0.0
  %1521 = vmatpush2.msra.mxu0 0.0
  %1522 = vmatprep.subr.mxu0 0.0
  %1523 = vmatpush2.msra.mxu0 0.0
  %1524 = vmatprep.subr.mxu0 0.0
  %1525 = vmatpush2.msra.mxu0 0.0
  %1526 = vmatprep.subr.mxu0 0.0
  %1527 = vmatpush2.msra.mxu0 0.0
  %1528 = vmatprep.subr.mxu0 0.0
  %1529 = vmatpush2.msra.mxu0 0.0
  %1530 = vmatprep.subr.mxu0 0.0
  %1531 = vmatpush2.msra.mxu0 0.0
  %1532 = vmatprep.subr.mxu0 0.0
  %1533 = vmatpush2.msra.mxu0 0.0
  %1534 = vmatprep.mubr.f32.mxu0 0.0
  %1535 = vmatmul.mubr.f32.gmra.mxu0 %v225
  %v1536 = vpop.f32.mrf.mxu0
  %v1537 = vadd.f32 0.0, %v1536
  %v1538 = vpop.f32.mrf.mxu0
  %1539 = vmatprep.mubr.f32.mxu0 0.0
  %1540 = vmatmul.mubr.f32.gmra.mxu0 %v228
  %v1541 = vpop.f32.mrf.mxu0
  %v1542 = vadd.f32 0.0, %v1541
  %v1543 = vpop.f32.mrf.mxu0
  %1544 = vmatprep.mubr.f32.mxu0 0.0
  %1545 = vmatmul.mubr.f32.gmra.mxu0 %v231
  %v1546 = vpop.f32.mrf.mxu0
  %v1547 = vadd.f32 0.0, %v1546
  %v1548 = vpop.f32.mrf.mxu0
  %1549 = vmatprep.mubr.f32.mxu0 0.0
  %1550 = vmatmul.mubr.f32.gmra.mxu0 %v234
  %v1551 = vpop.f32.mrf.mxu0
  %v1552 = vadd.f32 0.0, %v1551
  %v1553 = vpop.f32.mrf.mxu0
  %1554 = vdwg.mxu0
  %v1555 = vadd.f32 %v1440, %v1537
  %v1556 = vadd.f32 %v1441, %v1542
  %v1557 = vadd.f32 %v1442, %v1547
  %v1558 = vadd.f32 %v1443, %v1552
  %v1559 = vld [vmem:[%s325 + $0x3] sm:$0x1]
  %v1560 = vlaneseq
  %v1561 = vshrl.u32 %v1560, 7
  %v1562 = vsub.s32 0, %v1561
  %v1563 = vrot.slane %v1559, %v1562
  %vm1564 = vcmp.eq.s32.totalorder %v20, %v1563
  %vm1565 = vcmp.eq.s32.totalorder %v21, %v1563
  %vm1566 = vcmp.eq.s32.totalorder %v22, %v1563
  %vm1567 = vcmp.eq.s32.totalorder %v23, %v1563
  %vm1568 = vcmp.eq.s32.totalorder %v24, %v1563
  %vm1569 = vcmp.eq.s32.totalorder %v25, %v1563
  %vm1570 = vcmp.eq.s32.totalorder %v26, %v1563
  %v1571 = vsel %vm1564, 1, 0
  %v1572 = vsel %vm1565, 1, 0
  %v1573 = vsel %vm1566, 1, 0
  %v1574 = vsel %vm1567, 1, 0
  %v1575 = vsel %vm1568, 1, 0
  %v1576 = vsel %vm1569, 1, 0
  %v1577 = vsel %vm1570, 1, 0
  %v1578 = vcvt.s32.f32 %v1571
  %v1579 = vcvt.s32.f32 %v1572
  %v1580 = vcvt.s32.f32 %v1573
  %v1581 = vcvt.s32.f32 %v1574
  %v1582 = vcvt.s32.f32 %v1575
  %v1583 = vcvt.s32.f32 %v1576
  %v1584 = vcvt.s32.f32 %v1577
  %1585 = vmatprep.subr.mxu0 0.0
  %1586 = vmatpush1.msra.mxu0 0.0
  %1587 = vmatprep.subr.mxu0 0.0
  %1588 = vmatpush1.msra.mxu0 0.0
  %1589 = vmatprep.subr.mxu0 0.0
  %1590 = vmatpush1.msra.mxu0 0.0
  %1591 = vmatprep.subr.mxu0 0.0
  %1592 = vmatpush1.msra.mxu0 0.0
  %1593 = vmatprep.subr.mxu0 0.0
  %1594 = vmatpush1.msra.mxu0 0.0
  %1595 = vmatprep.subr.mxu0 0.0
  %1596 = vmatpush1.msra.mxu0 0.0
  %1597 = vmatprep.subr.mxu0 0.0
  %1598 = vmatpush1.msra.mxu0 0.0
  %1599 = vmatprep.subr.mxu0 0.0
  %1600 = vmatpush1.msra.mxu0 0.0
  %1601 = vmatprep.subr.mxu0 0.0
  %1602 = vmatpush1.msra.mxu0 0.0
  %1603 = vmatprep.subr.mxu0 0.0
  %1604 = vmatpush1.msra.mxu0 %v1584
  %1605 = vmatprep.subr.mxu0 0.0
  %1606 = vmatpush1.msra.mxu0 %v1583
  %1607 = vmatprep.subr.mxu0 0.0
  %1608 = vmatpush1.msra.mxu0 %v1582
  %1609 = vmatprep.subr.mxu0 0.0
  %1610 = vmatpush1.msra.mxu0 %v1581
  %1611 = vmatprep.subr.mxu0 0.0
  %1612 = vmatpush1.msra.mxu0 %v1580
  %1613 = vmatprep.subr.mxu0 0.0
  %1614 = vmatpush1.msra.mxu0 %v1579
  %1615 = vmatprep.subr.mxu0 0.0
  %1616 = vmatpush1.msra.mxu0 %v1578
  %1617 = vmatprep.subr.mxu0 0.0
  %1618 = vmatpush2.msra.mxu0 0.0
  %1619 = vmatprep.subr.mxu0 0.0
  %1620 = vmatpush2.msra.mxu0 0.0
  %1621 = vmatprep.subr.mxu0 0.0
  %1622 = vmatpush2.msra.mxu0 0.0
  %1623 = vmatprep.subr.mxu0 0.0
  %1624 = vmatpush2.msra.mxu0 0.0
  %1625 = vmatprep.subr.mxu0 0.0
  %1626 = vmatpush2.msra.mxu0 0.0
  %1627 = vmatprep.subr.mxu0 0.0
  %1628 = vmatpush2.msra.mxu0 0.0
  %1629 = vmatprep.subr.mxu0 0.0
  %1630 = vmatpush2.msra.mxu0 0.0
  %1631 = vmatprep.subr.mxu0 0.0
  %1632 = vmatpush2.msra.mxu0 0.0
  %1633 = vmatprep.subr.mxu0 0.0
  %1634 = vmatpush2.msra.mxu0 0.0
  %1635 = vmatprep.subr.mxu0 0.0
  %1636 = vmatpush2.msra.mxu0 0.0
  %1637 = vmatprep.subr.mxu0 0.0
  %1638 = vmatpush2.msra.mxu0 0.0
  %1639 = vmatprep.subr.mxu0 0.0
  %1640 = vmatpush2.msra.mxu0 0.0
  %1641 = vmatprep.subr.mxu0 0.0
  %1642 = vmatpush2.msra.mxu0 0.0
  %1643 = vmatprep.subr.mxu0 0.0
  %1644 = vmatpush2.msra.mxu0 0.0
  %1645 = vmatprep.subr.mxu0 0.0
  %1646 = vmatpush2.msra.mxu0 0.0
  %1647 = vmatprep.subr.mxu0 0.0
  %1648 = vmatpush2.msra.mxu0 0.0
  %1649 = vmatprep.mubr.f32.mxu0 0.0
  %1650 = vmatmul.mubr.f32.gmra.mxu0 %v353
  %v1651 = vpop.f32.mrf.mxu0
  %v1652 = vadd.f32 0.0, %v1651
  %v1653 = vpop.f32.mrf.mxu0
  %1654 = vmatprep.mubr.f32.mxu0 0.0
  %1655 = vmatmul.mubr.f32.gmra.mxu0 %v356
  %v1656 = vpop.f32.mrf.mxu0
  %v1657 = vadd.f32 0.0, %v1656
  %v1658 = vpop.f32.mrf.mxu0
  %1659 = vmatprep.mubr.f32.mxu0 0.0
  %1660 = vmatmul.mubr.f32.gmra.mxu0 %v359
  %v1661 = vpop.f32.mrf.mxu0
  %v1662 = vadd.f32 0.0, %v1661
  %v1663 = vpop.f32.mrf.mxu0
  %1664 = vmatprep.mubr.f32.mxu0 0.0
  %1665 = vmatmul.mubr.f32.gmra.mxu0 %v362
  %v1666 = vpop.f32.mrf.mxu0
  %v1667 = vadd.f32 0.0, %v1666
  %v1668 = vpop.f32.mrf.mxu0
  %1669 = vdwg.mxu0
  %v1670 = vadd.f32 %v1555, %v1652
  %v1671 = vadd.f32 %v1556, %v1657
  %v1672 = vadd.f32 %v1557, %v1662
  %v1673 = vadd.f32 %v1558, %v1667
  %v1674 = vmax.f32 %v1670, 0.0
  %v1675 = vmax.f32 %v1671, 0.0
  %v1676 = vmax.f32 %v1672, 0.0
  %v1677 = vmax.f32 %v1673, 0.0
  %1678 = vxpose.xlu0.b32.start [1/16] %v1674, 128
  %1679 = vxpose.xlu0.b32.cont [2/16] %v1675, 128
  %1680 = vxpose.xlu0.b32.cont [3/16] %v1676, 128
  %1681 = vxpose.xlu0.b32.cont [4/16] %v1677, 128
  %1682 = vxpose.xlu0.b32.cont [5/16] 0.0, 128
  %1683 = vxpose.xlu0.b32.cont [6/16] 0.0, 128
  %1684 = vxpose.xlu0.b32.cont [7/16] 0.0, 128
  %1685 = vxpose.xlu0.b32.cont [8/16] 0.0, 128
  %1686 = vxpose.xlu0.b32.cont [9/16] 0.0, 128
  %1687 = vxpose.xlu0.b32.cont [10/16] 0.0, 128
  %1688 = vxpose.xlu0.b32.cont [11/16] 0.0, 128
  %1689 = vxpose.xlu0.b32.cont [12/16] 0.0, 128
  %1690 = vxpose.xlu0.b32.cont [13/16] 0.0, 128
  %1691 = vxpose.xlu0.b32.cont [14/16] 0.0, 128
  %1692 = vxpose.xlu0.b32.cont [15/16] 0.0, 128
  %1693 = vxpose.xlu0.b32.end [16/16] 0.0, 128
  %v1694 = vpop.trf.xlu0
  %v1695 = vpop.trf.xlu0
  %v1696 = vpop.trf.xlu0
  %v1697 = vpop.trf.xlu0
  %v1698 = vpop.trf.xlu0
  %v1699 = vpop.trf.xlu0
  %v1700 = vpop.trf.xlu0
  %v1701 = vpop.trf.xlu0
  %v1702 = vpop.trf.xlu0
  %v1703 = vpop.trf.xlu0
  %v1704 = vpop.trf.xlu0
  %v1705 = vpop.trf.xlu0
  %v1706 = vpop.trf.xlu0
  %v1707 = vpop.trf.xlu0
  %v1708 = vpop.trf.xlu0
  %v1709 = vpop.trf.xlu0
  %s1710 = scalar_lea.vmem %s4, 24
  %1711 = vst.msk [vmem:[%s1710] sm:$0xff] %vm489, %v1694
  %v1712 = vmul.f32 %v1674, %v494
  %v1713 = vmul.f32 %v1675, %v499
  %v1714 = vmul.f32 %v1676, %v504
  %v1715 = vmul.f32 %v1677, %v509
  %v1716 = vsel %vm515, %v1712, 0.0
  %v1717 = vsel %vm515, %v1713, 0.0
  %v1718 = vadd.f32 %v1716, %v1717
  %v1719 = vsel %vm515, %v1714, 0.0
  %v1720 = vadd.f32 %v1718, %v1719
  %v1721 = vsel %vm515, %v1715, 0.0
  %v1722 = vadd.f32 %v1720, %v1721
  %v1723 = vrot.slane %v1722, 4
  %v1724 = vadd.f32 %v1722, %v1723
  %v1725 = vrot.slane %v1724, 2
  %v1726 = vadd.f32 %v1724, %v1725
  %v1727 = vrot.slane %v1726, 1
  %v1728 = vadd.f32 %v1726, %v1727
  %v1729 = vld [vmem:[%s0 + $0x4] sm:$0x1]
  %v1730 = vlaneseq
  %v1731 = vshrl.u32 %v1730, 7
  %v1732 = vsub.s32 0, %v1731
  %v1733 = vrot.slane %v1729, %v1732
  %vm1734 = vcmp.eq.s32.totalorder %v20, %v1733
  %vm1735 = vcmp.eq.s32.totalorder %v21, %v1733
  %vm1736 = vcmp.eq.s32.totalorder %v22, %v1733
  %vm1737 = vcmp.eq.s32.totalorder %v23, %v1733
  %vm1738 = vcmp.eq.s32.totalorder %v24, %v1733
  %vm1739 = vcmp.eq.s32.totalorder %v25, %v1733
  %vm1740 = vcmp.eq.s32.totalorder %v26, %v1733
  %v1741 = vsel %vm1734, 1, 0
  %v1742 = vsel %vm1735, 1, 0
  %v1743 = vsel %vm1736, 1, 0
  %v1744 = vsel %vm1737, 1, 0
  %v1745 = vsel %vm1738, 1, 0
  %v1746 = vsel %vm1739, 1, 0
  %v1747 = vsel %vm1740, 1, 0
  %v1748 = vcvt.s32.f32 %v1741
  %v1749 = vcvt.s32.f32 %v1742
  %v1750 = vcvt.s32.f32 %v1743
  %v1751 = vcvt.s32.f32 %v1744
  %v1752 = vcvt.s32.f32 %v1745
  %v1753 = vcvt.s32.f32 %v1746
  %v1754 = vcvt.s32.f32 %v1747
  %1755 = vmatprep.subr.mxu0 0.0
  %1756 = vmatpush1.msra.mxu0 0.0
  %1757 = vmatprep.subr.mxu0 0.0
  %1758 = vmatpush1.msra.mxu0 0.0
  %1759 = vmatprep.subr.mxu0 0.0
  %1760 = vmatpush1.msra.mxu0 0.0
  %1761 = vmatprep.subr.mxu0 0.0
  %1762 = vmatpush1.msra.mxu0 0.0
  %1763 = vmatprep.subr.mxu0 0.0
  %1764 = vmatpush1.msra.mxu0 0.0
  %1765 = vmatprep.subr.mxu0 0.0
  %1766 = vmatpush1.msra.mxu0 0.0
  %1767 = vmatprep.subr.mxu0 0.0
  %1768 = vmatpush1.msra.mxu0 0.0
  %1769 = vmatprep.subr.mxu0 0.0
  %1770 = vmatpush1.msra.mxu0 0.0
  %1771 = vmatprep.subr.mxu0 0.0
  %1772 = vmatpush1.msra.mxu0 0.0
  %1773 = vmatprep.subr.mxu0 0.0
  %1774 = vmatpush1.msra.mxu0 %v1754
  %1775 = vmatprep.subr.mxu0 0.0
  %1776 = vmatpush1.msra.mxu0 %v1753
  %1777 = vmatprep.subr.mxu0 0.0
  %1778 = vmatpush1.msra.mxu0 %v1752
  %1779 = vmatprep.subr.mxu0 0.0
  %1780 = vmatpush1.msra.mxu0 %v1751
  %1781 = vmatprep.subr.mxu0 0.0
  %1782 = vmatpush1.msra.mxu0 %v1750
  %1783 = vmatprep.subr.mxu0 0.0
  %1784 = vmatpush1.msra.mxu0 %v1749
  %1785 = vmatprep.subr.mxu0 0.0
  %1786 = vmatpush1.msra.mxu0 %v1748
  %1787 = vmatprep.subr.mxu0 0.0
  %1788 = vmatpush2.msra.mxu0 0.0
  %1789 = vmatprep.subr.mxu0 0.0
  %1790 = vmatpush2.msra.mxu0 0.0
  %1791 = vmatprep.subr.mxu0 0.0
  %1792 = vmatpush2.msra.mxu0 0.0
  %1793 = vmatprep.subr.mxu0 0.0
  %1794 = vmatpush2.msra.mxu0 0.0
  %1795 = vmatprep.subr.mxu0 0.0
  %1796 = vmatpush2.msra.mxu0 0.0
  %1797 = vmatprep.subr.mxu0 0.0
  %1798 = vmatpush2.msra.mxu0 0.0
  %1799 = vmatprep.subr.mxu0 0.0
  %1800 = vmatpush2.msra.mxu0 0.0
  %1801 = vmatprep.subr.mxu0 0.0
  %1802 = vmatpush2.msra.mxu0 0.0
  %1803 = vmatprep.subr.mxu0 0.0
  %1804 = vmatpush2.msra.mxu0 0.0
  %1805 = vmatprep.subr.mxu0 0.0
  %1806 = vmatpush2.msra.mxu0 0.0
  %1807 = vmatprep.subr.mxu0 0.0
  %1808 = vmatpush2.msra.mxu0 0.0
  %1809 = vmatprep.subr.mxu0 0.0
  %1810 = vmatpush2.msra.mxu0 0.0
  %1811 = vmatprep.subr.mxu0 0.0
  %1812 = vmatpush2.msra.mxu0 0.0
  %1813 = vmatprep.subr.mxu0 0.0
  %1814 = vmatpush2.msra.mxu0 0.0
  %1815 = vmatprep.subr.mxu0 0.0
  %1816 = vmatpush2.msra.mxu0 0.0
  %1817 = vmatprep.subr.mxu0 0.0
  %1818 = vmatpush2.msra.mxu0 0.0
  %1819 = vmatprep.mubr.f32.mxu0 0.0
  %1820 = vmatmul.mubr.f32.gmra.mxu0 %v77
  %v1821 = vpop.f32.mrf.mxu0
  %v1822 = vadd.f32 0.0, %v1821
  %v1823 = vpop.f32.mrf.mxu0
  %1824 = vmatprep.mubr.f32.mxu0 0.0
  %1825 = vmatmul.mubr.f32.gmra.mxu0 %v80
  %v1826 = vpop.f32.mrf.mxu0
  %v1827 = vadd.f32 0.0, %v1826
  %v1828 = vpop.f32.mrf.mxu0
  %1829 = vmatprep.mubr.f32.mxu0 0.0
  %1830 = vmatmul.mubr.f32.gmra.mxu0 %v83
  %v1831 = vpop.f32.mrf.mxu0
  %v1832 = vadd.f32 0.0, %v1831
  %v1833 = vpop.f32.mrf.mxu0
  %1834 = vmatprep.mubr.f32.mxu0 0.0
  %1835 = vmatmul.mubr.f32.gmra.mxu0 %v86
  %v1836 = vpop.f32.mrf.mxu0
  %v1837 = vadd.f32 0.0, %v1836
  %v1838 = vpop.f32.mrf.mxu0
  %1839 = vdwg.mxu0
  %v1840 = vadd.f32 %v176, %v1822
  %v1841 = vadd.f32 %v181, %v1827
  %v1842 = vadd.f32 %v186, %v1832
  %v1843 = vadd.f32 %v191, %v1837
  %v1844 = vld [vmem:[%s197 + $0x4] sm:$0x1]
  %v1845 = vlaneseq
  %v1846 = vshrl.u32 %v1845, 7
  %v1847 = vsub.s32 0, %v1846
  %v1848 = vrot.slane %v1844, %v1847
  %vm1849 = vcmp.eq.s32.totalorder %v20, %v1848
  %vm1850 = vcmp.eq.s32.totalorder %v21, %v1848
  %vm1851 = vcmp.eq.s32.totalorder %v22, %v1848
  %vm1852 = vcmp.eq.s32.totalorder %v23, %v1848
  %vm1853 = vcmp.eq.s32.totalorder %v24, %v1848
  %vm1854 = vcmp.eq.s32.totalorder %v25, %v1848
  %vm1855 = vcmp.eq.s32.totalorder %v26, %v1848
  %v1856 = vsel %vm1849, 1, 0
  %v1857 = vsel %vm1850, 1, 0
  %v1858 = vsel %vm1851, 1, 0
  %v1859 = vsel %vm1852, 1, 0
  %v1860 = vsel %vm1853, 1, 0
  %v1861 = vsel %vm1854, 1, 0
  %v1862 = vsel %vm1855, 1, 0
  %v1863 = vcvt.s32.f32 %v1856
  %v1864 = vcvt.s32.f32 %v1857
  %v1865 = vcvt.s32.f32 %v1858
  %v1866 = vcvt.s32.f32 %v1859
  %v1867 = vcvt.s32.f32 %v1860
  %v1868 = vcvt.s32.f32 %v1861
  %v1869 = vcvt.s32.f32 %v1862
  %1870 = vmatprep.subr.mxu0 0.0
  %1871 = vmatpush1.msra.mxu0 0.0
  %1872 = vmatprep.subr.mxu0 0.0
  %1873 = vmatpush1.msra.mxu0 0.0
  %1874 = vmatprep.subr.mxu0 0.0
  %1875 = vmatpush1.msra.mxu0 0.0
  %1876 = vmatprep.subr.mxu0 0.0
  %1877 = vmatpush1.msra.mxu0 0.0
  %1878 = vmatprep.subr.mxu0 0.0
  %1879 = vmatpush1.msra.mxu0 0.0
  %1880 = vmatprep.subr.mxu0 0.0
  %1881 = vmatpush1.msra.mxu0 0.0
  %1882 = vmatprep.subr.mxu0 0.0
  %1883 = vmatpush1.msra.mxu0 0.0
  %1884 = vmatprep.subr.mxu0 0.0
  %1885 = vmatpush1.msra.mxu0 0.0
  %1886 = vmatprep.subr.mxu0 0.0
  %1887 = vmatpush1.msra.mxu0 0.0
  %1888 = vmatprep.subr.mxu0 0.0
  %1889 = vmatpush1.msra.mxu0 %v1869
  %1890 = vmatprep.subr.mxu0 0.0
  %1891 = vmatpush1.msra.mxu0 %v1868
  %1892 = vmatprep.subr.mxu0 0.0
  %1893 = vmatpush1.msra.mxu0 %v1867
  %1894 = vmatprep.subr.mxu0 0.0
  %1895 = vmatpush1.msra.mxu0 %v1866
  %1896 = vmatprep.subr.mxu0 0.0
  %1897 = vmatpush1.msra.mxu0 %v1865
  %1898 = vmatprep.subr.mxu0 0.0
  %1899 = vmatpush1.msra.mxu0 %v1864
  %1900 = vmatprep.subr.mxu0 0.0
  %1901 = vmatpush1.msra.mxu0 %v1863
  %1902 = vmatprep.subr.mxu0 0.0
  %1903 = vmatpush2.msra.mxu0 0.0
  %1904 = vmatprep.subr.mxu0 0.0
  %1905 = vmatpush2.msra.mxu0 0.0
  %1906 = vmatprep.subr.mxu0 0.0
  %1907 = vmatpush2.msra.mxu0 0.0
  %1908 = vmatprep.subr.mxu0 0.0
  %1909 = vmatpush2.msra.mxu0 0.0
  %1910 = vmatprep.subr.mxu0 0.0
  %1911 = vmatpush2.msra.mxu0 0.0
  %1912 = vmatprep.subr.mxu0 0.0
  %1913 = vmatpush2.msra.mxu0 0.0
  %1914 = vmatprep.subr.mxu0 0.0
  %1915 = vmatpush2.msra.mxu0 0.0
  %1916 = vmatprep.subr.mxu0 0.0
  %1917 = vmatpush2.msra.mxu0 0.0
  %1918 = vmatprep.subr.mxu0 0.0
  %1919 = vmatpush2.msra.mxu0 0.0
  %1920 = vmatprep.subr.mxu0 0.0
  %1921 = vmatpush2.msra.mxu0 0.0
  %1922 = vmatprep.subr.mxu0 0.0
  %1923 = vmatpush2.msra.mxu0 0.0
  %1924 = vmatprep.subr.mxu0 0.0
  %1925 = vmatpush2.msra.mxu0 0.0
  %1926 = vmatprep.subr.mxu0 0.0
  %1927 = vmatpush2.msra.mxu0 0.0
  %1928 = vmatprep.subr.mxu0 0.0
  %1929 = vmatpush2.msra.mxu0 0.0
  %1930 = vmatprep.subr.mxu0 0.0
  %1931 = vmatpush2.msra.mxu0 0.0
  %1932 = vmatprep.subr.mxu0 0.0
  %1933 = vmatpush2.msra.mxu0 0.0
  %1934 = vmatprep.mubr.f32.mxu0 0.0
  %1935 = vmatmul.mubr.f32.gmra.mxu0 %v225
  %v1936 = vpop.f32.mrf.mxu0
  %v1937 = vadd.f32 0.0, %v1936
  %v1938 = vpop.f32.mrf.mxu0
  %1939 = vmatprep.mubr.f32.mxu0 0.0
  %1940 = vmatmul.mubr.f32.gmra.mxu0 %v228
  %v1941 = vpop.f32.mrf.mxu0
  %v1942 = vadd.f32 0.0, %v1941
  %v1943 = vpop.f32.mrf.mxu0
  %1944 = vmatprep.mubr.f32.mxu0 0.0
  %1945 = vmatmul.mubr.f32.gmra.mxu0 %v231
  %v1946 = vpop.f32.mrf.mxu0
  %v1947 = vadd.f32 0.0, %v1946
  %v1948 = vpop.f32.mrf.mxu0
  %1949 = vmatprep.mubr.f32.mxu0 0.0
  %1950 = vmatmul.mubr.f32.gmra.mxu0 %v234
  %v1951 = vpop.f32.mrf.mxu0
  %v1952 = vadd.f32 0.0, %v1951
  %v1953 = vpop.f32.mrf.mxu0
  %1954 = vdwg.mxu0
  %v1955 = vadd.f32 %v1840, %v1937
  %v1956 = vadd.f32 %v1841, %v1942
  %v1957 = vadd.f32 %v1842, %v1947
  %v1958 = vadd.f32 %v1843, %v1952
  %v1959 = vld [vmem:[%s325 + $0x4] sm:$0x1]
  %v1960 = vlaneseq
  %v1961 = vshrl.u32 %v1960, 7
  %v1962 = vsub.s32 0, %v1961
  %v1963 = vrot.slane %v1959, %v1962
  %vm1964 = vcmp.eq.s32.totalorder %v20, %v1963
  %vm1965 = vcmp.eq.s32.totalorder %v21, %v1963
  %vm1966 = vcmp.eq.s32.totalorder %v22, %v1963
  %vm1967 = vcmp.eq.s32.totalorder %v23, %v1963
  %vm1968 = vcmp.eq.s32.totalorder %v24, %v1963
  %vm1969 = vcmp.eq.s32.totalorder %v25, %v1963
  %vm1970 = vcmp.eq.s32.totalorder %v26, %v1963
  %v1971 = vsel %vm1964, 1, 0
  %v1972 = vsel %vm1965, 1, 0
  %v1973 = vsel %vm1966, 1, 0
  %v1974 = vsel %vm1967, 1, 0
  %v1975 = vsel %vm1968, 1, 0
  %v1976 = vsel %vm1969, 1, 0
  %v1977 = vsel %vm1970, 1, 0
  %v1978 = vcvt.s32.f32 %v1971
  %v1979 = vcvt.s32.f32 %v1972
  %v1980 = vcvt.s32.f32 %v1973
  %v1981 = vcvt.s32.f32 %v1974
  %v1982 = vcvt.s32.f32 %v1975
  %v1983 = vcvt.s32.f32 %v1976
  %v1984 = vcvt.s32.f32 %v1977
  %1985 = vmatprep.subr.mxu0 0.0
  %1986 = vmatpush1.msra.mxu0 0.0
  %1987 = vmatprep.subr.mxu0 0.0
  %1988 = vmatpush1.msra.mxu0 0.0
  %1989 = vmatprep.subr.mxu0 0.0
  %1990 = vmatpush1.msra.mxu0 0.0
  %1991 = vmatprep.subr.mxu0 0.0
  %1992 = vmatpush1.msra.mxu0 0.0
  %1993 = vmatprep.subr.mxu0 0.0
  %1994 = vmatpush1.msra.mxu0 0.0
  %1995 = vmatprep.subr.mxu0 0.0
  %1996 = vmatpush1.msra.mxu0 0.0
  %1997 = vmatprep.subr.mxu0 0.0
  %1998 = vmatpush1.msra.mxu0 0.0
  %1999 = vmatprep.subr.mxu0 0.0
  %2000 = vmatpush1.msra.mxu0 0.0
  %2001 = vmatprep.subr.mxu0 0.0
  %2002 = vmatpush1.msra.mxu0 0.0
  %2003 = vmatprep.subr.mxu0 0.0
  %2004 = vmatpush1.msra.mxu0 %v1984
  %2005 = vmatprep.subr.mxu0 0.0
  %2006 = vmatpush1.msra.mxu0 %v1983
  %2007 = vmatprep.subr.mxu0 0.0
  %2008 = vmatpush1.msra.mxu0 %v1982
  %2009 = vmatprep.subr.mxu0 0.0
  %2010 = vmatpush1.msra.mxu0 %v1981
  %2011 = vmatprep.subr.mxu0 0.0
  %2012 = vmatpush1.msra.mxu0 %v1980
  %2013 = vmatprep.subr.mxu0 0.0
  %2014 = vmatpush1.msra.mxu0 %v1979
  %2015 = vmatprep.subr.mxu0 0.0
  %2016 = vmatpush1.msra.mxu0 %v1978
  %2017 = vmatprep.subr.mxu0 0.0
  %2018 = vmatpush2.msra.mxu0 0.0
  %2019 = vmatprep.subr.mxu0 0.0
  %2020 = vmatpush2.msra.mxu0 0.0
  %2021 = vmatprep.subr.mxu0 0.0
  %2022 = vmatpush2.msra.mxu0 0.0
  %2023 = vmatprep.subr.mxu0 0.0
  %2024 = vmatpush2.msra.mxu0 0.0
  %2025 = vmatprep.subr.mxu0 0.0
  %2026 = vmatpush2.msra.mxu0 0.0
  %2027 = vmatprep.subr.mxu0 0.0
  %2028 = vmatpush2.msra.mxu0 0.0
  %2029 = vmatprep.subr.mxu0 0.0
  %2030 = vmatpush2.msra.mxu0 0.0
  %2031 = vmatprep.subr.mxu0 0.0
  %2032 = vmatpush2.msra.mxu0 0.0
  %2033 = vmatprep.subr.mxu0 0.0
  %2034 = vmatpush2.msra.mxu0 0.0
  %2035 = vmatprep.subr.mxu0 0.0
  %2036 = vmatpush2.msra.mxu0 0.0
  %2037 = vmatprep.subr.mxu0 0.0
  %2038 = vmatpush2.msra.mxu0 0.0
  %2039 = vmatprep.subr.mxu0 0.0
  %2040 = vmatpush2.msra.mxu0 0.0
  %2041 = vmatprep.subr.mxu0 0.0
  %2042 = vmatpush2.msra.mxu0 0.0
  %2043 = vmatprep.subr.mxu0 0.0
  %2044 = vmatpush2.msra.mxu0 0.0
  %2045 = vmatprep.subr.mxu0 0.0
  %2046 = vmatpush2.msra.mxu0 0.0
  %2047 = vmatprep.subr.mxu0 0.0
  %2048 = vmatpush2.msra.mxu0 0.0
  %2049 = vmatprep.mubr.f32.mxu0 0.0
  %2050 = vmatmul.mubr.f32.gmra.mxu0 %v353
  %v2051 = vpop.f32.mrf.mxu0
  %v2052 = vadd.f32 0.0, %v2051
  %v2053 = vpop.f32.mrf.mxu0
  %2054 = vmatprep.mubr.f32.mxu0 0.0
  %2055 = vmatmul.mubr.f32.gmra.mxu0 %v356
  %v2056 = vpop.f32.mrf.mxu0
  %v2057 = vadd.f32 0.0, %v2056
  %v2058 = vpop.f32.mrf.mxu0
  %2059 = vmatprep.mubr.f32.mxu0 0.0
  %2060 = vmatmul.mubr.f32.gmra.mxu0 %v359
  %v2061 = vpop.f32.mrf.mxu0
  %v2062 = vadd.f32 0.0, %v2061
  %v2063 = vpop.f32.mrf.mxu0
  %2064 = vmatprep.mubr.f32.mxu0 0.0
  %2065 = vmatmul.mubr.f32.gmra.mxu0 %v362
  %v2066 = vpop.f32.mrf.mxu0
  %v2067 = vadd.f32 0.0, %v2066
  %v2068 = vpop.f32.mrf.mxu0
  %2069 = vdwg.mxu0
  %v2070 = vadd.f32 %v1955, %v2052
  %v2071 = vadd.f32 %v1956, %v2057
  %v2072 = vadd.f32 %v1957, %v2062
  %v2073 = vadd.f32 %v1958, %v2067
  %v2074 = vmax.f32 %v2070, 0.0
  %v2075 = vmax.f32 %v2071, 0.0
  %v2076 = vmax.f32 %v2072, 0.0
  %v2077 = vmax.f32 %v2073, 0.0
  %2078 = vxpose.xlu0.b32.start [1/16] %v2074, 128
  %2079 = vxpose.xlu0.b32.cont [2/16] %v2075, 128
  %2080 = vxpose.xlu0.b32.cont [3/16] %v2076, 128
  %2081 = vxpose.xlu0.b32.cont [4/16] %v2077, 128
  %2082 = vxpose.xlu0.b32.cont [5/16] 0.0, 128
  %2083 = vxpose.xlu0.b32.cont [6/16] 0.0, 128
  %2084 = vxpose.xlu0.b32.cont [7/16] 0.0, 128
  %2085 = vxpose.xlu0.b32.cont [8/16] 0.0, 128
  %2086 = vxpose.xlu0.b32.cont [9/16] 0.0, 128
  %2087 = vxpose.xlu0.b32.cont [10/16] 0.0, 128
  %2088 = vxpose.xlu0.b32.cont [11/16] 0.0, 128
  %2089 = vxpose.xlu0.b32.cont [12/16] 0.0, 128
  %2090 = vxpose.xlu0.b32.cont [13/16] 0.0, 128
  %2091 = vxpose.xlu0.b32.cont [14/16] 0.0, 128
  %2092 = vxpose.xlu0.b32.cont [15/16] 0.0, 128
  %2093 = vxpose.xlu0.b32.end [16/16] 0.0, 128
  %v2094 = vpop.trf.xlu0
  %v2095 = vpop.trf.xlu0
  %v2096 = vpop.trf.xlu0
  %v2097 = vpop.trf.xlu0
  %v2098 = vpop.trf.xlu0
  %v2099 = vpop.trf.xlu0
  %v2100 = vpop.trf.xlu0
  %v2101 = vpop.trf.xlu0
  %v2102 = vpop.trf.xlu0
  %v2103 = vpop.trf.xlu0
  %v2104 = vpop.trf.xlu0
  %v2105 = vpop.trf.xlu0
  %v2106 = vpop.trf.xlu0
  %v2107 = vpop.trf.xlu0
  %v2108 = vpop.trf.xlu0
  %v2109 = vpop.trf.xlu0
  %s2110 = scalar_lea.vmem %s4, 32
  %2111 = vst.msk [vmem:[%s2110] sm:$0xff] %vm489, %v2094
  %v2112 = vmul.f32 %v2074, %v494
  %v2113 = vmul.f32 %v2075, %v499
  %v2114 = vmul.f32 %v2076, %v504
  %v2115 = vmul.f32 %v2077, %v509
  %v2116 = vsel %vm515, %v2112, 0.0
  %v2117 = vsel %vm515, %v2113, 0.0
  %v2118 = vadd.f32 %v2116, %v2117
  %v2119 = vsel %vm515, %v2114, 0.0
  %v2120 = vadd.f32 %v2118, %v2119
  %v2121 = vsel %vm515, %v2115, 0.0
  %v2122 = vadd.f32 %v2120, %v2121
  %v2123 = vrot.slane %v2122, 4
  %v2124 = vadd.f32 %v2122, %v2123
  %v2125 = vrot.slane %v2124, 2
  %v2126 = vadd.f32 %v2124, %v2125
  %v2127 = vrot.slane %v2126, 1
  %v2128 = vadd.f32 %v2126, %v2127
  %v2129 = vld [vmem:[%s0 + $0x5] sm:$0x1]
  %v2130 = vlaneseq
  %v2131 = vshrl.u32 %v2130, 7
  %v2132 = vsub.s32 0, %v2131
  %v2133 = vrot.slane %v2129, %v2132
  %vm2134 = vcmp.eq.s32.totalorder %v20, %v2133
  %vm2135 = vcmp.eq.s32.totalorder %v21, %v2133
  %vm2136 = vcmp.eq.s32.totalorder %v22, %v2133
  %vm2137 = vcmp.eq.s32.totalorder %v23, %v2133
  %vm2138 = vcmp.eq.s32.totalorder %v24, %v2133
  %vm2139 = vcmp.eq.s32.totalorder %v25, %v2133
  %vm2140 = vcmp.eq.s32.totalorder %v26, %v2133
  %v2141 = vsel %vm2134, 1, 0
  %v2142 = vsel %vm2135, 1, 0
  %v2143 = vsel %vm2136, 1, 0
  %v2144 = vsel %vm2137, 1, 0
  %v2145 = vsel %vm2138, 1, 0
  %v2146 = vsel %vm2139, 1, 0
  %v2147 = vsel %vm2140, 1, 0
  %v2148 = vcvt.s32.f32 %v2141
  %v2149 = vcvt.s32.f32 %v2142
  %v2150 = vcvt.s32.f32 %v2143
  %v2151 = vcvt.s32.f32 %v2144
  %v2152 = vcvt.s32.f32 %v2145
  %v2153 = vcvt.s32.f32 %v2146
  %v2154 = vcvt.s32.f32 %v2147
  %2155 = vmatprep.subr.mxu0 0.0
  %2156 = vmatpush1.msra.mxu0 0.0
  %2157 = vmatprep.subr.mxu0 0.0
  %2158 = vmatpush1.msra.mxu0 0.0
  %2159 = vmatprep.subr.mxu0 0.0
  %2160 = vmatpush1.msra.mxu0 0.0
  %2161 = vmatprep.subr.mxu0 0.0
  %2162 = vmatpush1.msra.mxu0 0.0
  %2163 = vmatprep.subr.mxu0 0.0
  %2164 = vmatpush1.msra.mxu0 0.0
  %2165 = vmatprep.subr.mxu0 0.0
  %2166 = vmatpush1.msra.mxu0 0.0
  %2167 = vmatprep.subr.mxu0 0.0
  %2168 = vmatpush1.msra.mxu0 0.0
  %2169 = vmatprep.subr.mxu0 0.0
  %2170 = vmatpush1.msra.mxu0 0.0
  %2171 = vmatprep.subr.mxu0 0.0
  %2172 = vmatpush1.msra.mxu0 0.0
  %2173 = vmatprep.subr.mxu0 0.0
  %2174 = vmatpush1.msra.mxu0 %v2154
  %2175 = vmatprep.subr.mxu0 0.0
  %2176 = vmatpush1.msra.mxu0 %v2153
  %2177 = vmatprep.subr.mxu0 0.0
  %2178 = vmatpush1.msra.mxu0 %v2152
  %2179 = vmatprep.subr.mxu0 0.0
  %2180 = vmatpush1.msra.mxu0 %v2151
  %2181 = vmatprep.subr.mxu0 0.0
  %2182 = vmatpush1.msra.mxu0 %v2150
  %2183 = vmatprep.subr.mxu0 0.0
  %2184 = vmatpush1.msra.mxu0 %v2149
  %2185 = vmatprep.subr.mxu0 0.0
  %2186 = vmatpush1.msra.mxu0 %v2148
  %2187 = vmatprep.subr.mxu0 0.0
  %2188 = vmatpush2.msra.mxu0 0.0
  %2189 = vmatprep.subr.mxu0 0.0
  %2190 = vmatpush2.msra.mxu0 0.0
  %2191 = vmatprep.subr.mxu0 0.0
  %2192 = vmatpush2.msra.mxu0 0.0
  %2193 = vmatprep.subr.mxu0 0.0
  %2194 = vmatpush2.msra.mxu0 0.0
  %2195 = vmatprep.subr.mxu0 0.0
  %2196 = vmatpush2.msra.mxu0 0.0
  %2197 = vmatprep.subr.mxu0 0.0
  %2198 = vmatpush2.msra.mxu0 0.0
  %2199 = vmatprep.subr.mxu0 0.0
  %2200 = vmatpush2.msra.mxu0 0.0
  %2201 = vmatprep.subr.mxu0 0.0
  %2202 = vmatpush2.msra.mxu0 0.0
  %2203 = vmatprep.subr.mxu0 0.0
  %2204 = vmatpush2.msra.mxu0 0.0
  %2205 = vmatprep.subr.mxu0 0.0
  %2206 = vmatpush2.msra.mxu0 0.0
  %2207 = vmatprep.subr.mxu0 0.0
  %2208 = vmatpush2.msra.mxu0 0.0
  %2209 = vmatprep.subr.mxu0 0.0
  %2210 = vmatpush2.msra.mxu0 0.0
  %2211 = vmatprep.subr.mxu0 0.0
  %2212 = vmatpush2.msra.mxu0 0.0
  %2213 = vmatprep.subr.mxu0 0.0
  %2214 = vmatpush2.msra.mxu0 0.0
  %2215 = vmatprep.subr.mxu0 0.0
  %2216 = vmatpush2.msra.mxu0 0.0
  %2217 = vmatprep.subr.mxu0 0.0
  %2218 = vmatpush2.msra.mxu0 0.0
  %2219 = vmatprep.mubr.f32.mxu0 0.0
  %2220 = vmatmul.mubr.f32.gmra.mxu0 %v77
  %v2221 = vpop.f32.mrf.mxu0
  %v2222 = vadd.f32 0.0, %v2221
  %v2223 = vpop.f32.mrf.mxu0
  %2224 = vmatprep.mubr.f32.mxu0 0.0
  %2225 = vmatmul.mubr.f32.gmra.mxu0 %v80
  %v2226 = vpop.f32.mrf.mxu0
  %v2227 = vadd.f32 0.0, %v2226
  %v2228 = vpop.f32.mrf.mxu0
  %2229 = vmatprep.mubr.f32.mxu0 0.0
  %2230 = vmatmul.mubr.f32.gmra.mxu0 %v83
  %v2231 = vpop.f32.mrf.mxu0
  %v2232 = vadd.f32 0.0, %v2231
  %v2233 = vpop.f32.mrf.mxu0
  %2234 = vmatprep.mubr.f32.mxu0 0.0
  %2235 = vmatmul.mubr.f32.gmra.mxu0 %v86
  %v2236 = vpop.f32.mrf.mxu0
  %v2237 = vadd.f32 0.0, %v2236
  %v2238 = vpop.f32.mrf.mxu0
  %2239 = vdwg.mxu0
  %v2240 = vadd.f32 %v176, %v2222
  %v2241 = vadd.f32 %v181, %v2227
  %v2242 = vadd.f32 %v186, %v2232
  %v2243 = vadd.f32 %v191, %v2237
  %v2244 = vld [vmem:[%s197 + $0x5] sm:$0x1]
  %v2245 = vlaneseq
  %v2246 = vshrl.u32 %v2245, 7
  %v2247 = vsub.s32 0, %v2246
  %v2248 = vrot.slane %v2244, %v2247
  %vm2249 = vcmp.eq.s32.totalorder %v20, %v2248
  %vm2250 = vcmp.eq.s32.totalorder %v21, %v2248
  %vm2251 = vcmp.eq.s32.totalorder %v22, %v2248
  %vm2252 = vcmp.eq.s32.totalorder %v23, %v2248
  %vm2253 = vcmp.eq.s32.totalorder %v24, %v2248
  %vm2254 = vcmp.eq.s32.totalorder %v25, %v2248
  %vm2255 = vcmp.eq.s32.totalorder %v26, %v2248
  %v2256 = vsel %vm2249, 1, 0
  %v2257 = vsel %vm2250, 1, 0
  %v2258 = vsel %vm2251, 1, 0
  %v2259 = vsel %vm2252, 1, 0
  %v2260 = vsel %vm2253, 1, 0
  %v2261 = vsel %vm2254, 1, 0
  %v2262 = vsel %vm2255, 1, 0
  %v2263 = vcvt.s32.f32 %v2256
  %v2264 = vcvt.s32.f32 %v2257
  %v2265 = vcvt.s32.f32 %v2258
  %v2266 = vcvt.s32.f32 %v2259
  %v2267 = vcvt.s32.f32 %v2260
  %v2268 = vcvt.s32.f32 %v2261
  %v2269 = vcvt.s32.f32 %v2262
  %2270 = vmatprep.subr.mxu0 0.0
  %2271 = vmatpush1.msra.mxu0 0.0
  %2272 = vmatprep.subr.mxu0 0.0
  %2273 = vmatpush1.msra.mxu0 0.0
  %2274 = vmatprep.subr.mxu0 0.0
  %2275 = vmatpush1.msra.mxu0 0.0
  %2276 = vmatprep.subr.mxu0 0.0
  %2277 = vmatpush1.msra.mxu0 0.0
  %2278 = vmatprep.subr.mxu0 0.0
  %2279 = vmatpush1.msra.mxu0 0.0
  %2280 = vmatprep.subr.mxu0 0.0
  %2281 = vmatpush1.msra.mxu0 0.0
  %2282 = vmatprep.subr.mxu0 0.0
  %2283 = vmatpush1.msra.mxu0 0.0
  %2284 = vmatprep.subr.mxu0 0.0
  %2285 = vmatpush1.msra.mxu0 0.0
  %2286 = vmatprep.subr.mxu0 0.0
  %2287 = vmatpush1.msra.mxu0 0.0
  %2288 = vmatprep.subr.mxu0 0.0
  %2289 = vmatpush1.msra.mxu0 %v2269
  %2290 = vmatprep.subr.mxu0 0.0
  %2291 = vmatpush1.msra.mxu0 %v2268
  %2292 = vmatprep.subr.mxu0 0.0
  %2293 = vmatpush1.msra.mxu0 %v2267
  %2294 = vmatprep.subr.mxu0 0.0
  %2295 = vmatpush1.msra.mxu0 %v2266
  %2296 = vmatprep.subr.mxu0 0.0
  %2297 = vmatpush1.msra.mxu0 %v2265
  %2298 = vmatprep.subr.mxu0 0.0
  %2299 = vmatpush1.msra.mxu0 %v2264
  %2300 = vmatprep.subr.mxu0 0.0
  %2301 = vmatpush1.msra.mxu0 %v2263
  %2302 = vmatprep.subr.mxu0 0.0
  %2303 = vmatpush2.msra.mxu0 0.0
  %2304 = vmatprep.subr.mxu0 0.0
  %2305 = vmatpush2.msra.mxu0 0.0
  %2306 = vmatprep.subr.mxu0 0.0
  %2307 = vmatpush2.msra.mxu0 0.0
  %2308 = vmatprep.subr.mxu0 0.0
  %2309 = vmatpush2.msra.mxu0 0.0
  %2310 = vmatprep.subr.mxu0 0.0
  %2311 = vmatpush2.msra.mxu0 0.0
  %2312 = vmatprep.subr.mxu0 0.0
  %2313 = vmatpush2.msra.mxu0 0.0
  %2314 = vmatprep.subr.mxu0 0.0
  %2315 = vmatpush2.msra.mxu0 0.0
  %2316 = vmatprep.subr.mxu0 0.0
  %2317 = vmatpush2.msra.mxu0 0.0
  %2318 = vmatprep.subr.mxu0 0.0
  %2319 = vmatpush2.msra.mxu0 0.0
  %2320 = vmatprep.subr.mxu0 0.0
  %2321 = vmatpush2.msra.mxu0 0.0
  %2322 = vmatprep.subr.mxu0 0.0
  %2323 = vmatpush2.msra.mxu0 0.0
  %2324 = vmatprep.subr.mxu0 0.0
  %2325 = vmatpush2.msra.mxu0 0.0
  %2326 = vmatprep.subr.mxu0 0.0
  %2327 = vmatpush2.msra.mxu0 0.0
  %2328 = vmatprep.subr.mxu0 0.0
  %2329 = vmatpush2.msra.mxu0 0.0
  %2330 = vmatprep.subr.mxu0 0.0
  %2331 = vmatpush2.msra.mxu0 0.0
  %2332 = vmatprep.subr.mxu0 0.0
  %2333 = vmatpush2.msra.mxu0 0.0
  %2334 = vmatprep.mubr.f32.mxu0 0.0
  %2335 = vmatmul.mubr.f32.gmra.mxu0 %v225
  %v2336 = vpop.f32.mrf.mxu0
  %v2337 = vadd.f32 0.0, %v2336
  %v2338 = vpop.f32.mrf.mxu0
  %2339 = vmatprep.mubr.f32.mxu0 0.0
  %2340 = vmatmul.mubr.f32.gmra.mxu0 %v228
  %v2341 = vpop.f32.mrf.mxu0
  %v2342 = vadd.f32 0.0, %v2341
  %v2343 = vpop.f32.mrf.mxu0
  %2344 = vmatprep.mubr.f32.mxu0 0.0
  %2345 = vmatmul.mubr.f32.gmra.mxu0 %v231
  %v2346 = vpop.f32.mrf.mxu0
  %v2347 = vadd.f32 0.0, %v2346
  %v2348 = vpop.f32.mrf.mxu0
  %2349 = vmatprep.mubr.f32.mxu0 0.0
  %2350 = vmatmul.mubr.f32.gmra.mxu0 %v234
  %v2351 = vpop.f32.mrf.mxu0
  %v2352 = vadd.f32 0.0, %v2351
  %v2353 = vpop.f32.mrf.mxu0
  %2354 = vdwg.mxu0
  %v2355 = vadd.f32 %v2240, %v2337
  %v2356 = vadd.f32 %v2241, %v2342
  %v2357 = vadd.f32 %v2242, %v2347
  %v2358 = vadd.f32 %v2243, %v2352
  %v2359 = vld [vmem:[%s325 + $0x5] sm:$0x1]
  %v2360 = vlaneseq
  %v2361 = vshrl.u32 %v2360, 7
  %v2362 = vsub.s32 0, %v2361
  %v2363 = vrot.slane %v2359, %v2362
  %vm2364 = vcmp.eq.s32.totalorder %v20, %v2363
  %vm2365 = vcmp.eq.s32.totalorder %v21, %v2363
  %vm2366 = vcmp.eq.s32.totalorder %v22, %v2363
  %vm2367 = vcmp.eq.s32.totalorder %v23, %v2363
  %vm2368 = vcmp.eq.s32.totalorder %v24, %v2363
  %vm2369 = vcmp.eq.s32.totalorder %v25, %v2363
  %vm2370 = vcmp.eq.s32.totalorder %v26, %v2363
  %v2371 = vsel %vm2364, 1, 0
  %v2372 = vsel %vm2365, 1, 0
  %v2373 = vsel %vm2366, 1, 0
  %v2374 = vsel %vm2367, 1, 0
  %v2375 = vsel %vm2368, 1, 0
  %v2376 = vsel %vm2369, 1, 0
  %v2377 = vsel %vm2370, 1, 0
  %v2378 = vcvt.s32.f32 %v2371
  %v2379 = vcvt.s32.f32 %v2372
  %v2380 = vcvt.s32.f32 %v2373
  %v2381 = vcvt.s32.f32 %v2374
  %v2382 = vcvt.s32.f32 %v2375
  %v2383 = vcvt.s32.f32 %v2376
  %v2384 = vcvt.s32.f32 %v2377
  %2385 = vmatprep.subr.mxu0 0.0
  %2386 = vmatpush1.msra.mxu0 0.0
  %2387 = vmatprep.subr.mxu0 0.0
  %2388 = vmatpush1.msra.mxu0 0.0
  %2389 = vmatprep.subr.mxu0 0.0
  %2390 = vmatpush1.msra.mxu0 0.0
  %2391 = vmatprep.subr.mxu0 0.0
  %2392 = vmatpush1.msra.mxu0 0.0
  %2393 = vmatprep.subr.mxu0 0.0
  %2394 = vmatpush1.msra.mxu0 0.0
  %2395 = vmatprep.subr.mxu0 0.0
  %2396 = vmatpush1.msra.mxu0 0.0
  %2397 = vmatprep.subr.mxu0 0.0
  %2398 = vmatpush1.msra.mxu0 0.0
  %2399 = vmatprep.subr.mxu0 0.0
  %2400 = vmatpush1.msra.mxu0 0.0
  %2401 = vmatprep.subr.mxu0 0.0
  %2402 = vmatpush1.msra.mxu0 0.0
  %2403 = vmatprep.subr.mxu0 0.0
  %2404 = vmatpush1.msra.mxu0 %v2384
  %2405 = vmatprep.subr.mxu0 0.0
  %2406 = vmatpush1.msra.mxu0 %v2383
  %2407 = vmatprep.subr.mxu0 0.0
  %2408 = vmatpush1.msra.mxu0 %v2382
  %2409 = vmatprep.subr.mxu0 0.0
  %2410 = vmatpush1.msra.mxu0 %v2381
  %2411 = vmatprep.subr.mxu0 0.0
  %2412 = vmatpush1.msra.mxu0 %v2380
  %2413 = vmatprep.subr.mxu0 0.0
  %2414 = vmatpush1.msra.mxu0 %v2379
  %2415 = vmatprep.subr.mxu0 0.0
  %2416 = vmatpush1.msra.mxu0 %v2378
  %2417 = vmatprep.subr.mxu0 0.0
  %2418 = vmatpush2.msra.mxu0 0.0
  %2419 = vmatprep.subr.mxu0 0.0
  %2420 = vmatpush2.msra.mxu0 0.0
  %2421 = vmatprep.subr.mxu0 0.0
  %2422 = vmatpush2.msra.mxu0 0.0
  %2423 = vmatprep.subr.mxu0 0.0
  %2424 = vmatpush2.msra.mxu0 0.0
  %2425 = vmatprep.subr.mxu0 0.0
  %2426 = vmatpush2.msra.mxu0 0.0
  %2427 = vmatprep.subr.mxu0 0.0
  %2428 = vmatpush2.msra.mxu0 0.0
  %2429 = vmatprep.subr.mxu0 0.0
  %2430 = vmatpush2.msra.mxu0 0.0
  %2431 = vmatprep.subr.mxu0 0.0
  %2432 = vmatpush2.msra.mxu0 0.0
  %2433 = vmatprep.subr.mxu0 0.0
  %2434 = vmatpush2.msra.mxu0 0.0
  %2435 = vmatprep.subr.mxu0 0.0
  %2436 = vmatpush2.msra.mxu0 0.0
  %2437 = vmatprep.subr.mxu0 0.0
  %2438 = vmatpush2.msra.mxu0 0.0
  %2439 = vmatprep.subr.mxu0 0.0
  %2440 = vmatpush2.msra.mxu0 0.0
  %2441 = vmatprep.subr.mxu0 0.0
  %2442 = vmatpush2.msra.mxu0 0.0
  %2443 = vmatprep.subr.mxu0 0.0
  %2444 = vmatpush2.msra.mxu0 0.0
  %2445 = vmatprep.subr.mxu0 0.0
  %2446 = vmatpush2.msra.mxu0 0.0
  %2447 = vmatprep.subr.mxu0 0.0
  %2448 = vmatpush2.msra.mxu0 0.0
  %2449 = vmatprep.mubr.f32.mxu0 0.0
  %2450 = vmatmul.mubr.f32.gmra.mxu0 %v353
  %v2451 = vpop.f32.mrf.mxu0
  %v2452 = vadd.f32 0.0, %v2451
  %v2453 = vpop.f32.mrf.mxu0
  %2454 = vmatprep.mubr.f32.mxu0 0.0
  %2455 = vmatmul.mubr.f32.gmra.mxu0 %v356
  %v2456 = vpop.f32.mrf.mxu0
  %v2457 = vadd.f32 0.0, %v2456
  %v2458 = vpop.f32.mrf.mxu0
  %2459 = vmatprep.mubr.f32.mxu0 0.0
  %2460 = vmatmul.mubr.f32.gmra.mxu0 %v359
  %v2461 = vpop.f32.mrf.mxu0
  %v2462 = vadd.f32 0.0, %v2461
  %v2463 = vpop.f32.mrf.mxu0
  %2464 = vmatprep.mubr.f32.mxu0 0.0
  %2465 = vmatmul.mubr.f32.gmra.mxu0 %v362
  %v2466 = vpop.f32.mrf.mxu0
  %v2467 = vadd.f32 0.0, %v2466
  %v2468 = vpop.f32.mrf.mxu0
  %2469 = vdwg.mxu0
  %v2470 = vadd.f32 %v2355, %v2452
  %v2471 = vadd.f32 %v2356, %v2457
  %v2472 = vadd.f32 %v2357, %v2462
  %v2473 = vadd.f32 %v2358, %v2467
  %v2474 = vmax.f32 %v2470, 0.0
  %v2475 = vmax.f32 %v2471, 0.0
  %v2476 = vmax.f32 %v2472, 0.0
  %v2477 = vmax.f32 %v2473, 0.0
  %2478 = vxpose.xlu0.b32.start [1/16] %v2474, 128
  %2479 = vxpose.xlu0.b32.cont [2/16] %v2475, 128
  %2480 = vxpose.xlu0.b32.cont [3/16] %v2476, 128
  %2481 = vxpose.xlu0.b32.cont [4/16] %v2477, 128
  %2482 = vxpose.xlu0.b32.cont [5/16] 0.0, 128
  %2483 = vxpose.xlu0.b32.cont [6/16] 0.0, 128
  %2484 = vxpose.xlu0.b32.cont [7/16] 0.0, 128
  %2485 = vxpose.xlu0.b32.cont [8/16] 0.0, 128
  %2486 = vxpose.xlu0.b32.cont [9/16] 0.0, 128
  %2487 = vxpose.xlu0.b32.cont [10/16] 0.0, 128
  %2488 = vxpose.xlu0.b32.cont [11/16] 0.0, 128
  %2489 = vxpose.xlu0.b32.cont [12/16] 0.0, 128
  %2490 = vxpose.xlu0.b32.cont [13/16] 0.0, 128
  %2491 = vxpose.xlu0.b32.cont [14/16] 0.0, 128
  %2492 = vxpose.xlu0.b32.cont [15/16] 0.0, 128
  %2493 = vxpose.xlu0.b32.end [16/16] 0.0, 128
  %v2494 = vpop.trf.xlu0
  %v2495 = vpop.trf.xlu0
  %v2496 = vpop.trf.xlu0
  %v2497 = vpop.trf.xlu0
  %v2498 = vpop.trf.xlu0
  %v2499 = vpop.trf.xlu0
  %v2500 = vpop.trf.xlu0
  %v2501 = vpop.trf.xlu0
  %v2502 = vpop.trf.xlu0
  %v2503 = vpop.trf.xlu0
  %v2504 = vpop.trf.xlu0
  %v2505 = vpop.trf.xlu0
  %v2506 = vpop.trf.xlu0
  %v2507 = vpop.trf.xlu0
  %v2508 = vpop.trf.xlu0
  %v2509 = vpop.trf.xlu0
  %s2510 = scalar_lea.vmem %s4, 40
  %2511 = vst.msk [vmem:[%s2510] sm:$0xff] %vm489, %v2494
  %v2512 = vmul.f32 %v2474, %v494
  %v2513 = vmul.f32 %v2475, %v499
  %v2514 = vmul.f32 %v2476, %v504
  %v2515 = vmul.f32 %v2477, %v509
  %v2516 = vsel %vm515, %v2512, 0.0
  %v2517 = vsel %vm515, %v2513, 0.0
  %v2518 = vadd.f32 %v2516, %v2517
  %v2519 = vsel %vm515, %v2514, 0.0
  %v2520 = vadd.f32 %v2518, %v2519
  %v2521 = vsel %vm515, %v2515, 0.0
  %v2522 = vadd.f32 %v2520, %v2521
  %v2523 = vrot.slane %v2522, 4
  %v2524 = vadd.f32 %v2522, %v2523
  %v2525 = vrot.slane %v2524, 2
  %v2526 = vadd.f32 %v2524, %v2525
  %v2527 = vrot.slane %v2526, 1
  %v2528 = vadd.f32 %v2526, %v2527
  %v2529 = vld [vmem:[%s0 + $0x6] sm:$0x1]
  %v2530 = vlaneseq
  %v2531 = vshrl.u32 %v2530, 7
  %v2532 = vsub.s32 0, %v2531
  %v2533 = vrot.slane %v2529, %v2532
  %vm2534 = vcmp.eq.s32.totalorder %v20, %v2533
  %vm2535 = vcmp.eq.s32.totalorder %v21, %v2533
  %vm2536 = vcmp.eq.s32.totalorder %v22, %v2533
  %vm2537 = vcmp.eq.s32.totalorder %v23, %v2533
  %vm2538 = vcmp.eq.s32.totalorder %v24, %v2533
  %vm2539 = vcmp.eq.s32.totalorder %v25, %v2533
  %vm2540 = vcmp.eq.s32.totalorder %v26, %v2533
  %v2541 = vsel %vm2534, 1, 0
  %v2542 = vsel %vm2535, 1, 0
  %v2543 = vsel %vm2536, 1, 0
  %v2544 = vsel %vm2537, 1, 0
  %v2545 = vsel %vm2538, 1, 0
  %v2546 = vsel %vm2539, 1, 0
  %v2547 = vsel %vm2540, 1, 0
  %v2548 = vcvt.s32.f32 %v2541
  %v2549 = vcvt.s32.f32 %v2542
  %v2550 = vcvt.s32.f32 %v2543
  %v2551 = vcvt.s32.f32 %v2544
  %v2552 = vcvt.s32.f32 %v2545
  %v2553 = vcvt.s32.f32 %v2546
  %v2554 = vcvt.s32.f32 %v2547
  %2555 = vmatprep.subr.mxu0 0.0
  %2556 = vmatpush1.msra.mxu0 0.0
  %2557 = vmatprep.subr.mxu0 0.0
  %2558 = vmatpush1.msra.mxu0 0.0
  %2559 = vmatprep.subr.mxu0 0.0
  %2560 = vmatpush1.msra.mxu0 0.0
  %2561 = vmatprep.subr.mxu0 0.0
  %2562 = vmatpush1.msra.mxu0 0.0
  %2563 = vmatprep.subr.mxu0 0.0
  %2564 = vmatpush1.msra.mxu0 0.0
  %2565 = vmatprep.subr.mxu0 0.0
  %2566 = vmatpush1.msra.mxu0 0.0
  %2567 = vmatprep.subr.mxu0 0.0
  %2568 = vmatpush1.msra.mxu0 0.0
  %2569 = vmatprep.subr.mxu0 0.0
  %2570 = vmatpush1.msra.mxu0 0.0
  %2571 = vmatprep.subr.mxu0 0.0
  %2572 = vmatpush1.msra.mxu0 0.0
  %2573 = vmatprep.subr.mxu0 0.0
  %2574 = vmatpush1.msra.mxu0 %v2554
  %2575 = vmatprep.subr.mxu0 0.0
  %2576 = vmatpush1.msra.mxu0 %v2553
  %2577 = vmatprep.subr.mxu0 0.0
  %2578 = vmatpush1.msra.mxu0 %v2552
  %2579 = vmatprep.subr.mxu0 0.0
  %2580 = vmatpush1.msra.mxu0 %v2551
  %2581 = vmatprep.subr.mxu0 0.0
  %2582 = vmatpush1.msra.mxu0 %v2550
  %2583 = vmatprep.subr.mxu0 0.0
  %2584 = vmatpush1.msra.mxu0 %v2549
  %2585 = vmatprep.subr.mxu0 0.0
  %2586 = vmatpush1.msra.mxu0 %v2548
  %2587 = vmatprep.subr.mxu0 0.0
  %2588 = vmatpush2.msra.mxu0 0.0
  %2589 = vmatprep.subr.mxu0 0.0
  %2590 = vmatpush2.msra.mxu0 0.0
  %2591 = vmatprep.subr.mxu0 0.0
  %2592 = vmatpush2.msra.mxu0 0.0
  %2593 = vmatprep.subr.mxu0 0.0
  %2594 = vmatpush2.msra.mxu0 0.0
  %2595 = vmatprep.subr.mxu0 0.0
  %2596 = vmatpush2.msra.mxu0 0.0
  %2597 = vmatprep.subr.mxu0 0.0
  %2598 = vmatpush2.msra.mxu0 0.0
  %2599 = vmatprep.subr.mxu0 0.0
  %2600 = vmatpush2.msra.mxu0 0.0
  %2601 = vmatprep.subr.mxu0 0.0
  %2602 = vmatpush2.msra.mxu0 0.0
  %2603 = vmatprep.subr.mxu0 0.0
  %2604 = vmatpush2.msra.mxu0 0.0
  %2605 = vmatprep.subr.mxu0 0.0
  %2606 = vmatpush2.msra.mxu0 0.0
  %2607 = vmatprep.subr.mxu0 0.0
  %2608 = vmatpush2.msra.mxu0 0.0
  %2609 = vmatprep.subr.mxu0 0.0
  %2610 = vmatpush2.msra.mxu0 0.0
  %2611 = vmatprep.subr.mxu0 0.0
  %2612 = vmatpush2.msra.mxu0 0.0
  %2613 = vmatprep.subr.mxu0 0.0
  %2614 = vmatpush2.msra.mxu0 0.0
  %2615 = vmatprep.subr.mxu0 0.0
  %2616 = vmatpush2.msra.mxu0 0.0
  %2617 = vmatprep.subr.mxu0 0.0
  %2618 = vmatpush2.msra.mxu0 0.0
  %2619 = vmatprep.mubr.f32.mxu0 0.0
  %2620 = vmatmul.mubr.f32.gmra.mxu0 %v77
  %v2621 = vpop.f32.mrf.mxu0
  %v2622 = vadd.f32 0.0, %v2621
  %v2623 = vpop.f32.mrf.mxu0
  %2624 = vmatprep.mubr.f32.mxu0 0.0
  %2625 = vmatmul.mubr.f32.gmra.mxu0 %v80
  %v2626 = vpop.f32.mrf.mxu0
  %v2627 = vadd.f32 0.0, %v2626
  %v2628 = vpop.f32.mrf.mxu0
  %2629 = vmatprep.mubr.f32.mxu0 0.0
  %2630 = vmatmul.mubr.f32.gmra.mxu0 %v83
  %v2631 = vpop.f32.mrf.mxu0
  %v2632 = vadd.f32 0.0, %v2631
  %v2633 = vpop.f32.mrf.mxu0
  %2634 = vmatprep.mubr.f32.mxu0 0.0
  %2635 = vmatmul.mubr.f32.gmra.mxu0 %v86
  %v2636 = vpop.f32.mrf.mxu0
  %v2637 = vadd.f32 0.0, %v2636
  %v2638 = vpop.f32.mrf.mxu0
  %2639 = vdwg.mxu0
  %v2640 = vadd.f32 %v176, %v2622
  %v2641 = vadd.f32 %v181, %v2627
  %v2642 = vadd.f32 %v186, %v2632
  %v2643 = vadd.f32 %v191, %v2637
  %v2644 = vld [vmem:[%s197 + $0x6] sm:$0x1]
  %v2645 = vlaneseq
  %v2646 = vshrl.u32 %v2645, 7
  %v2647 = vsub.s32 0, %v2646
  %v2648 = vrot.slane %v2644, %v2647
  %vm2649 = vcmp.eq.s32.totalorder %v20, %v2648
  %vm2650 = vcmp.eq.s32.totalorder %v21, %v2648
  %vm2651 = vcmp.eq.s32.totalorder %v22, %v2648
  %vm2652 = vcmp.eq.s32.totalorder %v23, %v2648
  %vm2653 = vcmp.eq.s32.totalorder %v24, %v2648
  %vm2654 = vcmp.eq.s32.totalorder %v25, %v2648
  %vm2655 = vcmp.eq.s32.totalorder %v26, %v2648
  %v2656 = vsel %vm2649, 1, 0
  %v2657 = vsel %vm2650, 1, 0
  %v2658 = vsel %vm2651, 1, 0
  %v2659 = vsel %vm2652, 1, 0
  %v2660 = vsel %vm2653, 1, 0
  %v2661 = vsel %vm2654, 1, 0
  %v2662 = vsel %vm2655, 1, 0
  %v2663 = vcvt.s32.f32 %v2656
  %v2664 = vcvt.s32.f32 %v2657
  %v2665 = vcvt.s32.f32 %v2658
  %v2666 = vcvt.s32.f32 %v2659
  %v2667 = vcvt.s32.f32 %v2660
  %v2668 = vcvt.s32.f32 %v2661
  %v2669 = vcvt.s32.f32 %v2662
  %2670 = vmatprep.subr.mxu0 0.0
  %2671 = vmatpush1.msra.mxu0 0.0
  %2672 = vmatprep.subr.mxu0 0.0
  %2673 = vmatpush1.msra.mxu0 0.0
  %2674 = vmatprep.subr.mxu0 0.0
  %2675 = vmatpush1.msra.mxu0 0.0
  %2676 = vmatprep.subr.mxu0 0.0
  %2677 = vmatpush1.msra.mxu0 0.0
  %2678 = vmatprep.subr.mxu0 0.0
  %2679 = vmatpush1.msra.mxu0 0.0
  %2680 = vmatprep.subr.mxu0 0.0
  %2681 = vmatpush1.msra.mxu0 0.0
  %2682 = vmatprep.subr.mxu0 0.0
  %2683 = vmatpush1.msra.mxu0 0.0
  %2684 = vmatprep.subr.mxu0 0.0
  %2685 = vmatpush1.msra.mxu0 0.0
  %2686 = vmatprep.subr.mxu0 0.0
  %2687 = vmatpush1.msra.mxu0 0.0
  %2688 = vmatprep.subr.mxu0 0.0
  %2689 = vmatpush1.msra.mxu0 %v2669
  %2690 = vmatprep.subr.mxu0 0.0
  %2691 = vmatpush1.msra.mxu0 %v2668
  %2692 = vmatprep.subr.mxu0 0.0
  %2693 = vmatpush1.msra.mxu0 %v2667
  %2694 = vmatprep.subr.mxu0 0.0
  %2695 = vmatpush1.msra.mxu0 %v2666
  %2696 = vmatprep.subr.mxu0 0.0
  %2697 = vmatpush1.msra.mxu0 %v2665
  %2698 = vmatprep.subr.mxu0 0.0
  %2699 = vmatpush1.msra.mxu0 %v2664
  %2700 = vmatprep.subr.mxu0 0.0
  %2701 = vmatpush1.msra.mxu0 %v2663
  %2702 = vmatprep.subr.mxu0 0.0
  %2703 = vmatpush2.msra.mxu0 0.0
  %2704 = vmatprep.subr.mxu0 0.0
  %2705 = vmatpush2.msra.mxu0 0.0
  %2706 = vmatprep.subr.mxu0 0.0
  %2707 = vmatpush2.msra.mxu0 0.0
  %2708 = vmatprep.subr.mxu0 0.0
  %2709 = vmatpush2.msra.mxu0 0.0
  %2710 = vmatprep.subr.mxu0 0.0
  %2711 = vmatpush2.msra.mxu0 0.0
  %2712 = vmatprep.subr.mxu0 0.0
  %2713 = vmatpush2.msra.mxu0 0.0
  %2714 = vmatprep.subr.mxu0 0.0
  %2715 = vmatpush2.msra.mxu0 0.0
  %2716 = vmatprep.subr.mxu0 0.0
  %2717 = vmatpush2.msra.mxu0 0.0
  %2718 = vmatprep.subr.mxu0 0.0
  %2719 = vmatpush2.msra.mxu0 0.0
  %2720 = vmatprep.subr.mxu0 0.0
  %2721 = vmatpush2.msra.mxu0 0.0
  %2722 = vmatprep.subr.mxu0 0.0
  %2723 = vmatpush2.msra.mxu0 0.0
  %2724 = vmatprep.subr.mxu0 0.0
  %2725 = vmatpush2.msra.mxu0 0.0
  %2726 = vmatprep.subr.mxu0 0.0
  %2727 = vmatpush2.msra.mxu0 0.0
  %2728 = vmatprep.subr.mxu0 0.0
  %2729 = vmatpush2.msra.mxu0 0.0
  %2730 = vmatprep.subr.mxu0 0.0
  %2731 = vmatpush2.msra.mxu0 0.0
  %2732 = vmatprep.subr.mxu0 0.0
  %2733 = vmatpush2.msra.mxu0 0.0
  %2734 = vmatprep.mubr.f32.mxu0 0.0
  %2735 = vmatmul.mubr.f32.gmra.mxu0 %v225
  %v2736 = vpop.f32.mrf.mxu0
  %v2737 = vadd.f32 0.0, %v2736
  %v2738 = vpop.f32.mrf.mxu0
  %2739 = vmatprep.mubr.f32.mxu0 0.0
  %2740 = vmatmul.mubr.f32.gmra.mxu0 %v228
  %v2741 = vpop.f32.mrf.mxu0
  %v2742 = vadd.f32 0.0, %v2741
  %v2743 = vpop.f32.mrf.mxu0
  %2744 = vmatprep.mubr.f32.mxu0 0.0
  %2745 = vmatmul.mubr.f32.gmra.mxu0 %v231
  %v2746 = vpop.f32.mrf.mxu0
  %v2747 = vadd.f32 0.0, %v2746
  %v2748 = vpop.f32.mrf.mxu0
  %2749 = vmatprep.mubr.f32.mxu0 0.0
  %2750 = vmatmul.mubr.f32.gmra.mxu0 %v234
  %v2751 = vpop.f32.mrf.mxu0
  %v2752 = vadd.f32 0.0, %v2751
  %v2753 = vpop.f32.mrf.mxu0
  %2754 = vdwg.mxu0
  %v2755 = vadd.f32 %v2640, %v2737
  %v2756 = vadd.f32 %v2641, %v2742
  %v2757 = vadd.f32 %v2642, %v2747
  %v2758 = vadd.f32 %v2643, %v2752
  %v2759 = vld [vmem:[%s325 + $0x6] sm:$0x1]
  %v2760 = vlaneseq
  %v2761 = vshrl.u32 %v2760, 7
  %v2762 = vsub.s32 0, %v2761
  %v2763 = vrot.slane %v2759, %v2762
  %vm2764 = vcmp.eq.s32.totalorder %v20, %v2763
  %vm2765 = vcmp.eq.s32.totalorder %v21, %v2763
  %vm2766 = vcmp.eq.s32.totalorder %v22, %v2763
  %vm2767 = vcmp.eq.s32.totalorder %v23, %v2763
  %vm2768 = vcmp.eq.s32.totalorder %v24, %v2763
  %vm2769 = vcmp.eq.s32.totalorder %v25, %v2763
  %vm2770 = vcmp.eq.s32.totalorder %v26, %v2763
  %v2771 = vsel %vm2764, 1, 0
  %v2772 = vsel %vm2765, 1, 0
  %v2773 = vsel %vm2766, 1, 0
  %v2774 = vsel %vm2767, 1, 0
  %v2775 = vsel %vm2768, 1, 0
  %v2776 = vsel %vm2769, 1, 0
  %v2777 = vsel %vm2770, 1, 0
  %v2778 = vcvt.s32.f32 %v2771
  %v2779 = vcvt.s32.f32 %v2772
  %v2780 = vcvt.s32.f32 %v2773
  %v2781 = vcvt.s32.f32 %v2774
  %v2782 = vcvt.s32.f32 %v2775
  %v2783 = vcvt.s32.f32 %v2776
  %v2784 = vcvt.s32.f32 %v2777
  %2785 = vmatprep.subr.mxu0 0.0
  %2786 = vmatpush1.msra.mxu0 0.0
  %2787 = vmatprep.subr.mxu0 0.0
  %2788 = vmatpush1.msra.mxu0 0.0
  %2789 = vmatprep.subr.mxu0 0.0
  %2790 = vmatpush1.msra.mxu0 0.0
  %2791 = vmatprep.subr.mxu0 0.0
  %2792 = vmatpush1.msra.mxu0 0.0
  %2793 = vmatprep.subr.mxu0 0.0
  %2794 = vmatpush1.msra.mxu0 0.0
  %2795 = vmatprep.subr.mxu0 0.0
  %2796 = vmatpush1.msra.mxu0 0.0
  %2797 = vmatprep.subr.mxu0 0.0
  %2798 = vmatpush1.msra.mxu0 0.0
  %2799 = vmatprep.subr.mxu0 0.0
  %2800 = vmatpush1.msra.mxu0 0.0
  %2801 = vmatprep.subr.mxu0 0.0
  %2802 = vmatpush1.msra.mxu0 0.0
  %2803 = vmatprep.subr.mxu0 0.0
  %2804 = vmatpush1.msra.mxu0 %v2784
  %2805 = vmatprep.subr.mxu0 0.0
  %2806 = vmatpush1.msra.mxu0 %v2783
  %2807 = vmatprep.subr.mxu0 0.0
  %2808 = vmatpush1.msra.mxu0 %v2782
  %2809 = vmatprep.subr.mxu0 0.0
  %2810 = vmatpush1.msra.mxu0 %v2781
  %2811 = vmatprep.subr.mxu0 0.0
  %2812 = vmatpush1.msra.mxu0 %v2780
  %2813 = vmatprep.subr.mxu0 0.0
  %2814 = vmatpush1.msra.mxu0 %v2779
  %2815 = vmatprep.subr.mxu0 0.0
  %2816 = vmatpush1.msra.mxu0 %v2778
  %2817 = vmatprep.subr.mxu0 0.0
  %2818 = vmatpush2.msra.mxu0 0.0
  %2819 = vmatprep.subr.mxu0 0.0
  %2820 = vmatpush2.msra.mxu0 0.0
  %2821 = vmatprep.subr.mxu0 0.0
  %2822 = vmatpush2.msra.mxu0 0.0
  %2823 = vmatprep.subr.mxu0 0.0
  %2824 = vmatpush2.msra.mxu0 0.0
  %2825 = vmatprep.subr.mxu0 0.0
  %2826 = vmatpush2.msra.mxu0 0.0
  %2827 = vmatprep.subr.mxu0 0.0
  %2828 = vmatpush2.msra.mxu0 0.0
  %2829 = vmatprep.subr.mxu0 0.0
  %2830 = vmatpush2.msra.mxu0 0.0
  %2831 = vmatprep.subr.mxu0 0.0
  %2832 = vmatpush2.msra.mxu0 0.0
  %2833 = vmatprep.subr.mxu0 0.0
  %2834 = vmatpush2.msra.mxu0 0.0
  %2835 = vmatprep.subr.mxu0 0.0
  %2836 = vmatpush2.msra.mxu0 0.0
  %2837 = vmatprep.subr.mxu0 0.0
  %2838 = vmatpush2.msra.mxu0 0.0
  %2839 = vmatprep.subr.mxu0 0.0
  %2840 = vmatpush2.msra.mxu0 0.0
  %2841 = vmatprep.subr.mxu0 0.0
  %2842 = vmatpush2.msra.mxu0 0.0
  %2843 = vmatprep.subr.mxu0 0.0
  %2844 = vmatpush2.msra.mxu0 0.0
  %2845 = vmatprep.subr.mxu0 0.0
  %2846 = vmatpush2.msra.mxu0 0.0
  %2847 = vmatprep.subr.mxu0 0.0
  %2848 = vmatpush2.msra.mxu0 0.0
  %2849 = vmatprep.mubr.f32.mxu0 0.0
  %2850 = vmatmul.mubr.f32.gmra.mxu0 %v353
  %v2851 = vpop.f32.mrf.mxu0
  %v2852 = vadd.f32 0.0, %v2851
  %v2853 = vpop.f32.mrf.mxu0
  %2854 = vmatprep.mubr.f32.mxu0 0.0
  %2855 = vmatmul.mubr.f32.gmra.mxu0 %v356
  %v2856 = vpop.f32.mrf.mxu0
  %v2857 = vadd.f32 0.0, %v2856
  %v2858 = vpop.f32.mrf.mxu0
  %2859 = vmatprep.mubr.f32.mxu0 0.0
  %2860 = vmatmul.mubr.f32.gmra.mxu0 %v359
  %v2861 = vpop.f32.mrf.mxu0
  %v2862 = vadd.f32 0.0, %v2861
  %v2863 = vpop.f32.mrf.mxu0
  %2864 = vmatprep.mubr.f32.mxu0 0.0
  %2865 = vmatmul.mubr.f32.gmra.mxu0 %v362
  %v2866 = vpop.f32.mrf.mxu0
  %v2867 = vadd.f32 0.0, %v2866
  %v2868 = vpop.f32.mrf.mxu0
  %2869 = vdwg.mxu0
  %v2870 = vadd.f32 %v2755, %v2852
  %v2871 = vadd.f32 %v2756, %v2857
  %v2872 = vadd.f32 %v2757, %v2862
  %v2873 = vadd.f32 %v2758, %v2867
  %v2874 = vmax.f32 %v2870, 0.0
  %v2875 = vmax.f32 %v2871, 0.0
  %v2876 = vmax.f32 %v2872, 0.0
  %v2877 = vmax.f32 %v2873, 0.0
  %2878 = vxpose.xlu0.b32.start [1/16] %v2874, 128
  %2879 = vxpose.xlu0.b32.cont [2/16] %v2875, 128
  %2880 = vxpose.xlu0.b32.cont [3/16] %v2876, 128
  %2881 = vxpose.xlu0.b32.cont [4/16] %v2877, 128
  %2882 = vxpose.xlu0.b32.cont [5/16] 0.0, 128
  %2883 = vxpose.xlu0.b32.cont [6/16] 0.0, 128
  %2884 = vxpose.xlu0.b32.cont [7/16] 0.0, 128
  %2885 = vxpose.xlu0.b32.cont [8/16] 0.0, 128
  %2886 = vxpose.xlu0.b32.cont [9/16] 0.0, 128
  %2887 = vxpose.xlu0.b32.cont [10/16] 0.0, 128
  %2888 = vxpose.xlu0.b32.cont [11/16] 0.0, 128
  %2889 = vxpose.xlu0.b32.cont [12/16] 0.0, 128
  %2890 = vxpose.xlu0.b32.cont [13/16] 0.0, 128
  %2891 = vxpose.xlu0.b32.cont [14/16] 0.0, 128
  %2892 = vxpose.xlu0.b32.cont [15/16] 0.0, 128
  %2893 = vxpose.xlu0.b32.end [16/16] 0.0, 128
  %v2894 = vpop.trf.xlu0
  %v2895 = vpop.trf.xlu0
  %v2896 = vpop.trf.xlu0
  %v2897 = vpop.trf.xlu0
  %v2898 = vpop.trf.xlu0
  %v2899 = vpop.trf.xlu0
  %v2900 = vpop.trf.xlu0
  %v2901 = vpop.trf.xlu0
  %v2902 = vpop.trf.xlu0
  %v2903 = vpop.trf.xlu0
  %v2904 = vpop.trf.xlu0
  %v2905 = vpop.trf.xlu0
  %v2906 = vpop.trf.xlu0
  %v2907 = vpop.trf.xlu0
  %v2908 = vpop.trf.xlu0
  %v2909 = vpop.trf.xlu0
  %s2910 = scalar_lea.vmem %s4, 48
  %2911 = vst.msk [vmem:[%s2910] sm:$0xff] %vm489, %v2894
  %v2912 = vmul.f32 %v2874, %v494
  %v2913 = vmul.f32 %v2875, %v499
  %v2914 = vmul.f32 %v2876, %v504
  %v2915 = vmul.f32 %v2877, %v509
  %v2916 = vsel %vm515, %v2912, 0.0
  %v2917 = vsel %vm515, %v2913, 0.0
  %v2918 = vadd.f32 %v2916, %v2917
  %v2919 = vsel %vm515, %v2914, 0.0
  %v2920 = vadd.f32 %v2918, %v2919
  %v2921 = vsel %vm515, %v2915, 0.0
  %v2922 = vadd.f32 %v2920, %v2921
  %v2923 = vrot.slane %v2922, 4
  %v2924 = vadd.f32 %v2922, %v2923
  %v2925 = vrot.slane %v2924, 2
  %v2926 = vadd.f32 %v2924, %v2925
  %v2927 = vrot.slane %v2926, 1
  %v2928 = vadd.f32 %v2926, %v2927
  %v2929 = vld [vmem:[%s0 + $0x7] sm:$0x1]
  %v2930 = vlaneseq
  %v2931 = vshrl.u32 %v2930, 7
  %v2932 = vsub.s32 0, %v2931
  %v2933 = vrot.slane %v2929, %v2932
  %vm2934 = vcmp.eq.s32.totalorder %v20, %v2933
  %vm2935 = vcmp.eq.s32.totalorder %v21, %v2933
  %vm2936 = vcmp.eq.s32.totalorder %v22, %v2933
  %vm2937 = vcmp.eq.s32.totalorder %v23, %v2933
  %vm2938 = vcmp.eq.s32.totalorder %v24, %v2933
  %vm2939 = vcmp.eq.s32.totalorder %v25, %v2933
  %vm2940 = vcmp.eq.s32.totalorder %v26, %v2933
  %v2941 = vsel %vm2934, 1, 0
  %v2942 = vsel %vm2935, 1, 0
  %v2943 = vsel %vm2936, 1, 0
  %v2944 = vsel %vm2937, 1, 0
  %v2945 = vsel %vm2938, 1, 0
  %v2946 = vsel %vm2939, 1, 0
  %v2947 = vsel %vm2940, 1, 0
  %v2948 = vcvt.s32.f32 %v2941
  %v2949 = vcvt.s32.f32 %v2942
  %v2950 = vcvt.s32.f32 %v2943
  %v2951 = vcvt.s32.f32 %v2944
  %v2952 = vcvt.s32.f32 %v2945
  %v2953 = vcvt.s32.f32 %v2946
  %v2954 = vcvt.s32.f32 %v2947
  %2955 = vmatprep.subr.mxu0 0.0
  %2956 = vmatpush1.msra.mxu0 0.0
  %2957 = vmatprep.subr.mxu0 0.0
  %2958 = vmatpush1.msra.mxu0 0.0
  %2959 = vmatprep.subr.mxu0 0.0
  %2960 = vmatpush1.msra.mxu0 0.0
  %2961 = vmatprep.subr.mxu0 0.0
  %2962 = vmatpush1.msra.mxu0 0.0
  %2963 = vmatprep.subr.mxu0 0.0
  %2964 = vmatpush1.msra.mxu0 0.0
  %2965 = vmatprep.subr.mxu0 0.0
  %2966 = vmatpush1.msra.mxu0 0.0
  %2967 = vmatprep.subr.mxu0 0.0
  %2968 = vmatpush1.msra.mxu0 0.0
  %2969 = vmatprep.subr.mxu0 0.0
  %2970 = vmatpush1.msra.mxu0 0.0
  %2971 = vmatprep.subr.mxu0 0.0
  %2972 = vmatpush1.msra.mxu0 0.0
  %2973 = vmatprep.subr.mxu0 0.0
  %2974 = vmatpush1.msra.mxu0 %v2954
  %2975 = vmatprep.subr.mxu0 0.0
  %2976 = vmatpush1.msra.mxu0 %v2953
  %2977 = vmatprep.subr.mxu0 0.0
  %2978 = vmatpush1.msra.mxu0 %v2952
  %2979 = vmatprep.subr.mxu0 0.0
  %2980 = vmatpush1.msra.mxu0 %v2951
  %2981 = vmatprep.subr.mxu0 0.0
  %2982 = vmatpush1.msra.mxu0 %v2950
  %2983 = vmatprep.subr.mxu0 0.0
  %2984 = vmatpush1.msra.mxu0 %v2949
  %2985 = vmatprep.subr.mxu0 0.0
  %2986 = vmatpush1.msra.mxu0 %v2948
  %2987 = vmatprep.subr.mxu0 0.0
  %2988 = vmatpush2.msra.mxu0 0.0
  %2989 = vmatprep.subr.mxu0 0.0
  %2990 = vmatpush2.msra.mxu0 0.0
  %2991 = vmatprep.subr.mxu0 0.0
  %2992 = vmatpush2.msra.mxu0 0.0
  %2993 = vmatprep.subr.mxu0 0.0
  %2994 = vmatpush2.msra.mxu0 0.0
  %2995 = vmatprep.subr.mxu0 0.0
  %2996 = vmatpush2.msra.mxu0 0.0
  %2997 = vmatprep.subr.mxu0 0.0
  %2998 = vmatpush2.msra.mxu0 0.0
  %2999 = vmatprep.subr.mxu0 0.0
  %3000 = vmatpush2.msra.mxu0 0.0
  %3001 = vmatprep.subr.mxu0 0.0
  %3002 = vmatpush2.msra.mxu0 0.0
  %3003 = vmatprep.subr.mxu0 0.0
  %3004 = vmatpush2.msra.mxu0 0.0
  %3005 = vmatprep.subr.mxu0 0.0
  %3006 = vmatpush2.msra.mxu0 0.0
  %3007 = vmatprep.subr.mxu0 0.0
  %3008 = vmatpush2.msra.mxu0 0.0
  %3009 = vmatprep.subr.mxu0 0.0
  %3010 = vmatpush2.msra.mxu0 0.0
  %3011 = vmatprep.subr.mxu0 0.0
  %3012 = vmatpush2.msra.mxu0 0.0
  %3013 = vmatprep.subr.mxu0 0.0
  %3014 = vmatpush2.msra.mxu0 0.0
  %3015 = vmatprep.subr.mxu0 0.0
  %3016 = vmatpush2.msra.mxu0 0.0
  %3017 = vmatprep.subr.mxu0 0.0
  %3018 = vmatpush2.msra.mxu0 0.0
  %3019 = vmatprep.mubr.f32.mxu0 0.0
  %3020 = vmatmul.mubr.f32.gmra.mxu0 %v77
  %v3021 = vpop.f32.mrf.mxu0
  %v3022 = vadd.f32 0.0, %v3021
  %v3023 = vpop.f32.mrf.mxu0
  %3024 = vmatprep.mubr.f32.mxu0 0.0
  %3025 = vmatmul.mubr.f32.gmra.mxu0 %v80
  %v3026 = vpop.f32.mrf.mxu0
  %v3027 = vadd.f32 0.0, %v3026
  %v3028 = vpop.f32.mrf.mxu0
  %3029 = vmatprep.mubr.f32.mxu0 0.0
  %3030 = vmatmul.mubr.f32.gmra.mxu0 %v83
  %v3031 = vpop.f32.mrf.mxu0
  %v3032 = vadd.f32 0.0, %v3031
  %v3033 = vpop.f32.mrf.mxu0
  %3034 = vmatprep.mubr.f32.mxu0 0.0
  %3035 = vmatmul.mubr.f32.gmra.mxu0 %v86
  %v3036 = vpop.f32.mrf.mxu0
  %v3037 = vadd.f32 0.0, %v3036
  %v3038 = vpop.f32.mrf.mxu0
  %3039 = vdwg.mxu0
  %v3040 = vadd.f32 %v176, %v3022
  %v3041 = vadd.f32 %v181, %v3027
  %v3042 = vadd.f32 %v186, %v3032
  %v3043 = vadd.f32 %v191, %v3037
  %v3044 = vld [vmem:[%s197 + $0x7] sm:$0x1]
  %v3045 = vlaneseq
  %v3046 = vshrl.u32 %v3045, 7
  %v3047 = vsub.s32 0, %v3046
  %v3048 = vrot.slane %v3044, %v3047
  %vm3049 = vcmp.eq.s32.totalorder %v20, %v3048
  %vm3050 = vcmp.eq.s32.totalorder %v21, %v3048
  %vm3051 = vcmp.eq.s32.totalorder %v22, %v3048
  %vm3052 = vcmp.eq.s32.totalorder %v23, %v3048
  %vm3053 = vcmp.eq.s32.totalorder %v24, %v3048
  %vm3054 = vcmp.eq.s32.totalorder %v25, %v3048
  %vm3055 = vcmp.eq.s32.totalorder %v26, %v3048
  %v3056 = vsel %vm3049, 1, 0
  %v3057 = vsel %vm3050, 1, 0
  %v3058 = vsel %vm3051, 1, 0
  %v3059 = vsel %vm3052, 1, 0
  %v3060 = vsel %vm3053, 1, 0
  %v3061 = vsel %vm3054, 1, 0
  %v3062 = vsel %vm3055, 1, 0
  %v3063 = vcvt.s32.f32 %v3056
  %v3064 = vcvt.s32.f32 %v3057
  %v3065 = vcvt.s32.f32 %v3058
  %v3066 = vcvt.s32.f32 %v3059
  %v3067 = vcvt.s32.f32 %v3060
  %v3068 = vcvt.s32.f32 %v3061
  %v3069 = vcvt.s32.f32 %v3062
  %3070 = vmatprep.subr.mxu0 0.0
  %3071 = vmatpush1.msra.mxu0 0.0
  %3072 = vmatprep.subr.mxu0 0.0
  %3073 = vmatpush1.msra.mxu0 0.0
  %3074 = vmatprep.subr.mxu0 0.0
  %3075 = vmatpush1.msra.mxu0 0.0
  %3076 = vmatprep.subr.mxu0 0.0
  %3077 = vmatpush1.msra.mxu0 0.0
  %3078 = vmatprep.subr.mxu0 0.0
  %3079 = vmatpush1.msra.mxu0 0.0
  %3080 = vmatprep.subr.mxu0 0.0
  %3081 = vmatpush1.msra.mxu0 0.0
  %3082 = vmatprep.subr.mxu0 0.0
  %3083 = vmatpush1.msra.mxu0 0.0
  %3084 = vmatprep.subr.mxu0 0.0
  %3085 = vmatpush1.msra.mxu0 0.0
  %3086 = vmatprep.subr.mxu0 0.0
  %3087 = vmatpush1.msra.mxu0 0.0
  %3088 = vmatprep.subr.mxu0 0.0
  %3089 = vmatpush1.msra.mxu0 %v3069
  %3090 = vmatprep.subr.mxu0 0.0
  %3091 = vmatpush1.msra.mxu0 %v3068
  %3092 = vmatprep.subr.mxu0 0.0
  %3093 = vmatpush1.msra.mxu0 %v3067
  %3094 = vmatprep.subr.mxu0 0.0
  %3095 = vmatpush1.msra.mxu0 %v3066
  %3096 = vmatprep.subr.mxu0 0.0
  %3097 = vmatpush1.msra.mxu0 %v3065
  %3098 = vmatprep.subr.mxu0 0.0
  %3099 = vmatpush1.msra.mxu0 %v3064
  %3100 = vmatprep.subr.mxu0 0.0
  %3101 = vmatpush1.msra.mxu0 %v3063
  %3102 = vmatprep.subr.mxu0 0.0
  %3103 = vmatpush2.msra.mxu0 0.0
  %3104 = vmatprep.subr.mxu0 0.0
  %3105 = vmatpush2.msra.mxu0 0.0
  %3106 = vmatprep.subr.mxu0 0.0
  %3107 = vmatpush2.msra.mxu0 0.0
  %3108 = vmatprep.subr.mxu0 0.0
  %3109 = vmatpush2.msra.mxu0 0.0
  %3110 = vmatprep.subr.mxu0 0.0
  %3111 = vmatpush2.msra.mxu0 0.0
  %3112 = vmatprep.subr.mxu0 0.0
  %3113 = vmatpush2.msra.mxu0 0.0
  %3114 = vmatprep.subr.mxu0 0.0
  %3115 = vmatpush2.msra.mxu0 0.0
  %3116 = vmatprep.subr.mxu0 0.0
  %3117 = vmatpush2.msra.mxu0 0.0
  %3118 = vmatprep.subr.mxu0 0.0
  %3119 = vmatpush2.msra.mxu0 0.0
  %3120 = vmatprep.subr.mxu0 0.0
  %3121 = vmatpush2.msra.mxu0 0.0
  %3122 = vmatprep.subr.mxu0 0.0
  %3123 = vmatpush2.msra.mxu0 0.0
  %3124 = vmatprep.subr.mxu0 0.0
  %3125 = vmatpush2.msra.mxu0 0.0
  %3126 = vmatprep.subr.mxu0 0.0
  %3127 = vmatpush2.msra.mxu0 0.0
  %3128 = vmatprep.subr.mxu0 0.0
  %3129 = vmatpush2.msra.mxu0 0.0
  %3130 = vmatprep.subr.mxu0 0.0
  %3131 = vmatpush2.msra.mxu0 0.0
  %3132 = vmatprep.subr.mxu0 0.0
  %3133 = vmatpush2.msra.mxu0 0.0
  %3134 = vmatprep.mubr.f32.mxu0 0.0
  %3135 = vmatmul.mubr.f32.gmra.mxu0 %v225
  %v3136 = vpop.f32.mrf.mxu0
  %v3137 = vadd.f32 0.0, %v3136
  %v3138 = vpop.f32.mrf.mxu0
  %3139 = vmatprep.mubr.f32.mxu0 0.0
  %3140 = vmatmul.mubr.f32.gmra.mxu0 %v228
  %v3141 = vpop.f32.mrf.mxu0
  %v3142 = vadd.f32 0.0, %v3141
  %v3143 = vpop.f32.mrf.mxu0
  %3144 = vmatprep.mubr.f32.mxu0 0.0
  %3145 = vmatmul.mubr.f32.gmra.mxu0 %v231
  %v3146 = vpop.f32.mrf.mxu0
  %v3147 = vadd.f32 0.0, %v3146
  %v3148 = vpop.f32.mrf.mxu0
  %3149 = vmatprep.mubr.f32.mxu0 0.0
  %3150 = vmatmul.mubr.f32.gmra.mxu0 %v234
  %v3151 = vpop.f32.mrf.mxu0
  %v3152 = vadd.f32 0.0, %v3151
  %v3153 = vpop.f32.mrf.mxu0
  %3154 = vdwg.mxu0
  %v3155 = vadd.f32 %v3040, %v3137
  %v3156 = vadd.f32 %v3041, %v3142
  %v3157 = vadd.f32 %v3042, %v3147
  %v3158 = vadd.f32 %v3043, %v3152
  %v3159 = vld [vmem:[%s325 + $0x7] sm:$0x1]
  %v3160 = vlaneseq
  %v3161 = vshrl.u32 %v3160, 7
  %v3162 = vsub.s32 0, %v3161
  %v3163 = vrot.slane %v3159, %v3162
  %vm3164 = vcmp.eq.s32.totalorder %v20, %v3163
  %vm3165 = vcmp.eq.s32.totalorder %v21, %v3163
  %vm3166 = vcmp.eq.s32.totalorder %v22, %v3163
  %vm3167 = vcmp.eq.s32.totalorder %v23, %v3163
  %vm3168 = vcmp.eq.s32.totalorder %v24, %v3163
  %vm3169 = vcmp.eq.s32.totalorder %v25, %v3163
  %vm3170 = vcmp.eq.s32.totalorder %v26, %v3163
  %v3171 = vsel %vm3164, 1, 0
  %v3172 = vsel %vm3165, 1, 0
  %v3173 = vsel %vm3166, 1, 0
  %v3174 = vsel %vm3167, 1, 0
  %v3175 = vsel %vm3168, 1, 0
  %v3176 = vsel %vm3169, 1, 0
  %v3177 = vsel %vm3170, 1, 0
  %v3178 = vcvt.s32.f32 %v3171
  %v3179 = vcvt.s32.f32 %v3172
  %v3180 = vcvt.s32.f32 %v3173
  %v3181 = vcvt.s32.f32 %v3174
  %v3182 = vcvt.s32.f32 %v3175
  %v3183 = vcvt.s32.f32 %v3176
  %v3184 = vcvt.s32.f32 %v3177
  %3185 = vmatprep.subr.mxu0 0.0
  %3186 = vmatpush1.msra.mxu0 0.0
  %3187 = vmatprep.subr.mxu0 0.0
  %3188 = vmatpush1.msra.mxu0 0.0
  %3189 = vmatprep.subr.mxu0 0.0
  %3190 = vmatpush1.msra.mxu0 0.0
  %3191 = vmatprep.subr.mxu0 0.0
  %3192 = vmatpush1.msra.mxu0 0.0
  %3193 = vmatprep.subr.mxu0 0.0
  %3194 = vmatpush1.msra.mxu0 0.0
  %3195 = vmatprep.subr.mxu0 0.0
  %3196 = vmatpush1.msra.mxu0 0.0
  %3197 = vmatprep.subr.mxu0 0.0
  %3198 = vmatpush1.msra.mxu0 0.0
  %3199 = vmatprep.subr.mxu0 0.0
  %3200 = vmatpush1.msra.mxu0 0.0
  %3201 = vmatprep.subr.mxu0 0.0
  %3202 = vmatpush1.msra.mxu0 0.0
  %3203 = vmatprep.subr.mxu0 0.0
  %3204 = vmatpush1.msra.mxu0 %v3184
  %3205 = vmatprep.subr.mxu0 0.0
  %3206 = vmatpush1.msra.mxu0 %v3183
  %3207 = vmatprep.subr.mxu0 0.0
  %3208 = vmatpush1.msra.mxu0 %v3182
  %3209 = vmatprep.subr.mxu0 0.0
  %3210 = vmatpush1.msra.mxu0 %v3181
  %3211 = vmatprep.subr.mxu0 0.0
  %3212 = vmatpush1.msra.mxu0 %v3180
  %3213 = vmatprep.subr.mxu0 0.0
  %3214 = vmatpush1.msra.mxu0 %v3179
  %3215 = vmatprep.subr.mxu0 0.0
  %3216 = vmatpush1.msra.mxu0 %v3178
  %3217 = vmatprep.subr.mxu0 0.0
  %3218 = vmatpush2.msra.mxu0 0.0
  %3219 = vmatprep.subr.mxu0 0.0
  %3220 = vmatpush2.msra.mxu0 0.0
  %3221 = vmatprep.subr.mxu0 0.0
  %3222 = vmatpush2.msra.mxu0 0.0
  %3223 = vmatprep.subr.mxu0 0.0
  %3224 = vmatpush2.msra.mxu0 0.0
  %3225 = vmatprep.subr.mxu0 0.0
  %3226 = vmatpush2.msra.mxu0 0.0
  %3227 = vmatprep.subr.mxu0 0.0
  %3228 = vmatpush2.msra.mxu0 0.0
  %3229 = vmatprep.subr.mxu0 0.0
  %3230 = vmatpush2.msra.mxu0 0.0
  %3231 = vmatprep.subr.mxu0 0.0
  %3232 = vmatpush2.msra.mxu0 0.0
  %3233 = vmatprep.subr.mxu0 0.0
  %3234 = vmatpush2.msra.mxu0 0.0
  %3235 = vmatprep.subr.mxu0 0.0
  %3236 = vmatpush2.msra.mxu0 0.0
  %3237 = vmatprep.subr.mxu0 0.0
  %3238 = vmatpush2.msra.mxu0 0.0
  %3239 = vmatprep.subr.mxu0 0.0
  %3240 = vmatpush2.msra.mxu0 0.0
  %3241 = vmatprep.subr.mxu0 0.0
  %3242 = vmatpush2.msra.mxu0 0.0
  %3243 = vmatprep.subr.mxu0 0.0
  %3244 = vmatpush2.msra.mxu0 0.0
  %3245 = vmatprep.subr.mxu0 0.0
  %3246 = vmatpush2.msra.mxu0 0.0
  %3247 = vmatprep.subr.mxu0 0.0
  %3248 = vmatpush2.msra.mxu0 0.0
  %3249 = vmatprep.mubr.f32.mxu0 0.0
  %3250 = vmatmul.mubr.f32.gmra.mxu0 %v353
  %v3251 = vpop.f32.mrf.mxu0
  %v3252 = vadd.f32 0.0, %v3251
  %v3253 = vpop.f32.mrf.mxu0
  %3254 = vmatprep.mubr.f32.mxu0 0.0
  %3255 = vmatmul.mubr.f32.gmra.mxu0 %v356
  %v3256 = vpop.f32.mrf.mxu0
  %v3257 = vadd.f32 0.0, %v3256
  %v3258 = vpop.f32.mrf.mxu0
  %3259 = vmatprep.mubr.f32.mxu0 0.0
  %3260 = vmatmul.mubr.f32.gmra.mxu0 %v359
  %v3261 = vpop.f32.mrf.mxu0
  %v3262 = vadd.f32 0.0, %v3261
  %v3263 = vpop.f32.mrf.mxu0
  %3264 = vmatprep.mubr.f32.mxu0 0.0
  %3265 = vmatmul.mubr.f32.gmra.mxu0 %v362
  %v3266 = vpop.f32.mrf.mxu0
  %v3267 = vadd.f32 0.0, %v3266
  %v3268 = vpop.f32.mrf.mxu0
  %3269 = vdwg.mxu0
  %v3270 = vadd.f32 %v3155, %v3252
  %v3271 = vadd.f32 %v3156, %v3257
  %v3272 = vadd.f32 %v3157, %v3262
  %v3273 = vadd.f32 %v3158, %v3267
  %v3274 = vmax.f32 %v3270, 0.0
  %v3275 = vmax.f32 %v3271, 0.0
  %v3276 = vmax.f32 %v3272, 0.0
  %v3277 = vmax.f32 %v3273, 0.0
  %3278 = vxpose.xlu0.b32.start [1/16] %v3274, 128
  %3279 = vxpose.xlu0.b32.cont [2/16] %v3275, 128
  %3280 = vxpose.xlu0.b32.cont [3/16] %v3276, 128
  %3281 = vxpose.xlu0.b32.cont [4/16] %v3277, 128
  %3282 = vxpose.xlu0.b32.cont [5/16] 0.0, 128
  %3283 = vxpose.xlu0.b32.cont [6/16] 0.0, 128
  %3284 = vxpose.xlu0.b32.cont [7/16] 0.0, 128
  %3285 = vxpose.xlu0.b32.cont [8/16] 0.0, 128
  %3286 = vxpose.xlu0.b32.cont [9/16] 0.0, 128
  %3287 = vxpose.xlu0.b32.cont [10/16] 0.0, 128
  %3288 = vxpose.xlu0.b32.cont [11/16] 0.0, 128
  %3289 = vxpose.xlu0.b32.cont [12/16] 0.0, 128
  %3290 = vxpose.xlu0.b32.cont [13/16] 0.0, 128
  %3291 = vxpose.xlu0.b32.cont [14/16] 0.0, 128
  %3292 = vxpose.xlu0.b32.cont [15/16] 0.0, 128
  %3293 = vxpose.xlu0.b32.end [16/16] 0.0, 128
  %v3294 = vpop.trf.xlu0
  %v3295 = vpop.trf.xlu0
  %v3296 = vpop.trf.xlu0
  %v3297 = vpop.trf.xlu0
  %v3298 = vpop.trf.xlu0
  %v3299 = vpop.trf.xlu0
  %v3300 = vpop.trf.xlu0
  %v3301 = vpop.trf.xlu0
  %v3302 = vpop.trf.xlu0
  %v3303 = vpop.trf.xlu0
  %v3304 = vpop.trf.xlu0
  %v3305 = vpop.trf.xlu0
  %v3306 = vpop.trf.xlu0
  %v3307 = vpop.trf.xlu0
  %v3308 = vpop.trf.xlu0
  %v3309 = vpop.trf.xlu0
  %s3310 = scalar_lea.vmem %s4, 56
  %3311 = vst.msk [vmem:[%s3310] sm:$0xff] %vm489, %v3294
  %v3312 = vmul.f32 %v3274, %v494
  %v3313 = vmul.f32 %v3275, %v499
  %v3314 = vmul.f32 %v3276, %v504
  %v3315 = vmul.f32 %v3277, %v509
  %v3316 = vsel %vm515, %v3312, 0.0
  %v3317 = vsel %vm515, %v3313, 0.0
  %v3318 = vadd.f32 %v3316, %v3317
  %v3319 = vsel %vm515, %v3314, 0.0
  %v3320 = vadd.f32 %v3318, %v3319
  %v3321 = vsel %vm515, %v3315, 0.0
  %v3322 = vadd.f32 %v3320, %v3321
  %v3323 = vrot.slane %v3322, 4
  %v3324 = vadd.f32 %v3322, %v3323
  %v3325 = vrot.slane %v3324, 2
  %v3326 = vadd.f32 %v3324, %v3325
  %v3327 = vrot.slane %v3326, 1
  %v3328 = vadd.f32 %v3326, %v3327
  %v3329 = vmax.f32 %v528, %v928
  %v3330 = vmax.f32 %v3329, %v1328
  %v3331 = vmax.f32 %v3330, %v1728
  %v3332 = vmax.f32 %v3331, %v2128
  %v3333 = vmax.f32 %v3332, %v2528
  %v3334 = vmax.f32 %v3333, %v2928
  %v3335 = vmax.f32 %v3334, %v3328
  %v3336 = vsub.f32 %v528, %v3335
  %v3337 = vmul.f32 %v3336, 1.442695
  %v3338 = vpow.pop %v3337
  %v3339 = vsub.f32 %v928, %v3335
  %v3340 = vmul.f32 %v3339, 1.442695
  %v3341 = vpow.pop %v3340
  %v3342 = vsub.f32 %v1328, %v3335
  %v3343 = vmul.f32 %v3342, 1.442695
  %v3344 = vpow.pop %v3343
  %v3345 = vsub.f32 %v1728, %v3335
  %v3346 = vmul.f32 %v3345, 1.442695
  %v3347 = vpow.pop %v3346
  %v3348 = vsub.f32 %v2128, %v3335
  %v3349 = vmul.f32 %v3348, 1.442695
  %v3350 = vpow.pop %v3349
  %v3351 = vsub.f32 %v2528, %v3335
  %v3352 = vmul.f32 %v3351, 1.442695
  %v3353 = vpow.pop %v3352
  %v3354 = vsub.f32 %v2928, %v3335
  %v3355 = vmul.f32 %v3354, 1.442695
  %v3356 = vpow.pop %v3355
  %v3357 = vsub.f32 %v3328, %v3335
  %v3358 = vmul.f32 %v3357, 1.442695
  %v3359 = vpow.pop %v3358
  %v3360 = vadd.f32 %v3338, %v3341
  %v3361 = vadd.f32 %v3360, %v3344
  %v3362 = vadd.f32 %v3361, %v3347
  %v3363 = vadd.f32 %v3362, %v3350
  %v3364 = vadd.f32 %v3363, %v3353
  %v3365 = vadd.f32 %v3364, %v3356
  %v3366 = vadd.f32 %v3365, %v3359
  %v3367 = vrcp.pop %v3366
  %v3368 = vmul.f32 1.0, %v3367
  %v3369 = vmul.f32 %v3338, %v3368
  %v3370 = vmul.f32 %v453, %v3369
  %v3371 = vmul.f32 %v454, %v3369
  %v3372 = vmul.f32 %v455, %v3369
  %v3373 = vmul.f32 %v456, %v3369
  %v3374 = vadd.f32 %v3370, 0.0
  %v3375 = vadd.f32 %v3371, 0.0
  %v3376 = vadd.f32 %v3372, 0.0
  %v3377 = vadd.f32 %v3373, 0.0
  %v3378 = vmul.f32 %v3341, %v3368
  %v3379 = vmul.f32 %v874, %v3378
  %v3380 = vmul.f32 %v875, %v3378
  %v3381 = vmul.f32 %v876, %v3378
  %v3382 = vmul.f32 %v877, %v3378
  %v3383 = vadd.f32 %v3374, %v3379
  %v3384 = vadd.f32 %v3375, %v3380
  %v3385 = vadd.f32 %v3376, %v3381
  %v3386 = vadd.f32 %v3377, %v3382
  %v3387 = vmul.f32 %v3344, %v3368
  %v3388 = vmul.f32 %v1274, %v3387
  %v3389 = vmul.f32 %v1275, %v3387
  %v3390 = vmul.f32 %v1276, %v3387
  %v3391 = vmul.f32 %v1277, %v3387
  %v3392 = vadd.f32 %v3383, %v3388
  %v3393 = vadd.f32 %v3384, %v3389
  %v3394 = vadd.f32 %v3385, %v3390
  %v3395 = vadd.f32 %v3386, %v3391
  %v3396 = vmul.f32 %v3347, %v3368
  %v3397 = vmul.f32 %v1674, %v3396
  %v3398 = vmul.f32 %v1675, %v3396
  %v3399 = vmul.f32 %v1676, %v3396
  %v3400 = vmul.f32 %v1677, %v3396
  %v3401 = vadd.f32 %v3392, %v3397
  %v3402 = vadd.f32 %v3393, %v3398
  %v3403 = vadd.f32 %v3394, %v3399
  %v3404 = vadd.f32 %v3395, %v3400
  %v3405 = vmul.f32 %v3350, %v3368
  %v3406 = vmul.f32 %v2074, %v3405
  %v3407 = vmul.f32 %v2075, %v3405
  %v3408 = vmul.f32 %v2076, %v3405
  %v3409 = vmul.f32 %v2077, %v3405
  %v3410 = vadd.f32 %v3401, %v3406
  %v3411 = vadd.f32 %v3402, %v3407
  %v3412 = vadd.f32 %v3403, %v3408
  %v3413 = vadd.f32 %v3404, %v3409
  %v3414 = vmul.f32 %v3353, %v3368
  %v3415 = vmul.f32 %v2474, %v3414
  %v3416 = vmul.f32 %v2475, %v3414
  %v3417 = vmul.f32 %v2476, %v3414
  %v3418 = vmul.f32 %v2477, %v3414
  %v3419 = vadd.f32 %v3410, %v3415
  %v3420 = vadd.f32 %v3411, %v3416
  %v3421 = vadd.f32 %v3412, %v3417
  %v3422 = vadd.f32 %v3413, %v3418
  %v3423 = vmul.f32 %v3356, %v3368
  %v3424 = vmul.f32 %v2874, %v3423
  %v3425 = vmul.f32 %v2875, %v3423
  %v3426 = vmul.f32 %v2876, %v3423
  %v3427 = vmul.f32 %v2877, %v3423
  %v3428 = vadd.f32 %v3419, %v3424
  %v3429 = vadd.f32 %v3420, %v3425
  %v3430 = vadd.f32 %v3421, %v3426
  %v3431 = vadd.f32 %v3422, %v3427
  %v3432 = vmul.f32 %v3359, %v3368
  %v3433 = vmul.f32 %v3274, %v3432
  %v3434 = vmul.f32 %v3275, %v3432
  %v3435 = vmul.f32 %v3276, %v3432
  %v3436 = vmul.f32 %v3277, %v3432
  %v3437 = vadd.f32 %v3428, %v3433
  %v3438 = vadd.f32 %v3429, %v3434
  %v3439 = vadd.f32 %v3430, %v3435
  %v3440 = vadd.f32 %v3431, %v3436
  %3441 = vxpose.xlu0.b32.start [1/16] %v3437, 128
  %3442 = vxpose.xlu0.b32.cont [2/16] %v3438, 128
  %3443 = vxpose.xlu0.b32.cont [3/16] %v3439, 128
  %3444 = vxpose.xlu0.b32.cont [4/16] %v3440, 128
  %3445 = vxpose.xlu0.b32.cont [5/16] 0.0, 128
  %3446 = vxpose.xlu0.b32.cont [6/16] 0.0, 128
  %3447 = vxpose.xlu0.b32.cont [7/16] 0.0, 128
  %3448 = vxpose.xlu0.b32.cont [8/16] 0.0, 128
  %3449 = vxpose.xlu0.b32.cont [9/16] 0.0, 128
  %3450 = vxpose.xlu0.b32.cont [10/16] 0.0, 128
  %3451 = vxpose.xlu0.b32.cont [11/16] 0.0, 128
  %3452 = vxpose.xlu0.b32.cont [12/16] 0.0, 128
  %3453 = vxpose.xlu0.b32.cont [13/16] 0.0, 128
  %3454 = vxpose.xlu0.b32.cont [14/16] 0.0, 128
  %3455 = vxpose.xlu0.b32.cont [15/16] 0.0, 128
  %3456 = vxpose.xlu0.b32.end [16/16] 0.0, 128
  %v3457 = vpop.trf.xlu0
  %v3458 = vpop.trf.xlu0
  %v3459 = vpop.trf.xlu0
  %v3460 = vpop.trf.xlu0
  %v3461 = vpop.trf.xlu0
  %v3462 = vpop.trf.xlu0
  %v3463 = vpop.trf.xlu0
  %v3464 = vpop.trf.xlu0
  %v3465 = vpop.trf.xlu0
  %v3466 = vpop.trf.xlu0
  %v3467 = vpop.trf.xlu0
  %v3468 = vpop.trf.xlu0
  %v3469 = vpop.trf.xlu0
  %v3470 = vpop.trf.xlu0
  %v3471 = vpop.trf.xlu0
  %v3472 = vpop.trf.xlu0
  %3473 = vst.msk [vmem:[%s5] sm:$0xff] %vm489, %v3457
  // Predicated region
  $region18: #{source_image_attention_encoder_v2.1} parent=0 // pred_check
    _
  $region19: #{source_image_attention_encoder_v2.1} parent=0 // pred_check_branch
    %3475 = sbr.rel (0) target = $region21
  $region20: #{source_image_attention_encoder_v2.1} parent=0 // pred_region
    _
  $region21: #{source_image_attention_encoder_v2.1} parent=0 // pred_fallthru
    _
  // Predicated region
  $region22: #{source_image_attention_encoder_v2.1} parent=0 // pred_check
    _
  $region23: #{source_image_attention_encoder_v2.1} parent=0 // pred_check_branch
    %3477 = sbr.rel (0) target = $region25
  $region24: #{source_image_attention_encoder_v2.1} parent=0 // pred_region
    _
  $region25: #{source_image_attention_encoder_v2.1} parent=0 // pred_fallthru
    _
  // Predicated region
  $region26: #{source_image_attention_encoder_v2.1} parent=0 // pred_check
    _
  $region27: #{source_image_attention_encoder_v2.1} parent=0 // pred_check_branch
    %3479 = sbr.rel (0) target = $region29
  $region28: #{source_image_attention_encoder_v2.1} parent=0 // pred_region
    _
  $region29: #{source_image_attention_encoder_v2.1} parent=0 // pred_fallthru
    _
  // Predicated region
  $region30: #{source_image_attention_encoder_v2.1} parent=0 // pred_check
    _
  $region31: #{source_image_attention_encoder_v2.1} parent=0 // pred_check_branch
    %3481 = sbr.rel (0) target = $region33
  $region32: #{source_image_attention_encoder_v2.1} parent=0 // pred_region
    _
  $region33: #{source_image_attention_encoder_v2.1} parent=0 // pred_fallthru
    _

</llo_original>
